<compile_context>
chip_gen: v6e
topology: v6e:2x2x1
jax: 0.10.0
libtpu: 0.0.40
codegen_flags: <defaults>
</compile_context>

<pallas_src>
import functools

import jax
import jax.numpy as jnp
from jax.experimental import pallas as pl
from jax.experimental.pallas import tpu as pltpu


# ---------------------------------------------------------------- kernel ----

def _se_bottleneck_kernel(x_ref, w1_ref, b1_ref, w2_ref, b2_ref,
                          w3_ref, b3_ref, sw1_ref, sw2_ref,
                          o_ref, pad_ref, *, H, W):
    """Fused SEBottleneck forward for ONE image.

    x_ref  : (1, Cin, HW)   f32   channel-major input (residual + conv1 lhs)
    w1_ref : (Cin, P)       bf16  conv1 1x1 weight (BN1 folded)
    w2_ref : (9*P, P)       bf16  conv2 3x3 weight, im2col layout (BN2 folded)
    w3_ref : (P, C4)        bf16  conv3 1x1 weight (BN3 folded)
    b*_ref : (1, .)         f32   folded BN biases
    sw1/sw2: (C4, C4//r), (C4//r, C4) bf16 SE FC weights
    o_ref  : (1, C4, HW)    f32   channel-major output (NCHW-compatible)
    pad_ref: (H+2, W+2, P)  f32   VMEM halo scratch for the 3x3 conv
    """
    x_chw = x_ref[0]                                    # (Cin, HW) f32
    x_bf = x_chw.astype(jnp.bfloat16)
    P = w1_ref.shape[1]

    # conv1 (1x1) + BN1 + ReLU.  Contract channel (dim 0) of the lhs directly,
    # so no standalone NCHW->NHWC transpose is ever materialised.
    h1 = jax.lax.dot_general(x_bf, w1_ref[...],
                             (((0,), (0,)), ((), ())),
                             preferred_element_type=jnp.float32)    # (HW, P)
    h1 = jnp.maximum(h1 + b1_ref[...], 0.0)

    # conv2 (3x3, stride 1, pad 1) + BN2 + ReLU as ONE im2col matmul (K = 9P).
    # Scratch is per-core; re-zero every step so the halo border is always 0.
    pad_ref[...] = jnp.zeros_like(pad_ref)
    pad_ref[1:H + 1, 1:W + 1, :] = h1.reshape(H, W, P)
    taps = []
    for dy in range(3):
        for dx in range(3):
            taps.append(pad_ref[dy:dy + H, dx:dx + W, :].reshape(H * W, P))
    patches = jnp.concatenate(taps, axis=-1).astype(jnp.bfloat16)   # (HW, 9P)
    h2 = jnp.dot(patches, w2_ref[...], preferred_element_type=jnp.float32)
    h2 = jnp.maximum(h2 + b2_ref[...], 0.0).astype(jnp.bfloat16)    # (HW, P)

    # conv3 (1x1) + BN3 (no ReLU before SE).
    h3 = jnp.dot(h2, w3_ref[...], preferred_element_type=jnp.float32)
    h3 = h3 + b3_ref[...]                                           # (HW, C4)

    # SE: global average pool + Linear -> ReLU -> Linear -> Sigmoid (resident).
    pooled = jnp.mean(h3, axis=0, keepdims=True)                    # (1, C4)
    e = jnp.dot(pooled.astype(jnp.bfloat16), sw1_ref[...],
                preferred_element_type=jnp.float32)
    e = jnp.maximum(e, 0.0)
    z = jnp.dot(e.astype(jnp.bfloat16), sw2_ref[...],
                preferred_element_type=jnp.float32)
    y = jax.nn.sigmoid(z)                                           # (1, C4)

    # SE channel scale + residual add (downsample=None) + final ReLU.
    # Transpose back to channel-major in-kernel (XLU is idle) so the output
    # store stays lane-dense over HW and no XLA transpose is needed outside.
    scaled = h3 * y                                                 # (HW, C4)
    o_ref[0] = jnp.maximum(scaled.T + x_chw, 0.0)                   # (C4, HW)


# --------------------------------------------------------------- wrapper ----

def se_bottleneck_forward(x_nchw, params):
    N, Cin, H, W = x_nchw.shape
    HW = H * W
    planes = params["w1"].shape[1]
    cout = params["w3"].shape[1]
    cr = params["se_w1"].shape[1]

    x_cm = x_nchw.reshape(N, Cin, HW)           # free (row-major) reshape

    kernel = functools.partial(_se_bottleneck_kernel, H=H, W=W)
    out = pl.pallas_call(
        kernel,
        out_shape=jax.ShapeDtypeStruct((N, cout, HW), jnp.float32),
        grid=(N,),
        in_specs=[
            pl.BlockSpec((1, Cin, HW), lambda n: (n, 0, 0)),       # x
            pl.BlockSpec((Cin, planes), lambda n: (0, 0)),         # w1
            pl.BlockSpec((1, planes), lambda n: (0, 0)),           # b1
            pl.BlockSpec((9 * planes, planes), lambda n: (0, 0)),  # w2 (im2col)
            pl.BlockSpec((1, planes), lambda n: (0, 0)),           # b2
            pl.BlockSpec((planes, cout), lambda n: (0, 0)),        # w3
            pl.BlockSpec((1, cout), lambda n: (0, 0)),             # b3
            pl.BlockSpec((cout, cr), lambda n: (0, 0)),            # se_w1
            pl.BlockSpec((cr, cout), lambda n: (0, 0)),            # se_w2
        ],
        out_specs=pl.BlockSpec((1, cout, HW), lambda n: (n, 0, 0)),
        scratch_shapes=[pltpu.VMEM((H + 2, W + 2, planes), jnp.float32)],
        compiler_params=pltpu.CompilerParams(
            dimension_semantics=("parallel",),
            vmem_limit_bytes=32 * 1024 * 1024),
    )(x_cm, params["w1"], params["b1"].reshape(1, planes),
      params["w2"], params["b2"].reshape(1, planes),
      params["w3"], params["b3"].reshape(1, cout),
      params["se_w1"], params["se_w2"])

    return out.reshape(N, cout, H, W)           # free reshape back to NCHW


# ---------------------------------------------------------------- params ----

def build_params(key, inplanes=256, planes=64, reduction=16):
    expansion = 4
    cout = planes * expansion
    assert inplanes == cout, "stride=1 / downsample=None requires inplanes == planes*4"
    k1, k2, k3, k4, k5 = jax.random.split(key, 5)
    eps = 1e-5
    bf = jnp.bfloat16

    def bn_fold(c):
        gamma = jnp.ones((c,), jnp.float32)
        beta = jnp.zeros((c,), jnp.float32)
        rmean = jnp.zeros((c,), jnp.float32)
        rvar = jnp.ones((c,), jnp.float32)
        s = gamma / jnp.sqrt(rvar + eps)
        return s, beta - rmean * s

    def kaiming(k, shape, fan_in):
        return jax.random.normal(k, shape, jnp.float32) * (2.0 / fan_in) ** 0.5

    def linear_uniform(k, shape, fan_in):
        bound = fan_in ** -0.5
        return jax.random.uniform(k, shape, jnp.float32, -bound, bound)

    s1, b1 = bn_fold(planes)
    w1 = kaiming(k1, (inplanes, planes), inplanes) * s1[None, :]

    s2, b2 = bn_fold(planes)
    w2 = kaiming(k2, (3, 3, planes, planes), 9 * planes) * s2[None, None, None, :]
    w2 = w2.reshape(9 * planes, planes)                 # im2col layout (tap, cin) x cout

    s3, b3 = bn_fold(cout)
    w3 = kaiming(k3, (planes, cout), planes) * s3[None, :]

    se_w1 = linear_uniform(k4, (cout, cout // reduction), cout)
    se_w2 = linear_uniform(k5, (cout // reduction, cout), cout // reduction)

    return dict(
        w1=w1.astype(bf), b1=b1,
        w2=w2.astype(bf), b2=b2,
        w3=w3.astype(bf), b3=b3,
        se_w1=se_w1.astype(bf), se_w2=se_w2.astype(bf),
    )


# ------------------------------------------------------------------ main ----

if __name__ == "__main__":
    key = jax.random.PRNGKey(0)
    pkey, xkey = jax.random.split(key)

    inplanes, planes = 256, 64       # SEBottleneck(256, 64): out = planes*4 = inplanes
    params = build_params(pkey, inplanes=inplanes, planes=planes, reduction=16)
    x = jax.random.normal(xkey, (2, inplanes, 16, 16), jnp.float32)    # NCHW

    fwd = jax.jit(se_bottleneck_forward)
    out = fwd(x, params)
    jax.block_until_ready(out)
    assert out.shape == (2, inplanes, 16, 16) and out.dtype == jnp.float32
    assert bool(jnp.all(jnp.isfinite(out)))
    print("KERNEL_OK")
</pallas_src>

<mosaic_0001>
module attributes {stable_mosaic.version = 11 : i64} {
  func.func @_se_bottleneck_kernel(%arg0: i32, %arg1: memref<1x256x256xf32, #tpu.memory_space<vmem>>, %arg2: memref<256x64xbf16, #tpu.memory_space<vmem>>, %arg3: memref<1x64xf32, #tpu.memory_space<vmem>>, %arg4: memref<576x64xbf16, #tpu.memory_space<vmem>>, %arg5: memref<1x64xf32, #tpu.memory_space<vmem>>, %arg6: memref<64x256xbf16, #tpu.memory_space<vmem>>, %arg7: memref<1x256xf32, #tpu.memory_space<vmem>>, %arg8: memref<256x16xbf16, #tpu.memory_space<vmem>>, %arg9: memref<16x256xbf16, #tpu.memory_space<vmem>>, %arg10: memref<1x256x256xf32, #tpu.memory_space<vmem>>, %arg11: memref<18x18x64xf32, #tpu.memory_space<vmem>>) attributes {dimension_semantics = [#tpu.dimension_semantics<parallel>], iteration_bounds = array<i64: 2>, scalar_prefetch = 0 : i64, scratch_operands = 1 : i64, tpu.core_type = #tpu.core_type<tc>, window_params = [{transform_indices = @transform_0, window_bounds = array<i64: 1, 256, 256>}, {pipeline_mode = #tpu.pipeline_mode<synchronous>, transform_indices = @transform_1, window_bounds = array<i64: 256, 64>}, {pipeline_mode = #tpu.pipeline_mode<synchronous>, transform_indices = @transform_2, window_bounds = array<i64: 1, 64>}, {pipeline_mode = #tpu.pipeline_mode<synchronous>, transform_indices = @transform_3, window_bounds = array<i64: 576, 64>}, {pipeline_mode = #tpu.pipeline_mode<synchronous>, transform_indices = @transform_4, window_bounds = array<i64: 1, 64>}, {pipeline_mode = #tpu.pipeline_mode<synchronous>, transform_indices = @transform_5, window_bounds = array<i64: 64, 256>}, {pipeline_mode = #tpu.pipeline_mode<synchronous>, transform_indices = @transform_6, window_bounds = array<i64: 1, 256>}, {pipeline_mode = #tpu.pipeline_mode<synchronous>, transform_indices = @transform_7, window_bounds = array<i64: 256, 16>}, {pipeline_mode = #tpu.pipeline_mode<synchronous>, transform_indices = @transform_8, window_bounds = array<i64: 16, 256>}, {transform_indices = @transform_9, window_bounds = array<i64: 1, 256, 256>}]} {
    %c0 = arith.constant 0 : index
    %c0_0 = arith.constant 0 : index
    %c0_1 = arith.constant 0 : index
    %0 = vector.load %arg1[%c0, %c0_0, %c0_1] : memref<1x256x256xf32, #tpu.memory_space<vmem>>, vector<1x256x256xf32>
    %1 = vector.shape_cast %0 : vector<1x256x256xf32> to vector<256x256xf32>
    %2 = arith.truncf %1 : vector<256x256xf32> to vector<256x256xbf16>
    %c0_2 = arith.constant 0 : index
    %c0_3 = arith.constant 0 : index
    %3 = vector.load %arg2[%c0_2, %c0_3] : memref<256x64xbf16, #tpu.memory_space<vmem>>, vector<256x64xbf16>
    %cst = arith.constant dense<0.000000e+00> : vector<256x64xf32>
    %4 = tpu.matmul %2, %3, %cst {dimension_numbers = #tpu.dot_dimension_numbers<[0], [0], [1], [1], [0, 1, 1, 1], [], []>} : vector<256x256xbf16>, vector<256x64xbf16>, vector<256x64xf32> -> vector<256x64xf32>
    %c0_4 = arith.constant 0 : index
    %c0_5 = arith.constant 0 : index
    %5 = vector.load %arg3[%c0_4, %c0_5] : memref<1x64xf32, #tpu.memory_space<vmem>>, vector<1x64xf32>
    %6 = vector.broadcast %5 : vector<1x64xf32> to vector<256x64xf32>
    %7 = arith.addf %4, %6 : vector<256x64xf32>
    %cst_6 = arith.constant 0.000000e+00 : f32
    %8 = vector.broadcast %cst_6 : f32 to vector<256x64xf32>
    %9 = arith.maximumf %7, %8 : vector<256x64xf32>
    %cst_7 = arith.constant 0.000000e+00 : f32
    %10 = vector.broadcast %cst_7 : f32 to vector<18x18x64xf32>
    %c0_8 = arith.constant 0 : index
    %c0_9 = arith.constant 0 : index
    %c0_10 = arith.constant 0 : index
    %11 = vector.load %arg11[%c0_8, %c0_9, %c0_10] : memref<18x18x64xf32, #tpu.memory_space<vmem>>, vector<18x18x64xf32>
    tpu.vector_store %arg11[%c0_8, %c0_9, %c0_10], %10 {strides = array<i32>} : memref<18x18x64xf32, #tpu.memory_space<vmem>>, vector<18x18x64xf32>,
    %12 = vector.shape_cast %9 : vector<256x64xf32> to vector<16x16x64xf32>
    %c1 = arith.constant 1 : index
    %c1_11 = arith.constant 1 : index
    %c0_12 = arith.constant 0 : index
    %13 = vector.load %arg11[%c1, %c1_11, %c0_12] : memref<18x18x64xf32, #tpu.memory_space<vmem>>, vector<16x16x64xf32>
    tpu.vector_store %arg11[%c1, %c1_11, %c0_12], %12 {strides = array<i32>} : memref<18x18x64xf32, #tpu.memory_space<vmem>>, vector<16x16x64xf32>,
    %c0_13 = arith.constant 0 : index
    %c0_14 = arith.constant 0 : index
    %c0_15 = arith.constant 0 : index
    %14 = vector.load %arg11[%c0_13, %c0_14, %c0_15] : memref<18x18x64xf32, #tpu.memory_space<vmem>>, vector<16x16x64xf32>
    %15 = vector.shape_cast %14 : vector<16x16x64xf32> to vector<256x64xf32>
    %c0_16 = arith.constant 0 : index
    %c1_17 = arith.constant 1 : index
    %c0_18 = arith.constant 0 : index
    %16 = vector.load %arg11[%c0_16, %c1_17, %c0_18] : memref<18x18x64xf32, #tpu.memory_space<vmem>>, vector<16x16x64xf32>
    %17 = vector.shape_cast %16 : vector<16x16x64xf32> to vector<256x64xf32>
    %c0_19 = arith.constant 0 : index
    %c2 = arith.constant 2 : index
    %c0_20 = arith.constant 0 : index
    %18 = vector.load %arg11[%c0_19, %c2, %c0_20] : memref<18x18x64xf32, #tpu.memory_space<vmem>>, vector<16x16x64xf32>
    %19 = vector.shape_cast %18 : vector<16x16x64xf32> to vector<256x64xf32>
    %c1_21 = arith.constant 1 : index
    %c0_22 = arith.constant 0 : index
    %c0_23 = arith.constant 0 : index
    %20 = vector.load %arg11[%c1_21, %c0_22, %c0_23] : memref<18x18x64xf32, #tpu.memory_space<vmem>>, vector<16x16x64xf32>
    %21 = vector.shape_cast %20 : vector<16x16x64xf32> to vector<256x64xf32>
    %c1_24 = arith.constant 1 : index
    %c1_25 = arith.constant 1 : index
    %c0_26 = arith.constant 0 : index
    %22 = vector.load %arg11[%c1_24, %c1_25, %c0_26] : memref<18x18x64xf32, #tpu.memory_space<vmem>>, vector<16x16x64xf32>
    %23 = vector.shape_cast %22 : vector<16x16x64xf32> to vector<256x64xf32>
    %c1_27 = arith.constant 1 : index
    %c2_28 = arith.constant 2 : index
    %c0_29 = arith.constant 0 : index
    %24 = vector.load %arg11[%c1_27, %c2_28, %c0_29] : memref<18x18x64xf32, #tpu.memory_space<vmem>>, vector<16x16x64xf32>
    %25 = vector.shape_cast %24 : vector<16x16x64xf32> to vector<256x64xf32>
    %c2_30 = arith.constant 2 : index
    %c0_31 = arith.constant 0 : index
    %c0_32 = arith.constant 0 : index
    %26 = vector.load %arg11[%c2_30, %c0_31, %c0_32] : memref<18x18x64xf32, #tpu.memory_space<vmem>>, vector<16x16x64xf32>
    %27 = vector.shape_cast %26 : vector<16x16x64xf32> to vector<256x64xf32>
    %c2_33 = arith.constant 2 : index
    %c1_34 = arith.constant 1 : index
    %c0_35 = arith.constant 0 : index
    %28 = vector.load %arg11[%c2_33, %c1_34, %c0_35] : memref<18x18x64xf32, #tpu.memory_space<vmem>>, vector<16x16x64xf32>
    %29 = vector.shape_cast %28 : vector<16x16x64xf32> to vector<256x64xf32>
    %c2_36 = arith.constant 2 : index
    %c2_37 = arith.constant 2 : index
    %c0_38 = arith.constant 0 : index
    %30 = vector.load %arg11[%c2_36, %c2_37, %c0_38] : memref<18x18x64xf32, #tpu.memory_space<vmem>>, vector<16x16x64xf32>
    %31 = vector.shape_cast %30 : vector<16x16x64xf32> to vector<256x64xf32>
    %32 = tpu.concatenate %15, %17, %19, %21, %23, %25, %27, %29, %31 in 1 : vector<256x64xf32>, vector<256x64xf32>, vector<256x64xf32>, vector<256x64xf32>, vector<256x64xf32>, vector<256x64xf32>, vector<256x64xf32>, vector<256x64xf32>, vector<256x64xf32> -> vector<256x576xf32>
    %33 = arith.truncf %32 : vector<256x576xf32> to vector<256x576xbf16>
    %c0_39 = arith.constant 0 : index
    %c0_40 = arith.constant 0 : index
    %34 = vector.load %arg4[%c0_39, %c0_40] : memref<576x64xbf16, #tpu.memory_space<vmem>>, vector<576x64xbf16>
    %cst_41 = arith.constant dense<0.000000e+00> : vector<256x64xf32>
    %35 = tpu.matmul %33, %34, %cst_41 {dimension_numbers = #tpu.dot_dimension_numbers<[1], [0], [0], [1], [0, 0, 1, 1], [], []>} : vector<256x576xbf16>, vector<576x64xbf16>, vector<256x64xf32> -> vector<256x64xf32>
    %c0_42 = arith.constant 0 : index
    %c0_43 = arith.constant 0 : index
    %36 = vector.load %arg5[%c0_42, %c0_43] : memref<1x64xf32, #tpu.memory_space<vmem>>, vector<1x64xf32>
    %37 = vector.broadcast %36 : vector<1x64xf32> to vector<256x64xf32>
    %38 = arith.addf %35, %37 : vector<256x64xf32>
    %cst_44 = arith.constant 0.000000e+00 : f32
    %39 = vector.broadcast %cst_44 : f32 to vector<256x64xf32>
    %40 = arith.maximumf %38, %39 : vector<256x64xf32>
    %41 = arith.truncf %40 : vector<256x64xf32> to vector<256x64xbf16>
    %c0_45 = arith.constant 0 : index
    %c0_46 = arith.constant 0 : index
    %42 = vector.load %arg6[%c0_45, %c0_46] : memref<64x256xbf16, #tpu.memory_space<vmem>>, vector<64x256xbf16>
    %cst_47 = arith.constant dense<0.000000e+00> : vector<256x256xf32>
    %43 = tpu.matmul %41, %42, %cst_47 {dimension_numbers = #tpu.dot_dimension_numbers<[1], [0], [0], [1], [0, 0, 1, 1], [], []>} : vector<256x64xbf16>, vector<64x256xbf16>, vector<256x256xf32> -> vector<256x256xf32>
    %c0_48 = arith.constant 0 : index
    %c0_49 = arith.constant 0 : index
    %44 = vector.load %arg7[%c0_48, %c0_49] : memref<1x256xf32, #tpu.memory_space<vmem>>, vector<1x256xf32>
    %45 = vector.broadcast %44 : vector<1x256xf32> to vector<256x256xf32>
    %46 = arith.addf %43, %45 : vector<256x256xf32>
    %cst_50 = arith.constant dense<0.000000e+00> : vector<256xf32>
    %47 = vector.multi_reduction <add>, %46, %cst_50 [0] : vector<256x256xf32> to vector<256xf32>
    %48 = vector.shape_cast %47 : vector<256xf32> to vector<1x256xf32>
    %cst_51 = arith.constant 2.560000e+02 : f32
    %49 = vector.broadcast %cst_51 : f32 to vector<1x256xf32>
    %50 = arith.divf %48, %49 : vector<1x256xf32>
    %51 = arith.truncf %50 : vector<1x256xf32> to vector<1x256xbf16>
    %c0_52 = arith.constant 0 : index
    %c0_53 = arith.constant 0 : index
    %52 = vector.load %arg8[%c0_52, %c0_53] : memref<256x16xbf16, #tpu.memory_space<vmem>>, vector<256x16xbf16>
    %cst_54 = arith.constant dense<0.000000e+00> : vector<1x16xf32>
    %53 = tpu.matmul %51, %52, %cst_54 {dimension_numbers = #tpu.dot_dimension_numbers<[1], [0], [0], [1], [0, 0, 1, 1], [], []>} : vector<1x256xbf16>, vector<256x16xbf16>, vector<1x16xf32> -> vector<1x16xf32>
    %cst_55 = arith.constant 0.000000e+00 : f32
    %54 = vector.broadcast %cst_55 : f32 to vector<1x16xf32>
    %55 = arith.maximumf %53, %54 : vector<1x16xf32>
    %56 = arith.truncf %55 : vector<1x16xf32> to vector<1x16xbf16>
    %c0_56 = arith.constant 0 : index
    %c0_57 = arith.constant 0 : index
    %57 = vector.load %arg9[%c0_56, %c0_57] : memref<16x256xbf16, #tpu.memory_space<vmem>>, vector<16x256xbf16>
    %cst_58 = arith.constant dense<0.000000e+00> : vector<1x256xf32>
    %58 = tpu.matmul %56, %57, %cst_58 {dimension_numbers = #tpu.dot_dimension_numbers<[1], [0], [0], [1], [0, 0, 1, 1], [], []>} : vector<1x16xbf16>, vector<16x256xbf16>, vector<1x256xf32> -> vector<1x256xf32>
    %59 = arith.negf %58 : vector<1x256xf32>
    %60 = math.exp %59 : vector<1x256xf32>
    %cst_59 = arith.constant 1.000000e+00 : f32
    %61 = vector.broadcast %cst_59 : f32 to vector<1x256xf32>
    %62 = arith.addf %61, %60 : vector<1x256xf32>
    %63 = arith.divf %61, %62 : vector<1x256xf32>
    %64 = vector.broadcast %63 : vector<1x256xf32> to vector<256x256xf32>
    %65 = arith.mulf %46, %64 : vector<256x256xf32>
    %66 = tpu.transpose %65, [1, 0] : vector<256x256xf32> -> vector<256x256xf32>
    %67 = arith.addf %66, %1 : vector<256x256xf32>
    %cst_60 = arith.constant 0.000000e+00 : f32
    %68 = vector.broadcast %cst_60 : f32 to vector<256x256xf32>
    %69 = arith.maximumf %67, %68 : vector<256x256xf32>
    %c0_61 = arith.constant 0 : index
    %c0_62 = arith.constant 0 : index
    %c0_63 = arith.constant 0 : index
    %70 = vector.load %arg10[%c0_61, %c0_62, %c0_63] : memref<1x256x256xf32, #tpu.memory_space<vmem>>, vector<1x256x256xf32>
    %71 = vector.shape_cast %70 : vector<1x256x256xf32> to vector<256x256xf32>
    %72 = vector.shape_cast %69 : vector<256x256xf32> to vector<1x256x256xf32>
    tpu.vector_store %arg10[%c0_61, %c0_62, %c0_63], %72 {strides = array<i32>} : memref<1x256x256xf32, #tpu.memory_space<vmem>>, vector<1x256x256xf32>,
    return
  }
  func.func @transform_0(%arg0: i32) -> (i32, i32, i32) {
    %c0_i32 = arith.constant 0 : i32
    %c0_i32_0 = arith.constant 0 : i32
    %c0_i32_1 = arith.constant 0 : i32
    return %arg0, %c0_i32, %c0_i32_0 : i32, i32, i32
  }
  func.func @transform_1(%arg0: i32) -> (i32, i32) {
    %c0_i32 = arith.constant 0 : i32
    %c0_i32_0 = arith.constant 0 : i32
    %c0_i32_1 = arith.constant 0 : i32
    return %c0_i32, %c0_i32_0 : i32, i32
  }
  func.func @transform_2(%arg0: i32) -> (i32, i32) {
    %c0_i32 = arith.constant 0 : i32
    %c0_i32_0 = arith.constant 0 : i32
    %c0_i32_1 = arith.constant 0 : i32
    return %c0_i32, %c0_i32_0 : i32, i32
  }
  func.func @transform_3(%arg0: i32) -> (i32, i32) {
    %c0_i32 = arith.constant 0 : i32
    %c0_i32_0 = arith.constant 0 : i32
    %c0_i32_1 = arith.constant 0 : i32
    return %c0_i32, %c0_i32_0 : i32, i32
  }
  func.func @transform_4(%arg0: i32) -> (i32, i32) {
    %c0_i32 = arith.constant 0 : i32
    %c0_i32_0 = arith.constant 0 : i32
    %c0_i32_1 = arith.constant 0 : i32
    return %c0_i32, %c0_i32_0 : i32, i32
  }
  func.func @transform_5(%arg0: i32) -> (i32, i32) {
    %c0_i32 = arith.constant 0 : i32
    %c0_i32_0 = arith.constant 0 : i32
    %c0_i32_1 = arith.constant 0 : i32
    return %c0_i32, %c0_i32_0 : i32, i32
  }
  func.func @transform_6(%arg0: i32) -> (i32, i32) {
    %c0_i32 = arith.constant 0 : i32
    %c0_i32_0 = arith.constant 0 : i32
    %c0_i32_1 = arith.constant 0 : i32
    return %c0_i32, %c0_i32_0 : i32, i32
  }
  func.func @transform_7(%arg0: i32) -> (i32, i32) {
    %c0_i32 = arith.constant 0 : i32
    %c0_i32_0 = arith.constant 0 : i32
    %c0_i32_1 = arith.constant 0 : i32
    return %c0_i32, %c0_i32_0 : i32, i32
  }
  func.func @transform_8(%arg0: i32) -> (i32, i32) {
    %c0_i32 = arith.constant 0 : i32
    %c0_i32_0 = arith.constant 0 : i32
    %c0_i32_1 = arith.constant 0 : i32
    return %c0_i32, %c0_i32_0 : i32, i32
  }
  func.func @transform_9(%arg0: i32) -> (i32, i32, i32) {
    %c0_i32 = arith.constant 0 : i32
    %c0_i32_0 = arith.constant 0 : i32
    %c0_i32_1 = arith.constant 0 : i32
    return %arg0, %c0_i32, %c0_i32_0 : i32, i32, i32
  }
}

</mosaic_0001>

<llo_original>
// kernel: se_bottleneck_forward.1
$region0: #{se_bottleneck_forward.1}
  #allocation0 [shape = 'u32[]', space=smem, size = 0x4, offset = 0x4, fixed_abs, tag = 'smem constant byte address 0x4 - core index']
  #allocation1 [shape = 'u32[144,128]{1,0:T(1,128)}', space=vmem, size = 0x12000, scoped, tag = 'internal scratch']
  #allocation2 [shape = 'f32[18,18,64]{2,1,0:T(8,128)}', space=vmem, size = 0x36000, scoped, tag = 'scratch operand']
  %s0 = inlined_call_operand.vmem [shape: f32[2,256,256], index: 0, kind: input, shape index: {}]
  %s1 = inlined_call_operand.vmem [shape: bf16[256,64], index: 1, kind: input, shape index: {}]
  %s2 = inlined_call_operand.vmem [shape: f32[1,64], index: 2, kind: input, shape index: {}]
  %s3 = inlined_call_operand.vmem [shape: bf16[576,64], index: 3, kind: input, shape index: {}]
  %s4 = inlined_call_operand.vmem [shape: f32[1,64], index: 4, kind: input, shape index: {}]
  %s5 = inlined_call_operand.vmem [shape: bf16[64,256], index: 5, kind: input, shape index: {}]
  %s6 = inlined_call_operand.vmem [shape: f32[1,256], index: 6, kind: input, shape index: {}]
  %s7 = inlined_call_operand.vmem [shape: bf16[256,16], index: 7, kind: input, shape index: {}]
  %s8 = inlined_call_operand.vmem [shape: bf16[16,256], index: 8, kind: input, shape index: {}]
  %s9 = inlined_call_operand.vmem [shape: f32[2,256,256], index: 9, kind: output, shape index: {}]
  %s10 = sld [smem:[#allocation0]]
  $region69: #{se_bottleneck_forward.1} parent=0
    _
  %s12 = ssub.s32 1, %s10
  %s13 = scalar_select 0, %s12, %s10
  loop: start=0, step=1, limit=4
  $region2: #{se_bottleneck_forward.1} parent=0 // loop_pre_header
    _
  $region3: #{se_bottleneck_forward.1} parent=0 // loop_header
    %s15 = sphi 0, %s19
    %p16 = scmp.ge.s32.totalorder %s15, 4
    %s25 = sphi 0, %s27
    %s28 = sphi 0, %s25
    %s29 = sphi 0, %s28
    %s45 = sphi 0, %s29
    %s49 = sphi 0, %s49
    %s51 = sphi 0, %s49
    %s52 = sphi 0, %s51
    %s66 = sphi 0, %s52
    %s70 = sphi 0, %s70
    %s72 = sphi 0, %s70
    %s73 = sphi 0, %s72
    %s87 = sphi 0, %s73
    %s91 = sphi 0, %s91
    %s93 = sphi 0, %s91
    %s94 = sphi 0, %s93
    %s108 = sphi 0, %s94
    %s112 = sphi 0, %s112
    %s114 = sphi 0, %s112
    %s115 = sphi 0, %s114
    %s129 = sphi 0, %s115
    %s133 = sphi 0, %s133
    %s135 = sphi 0, %s133
    %s136 = sphi 0, %s135
    %s150 = sphi 0, %s136
    %s154 = sphi 0, %s154
    %s156 = sphi 0, %s154
    %s157 = sphi 0, %s156
    %s171 = sphi 0, %s157
    %s175 = sphi 0, %s175
    %s177 = sphi 0, %s175
    %s178 = sphi 0, %s177
    %s192 = sphi 0, %s178
    %s196 = sphi 0, %s196
    %s198 = sphi 0, %s196
    %s199 = sphi 0, %s198
    %s213 = sphi 0, %s199
    %s219 = sphi 0, %s221
    %s222 = sphi 0, %s219
    %s223 = sphi 0, %s222
    %s239 = sphi 0, %s223
  $region4: #{se_bottleneck_forward.1} parent=0 // loop_header_branch
    %18 = sbr.rel (%p16) target = $region8
  $region5: #{se_bottleneck_forward.1} parent=0 // loop_body
    %s20 = ssub.s32 %s15, 1
    %s21 = ssub.s32 %s15, 2
    %s22 = sadd.s32 %s15, 1
    %s23 = ssub.s32 %s15, %s22
    %p24 = scmp.eq.s32.totalorder %s23, 0
    %s26 = sadd.s32 %s25, 1
    %s27 = scalar_select %p24, %s25, %s26
    %p30 = pneg %p24
    %p31 = scmp.eq.s32.totalorder %s15, 1
    %p32 = por %p30, %p31
    %p33 = scmp.ne.s32.totalorder %s25, %s28
    %p34 = scmp.eq.s32.totalorder %s15, 0
    %p35 = por %p33, %p34
    %p36 = scmp.ne.s32.totalorder %s25, %s28
    %p37 = scmp.eq.s32.totalorder %s20, 1
    %p38 = por %p36, %p37
    %p39 = scmp.ne.s32.totalorder %s28, %s29
    %p40 = scmp.eq.s32.totalorder %s20, 0
    %p41 = por %p39, %p40
    %p42 = scmp.ne.s32.totalorder %s28, %s29
    %p43 = scmp.eq.s32.totalorder %s21, 1
    %p44 = por %p42, %p43
    %p46 = scmp.ne.s32.totalorder %s29, %s45
    %p47 = scmp.eq.s32.totalorder %s21, 0
    %p48 = por %p46, %p47
    %s50 = sadd.s32 %s49, 1
    %p53 = scmp.eq.s32.totalorder %s15, 1
    %p54 = scmp.ne.s32.totalorder %s49, %s51
    %p55 = scmp.eq.s32.totalorder %s15, 0
    %p56 = por %p54, %p55
    %p57 = scmp.ne.s32.totalorder %s49, %s51
    %p58 = scmp.eq.s32.totalorder %s20, 1
    %p59 = por %p57, %p58
    %p60 = scmp.ne.s32.totalorder %s51, %s52
    %p61 = scmp.eq.s32.totalorder %s20, 0
    %p62 = por %p60, %p61
    %p63 = scmp.ne.s32.totalorder %s51, %s52
    %p64 = scmp.eq.s32.totalorder %s21, 1
    %p65 = por %p63, %p64
    %p67 = scmp.ne.s32.totalorder %s52, %s66
    %p68 = scmp.eq.s32.totalorder %s21, 0
    %p69 = por %p67, %p68
    %s71 = sadd.s32 %s70, 1
    %p74 = scmp.eq.s32.totalorder %s15, 1
    %p75 = scmp.ne.s32.totalorder %s70, %s72
    %p76 = scmp.eq.s32.totalorder %s15, 0
    %p77 = por %p75, %p76
    %p78 = scmp.ne.s32.totalorder %s70, %s72
    %p79 = scmp.eq.s32.totalorder %s20, 1
    %p80 = por %p78, %p79
    %p81 = scmp.ne.s32.totalorder %s72, %s73
    %p82 = scmp.eq.s32.totalorder %s20, 0
    %p83 = por %p81, %p82
    %p84 = scmp.ne.s32.totalorder %s72, %s73
    %p85 = scmp.eq.s32.totalorder %s21, 1
    %p86 = por %p84, %p85
    %p88 = scmp.ne.s32.totalorder %s73, %s87
    %p89 = scmp.eq.s32.totalorder %s21, 0
    %p90 = por %p88, %p89
    %s92 = sadd.s32 %s91, 1
    %p95 = scmp.eq.s32.totalorder %s15, 1
    %p96 = scmp.ne.s32.totalorder %s91, %s93
    %p97 = scmp.eq.s32.totalorder %s15, 0
    %p98 = por %p96, %p97
    %p99 = scmp.ne.s32.totalorder %s91, %s93
    %p100 = scmp.eq.s32.totalorder %s20, 1
    %p101 = por %p99, %p100
    %p102 = scmp.ne.s32.totalorder %s93, %s94
    %p103 = scmp.eq.s32.totalorder %s20, 0
    %p104 = por %p102, %p103
    %p105 = scmp.ne.s32.totalorder %s93, %s94
    %p106 = scmp.eq.s32.totalorder %s21, 1
    %p107 = por %p105, %p106
    %p109 = scmp.ne.s32.totalorder %s94, %s108
    %p110 = scmp.eq.s32.totalorder %s21, 0
    %p111 = por %p109, %p110
    %s113 = sadd.s32 %s112, 1
    %p116 = scmp.eq.s32.totalorder %s15, 1
    %p117 = scmp.ne.s32.totalorder %s112, %s114
    %p118 = scmp.eq.s32.totalorder %s15, 0
    %p119 = por %p117, %p118
    %p120 = scmp.ne.s32.totalorder %s112, %s114
    %p121 = scmp.eq.s32.totalorder %s20, 1
    %p122 = por %p120, %p121
    %p123 = scmp.ne.s32.totalorder %s114, %s115
    %p124 = scmp.eq.s32.totalorder %s20, 0
    %p125 = por %p123, %p124
    %p126 = scmp.ne.s32.totalorder %s114, %s115
    %p127 = scmp.eq.s32.totalorder %s21, 1
    %p128 = por %p126, %p127
    %p130 = scmp.ne.s32.totalorder %s115, %s129
    %p131 = scmp.eq.s32.totalorder %s21, 0
    %p132 = por %p130, %p131
    %s134 = sadd.s32 %s133, 1
    %p137 = scmp.eq.s32.totalorder %s15, 1
    %p138 = scmp.ne.s32.totalorder %s133, %s135
    %p139 = scmp.eq.s32.totalorder %s15, 0
    %p140 = por %p138, %p139
    %p141 = scmp.ne.s32.totalorder %s133, %s135
    %p142 = scmp.eq.s32.totalorder %s20, 1
    %p143 = por %p141, %p142
    %p144 = scmp.ne.s32.totalorder %s135, %s136
    %p145 = scmp.eq.s32.totalorder %s20, 0
    %p146 = por %p144, %p145
    %p147 = scmp.ne.s32.totalorder %s135, %s136
    %p148 = scmp.eq.s32.totalorder %s21, 1
    %p149 = por %p147, %p148
    %p151 = scmp.ne.s32.totalorder %s136, %s150
    %p152 = scmp.eq.s32.totalorder %s21, 0
    %p153 = por %p151, %p152
    %s155 = sadd.s32 %s154, 1
    %p158 = scmp.eq.s32.totalorder %s15, 1
    %p159 = scmp.ne.s32.totalorder %s154, %s156
    %p160 = scmp.eq.s32.totalorder %s15, 0
    %p161 = por %p159, %p160
    %p162 = scmp.ne.s32.totalorder %s154, %s156
    %p163 = scmp.eq.s32.totalorder %s20, 1
    %p164 = por %p162, %p163
    %p165 = scmp.ne.s32.totalorder %s156, %s157
    %p166 = scmp.eq.s32.totalorder %s20, 0
    %p167 = por %p165, %p166
    %p168 = scmp.ne.s32.totalorder %s156, %s157
    %p169 = scmp.eq.s32.totalorder %s21, 1
    %p170 = por %p168, %p169
    %p172 = scmp.ne.s32.totalorder %s157, %s171
    %p173 = scmp.eq.s32.totalorder %s21, 0
    %p174 = por %p172, %p173
    %s176 = sadd.s32 %s175, 1
    %p179 = scmp.eq.s32.totalorder %s15, 1
    %p180 = scmp.ne.s32.totalorder %s175, %s177
    %p181 = scmp.eq.s32.totalorder %s15, 0
    %p182 = por %p180, %p181
    %p183 = scmp.ne.s32.totalorder %s175, %s177
    %p184 = scmp.eq.s32.totalorder %s20, 1
    %p185 = por %p183, %p184
    %p186 = scmp.ne.s32.totalorder %s177, %s178
    %p187 = scmp.eq.s32.totalorder %s20, 0
    %p188 = por %p186, %p187
    %p189 = scmp.ne.s32.totalorder %s177, %s178
    %p190 = scmp.eq.s32.totalorder %s21, 1
    %p191 = por %p189, %p190
    %p193 = scmp.ne.s32.totalorder %s178, %s192
    %p194 = scmp.eq.s32.totalorder %s21, 0
    %p195 = por %p193, %p194
    %s197 = sadd.s32 %s196, 1
    %p200 = scmp.eq.s32.totalorder %s15, 1
    %p201 = scmp.ne.s32.totalorder %s196, %s198
    %p202 = scmp.eq.s32.totalorder %s15, 0
    %p203 = por %p201, %p202
    %p204 = scmp.ne.s32.totalorder %s196, %s198
    %p205 = scmp.eq.s32.totalorder %s20, 1
    %p206 = por %p204, %p205
    %p207 = scmp.ne.s32.totalorder %s198, %s199
    %p208 = scmp.eq.s32.totalorder %s20, 0
    %p209 = por %p207, %p208
    %p210 = scmp.ne.s32.totalorder %s198, %s199
    %p211 = scmp.eq.s32.totalorder %s21, 1
    %p212 = por %p210, %p211
    %p214 = scmp.ne.s32.totalorder %s199, %s213
    %p215 = scmp.eq.s32.totalorder %s21, 0
    %p216 = por %p214, %p215
    %s217 = ssub.s32 %s15, %s22
    %p218 = scmp.eq.s32.totalorder %s217, 0
    %s220 = sadd.s32 %s219, 1
    %s221 = scalar_select %p218, %s219, %s220
    %p224 = pneg %p218
    %p225 = scmp.eq.s32.totalorder %s15, 1
    %p226 = por %p224, %p225
    %p227 = scmp.ne.s32.totalorder %s219, %s222
    %p228 = scmp.eq.s32.totalorder %s15, 0
    %p229 = por %p227, %p228
    %p230 = scmp.ne.s32.totalorder %s219, %s222
    %p231 = scmp.eq.s32.totalorder %s20, 1
    %p232 = por %p230, %p231
    %p233 = scmp.ne.s32.totalorder %s222, %s223
    %p234 = scmp.eq.s32.totalorder %s20, 0
    %p235 = por %p233, %p234
    %p236 = scmp.ne.s32.totalorder %s222, %s223
    %p237 = scmp.eq.s32.totalorder %s21, 1
    %p238 = por %p236, %p237
    %p240 = scmp.ne.s32.totalorder %s223, %s239
    %p241 = scmp.eq.s32.totalorder %s21, 0
    %p242 = por %p240, %p241
    %p243 = scmp.le.s32.totalorder 1, %s15
    %p244 = scmp.lt.s32.totalorder %s15, 3
    %p245 = pnand %p243, %p244
    %p246 = pneg %p245
    // Predicated region
    $region9: #{se_bottleneck_forward.1} parent=5 // pred_check
      _
    $region10: #{se_bottleneck_forward.1} parent=5 // pred_check_branch
      %248 = sbr.rel (%p245) target = $region12
    $region11: #{se_bottleneck_forward.1} parent=5 // pred_region
      %s249 = ssub.s32 %s15, 1
      // Predicated region
      $region13: #{se_bottleneck_forward.1} parent=11 // pred_check
        %p250 = pneg %p62
      $region14: #{se_bottleneck_forward.1} parent=11 // pred_check_branch
        %252 = sbr.rel (%p250) target = $region16
      $region15: #{se_bottleneck_forward.1} parent=11 // pred_region
        _
      $region16: #{se_bottleneck_forward.1} parent=11 // pred_fallthru
        _
      // Predicated region
      $region17: #{se_bottleneck_forward.1} parent=11 // pred_check
        %p253 = pneg %p83
      $region18: #{se_bottleneck_forward.1} parent=11 // pred_check_branch
        %255 = sbr.rel (%p253) target = $region20
      $region19: #{se_bottleneck_forward.1} parent=11 // pred_region
        _
      $region20: #{se_bottleneck_forward.1} parent=11 // pred_fallthru
        _
      // Predicated region
      $region21: #{se_bottleneck_forward.1} parent=11 // pred_check
        %p256 = pneg %p104
      $region22: #{se_bottleneck_forward.1} parent=11 // pred_check_branch
        %258 = sbr.rel (%p256) target = $region24
      $region23: #{se_bottleneck_forward.1} parent=11 // pred_region
        _
      $region24: #{se_bottleneck_forward.1} parent=11 // pred_fallthru
        _
      // Predicated region
      $region25: #{se_bottleneck_forward.1} parent=11 // pred_check
        %p259 = pneg %p125
      $region26: #{se_bottleneck_forward.1} parent=11 // pred_check_branch
        %261 = sbr.rel (%p259) target = $region28
      $region27: #{se_bottleneck_forward.1} parent=11 // pred_region
        _
      $region28: #{se_bottleneck_forward.1} parent=11 // pred_fallthru
        _
      // Predicated region
      $region29: #{se_bottleneck_forward.1} parent=11 // pred_check
        %p262 = pneg %p146
      $region30: #{se_bottleneck_forward.1} parent=11 // pred_check_branch
        %264 = sbr.rel (%p262) target = $region32
      $region31: #{se_bottleneck_forward.1} parent=11 // pred_region
        _
      $region32: #{se_bottleneck_forward.1} parent=11 // pred_fallthru
        _
      // Predicated region
      $region33: #{se_bottleneck_forward.1} parent=11 // pred_check
        %p265 = pneg %p167
      $region34: #{se_bottleneck_forward.1} parent=11 // pred_check_branch
        %267 = sbr.rel (%p265) target = $region36
      $region35: #{se_bottleneck_forward.1} parent=11 // pred_region
        _
      $region36: #{se_bottleneck_forward.1} parent=11 // pred_fallthru
        _
      // Predicated region
      $region37: #{se_bottleneck_forward.1} parent=11 // pred_check
        %p268 = pneg %p188
      $region38: #{se_bottleneck_forward.1} parent=11 // pred_check_branch
        %270 = sbr.rel (%p268) target = $region40
      $region39: #{se_bottleneck_forward.1} parent=11 // pred_region
        _
      $region40: #{se_bottleneck_forward.1} parent=11 // pred_fallthru
        _
      // Predicated region
      $region41: #{se_bottleneck_forward.1} parent=11 // pred_check
        %p271 = pneg %p209
      $region42: #{se_bottleneck_forward.1} parent=11 // pred_check_branch
        %273 = sbr.rel (%p271) target = $region44
      $region43: #{se_bottleneck_forward.1} parent=11 // pred_region
        _
      $region44: #{se_bottleneck_forward.1} parent=11 // pred_fallthru
        _
    $region12: #{se_bottleneck_forward.1} parent=5 // pred_fallthru
      _
    %p274 = scmp.lt.s32.totalorder %s15, 2
    // Predicated region
    $region45: #{se_bottleneck_forward.1} parent=5 // pred_check
      %p275 = pneg %p274
    $region46: #{se_bottleneck_forward.1} parent=5 // pred_check_branch
      %277 = sbr.rel (%p275) target = $region48
    $region47: #{se_bottleneck_forward.1} parent=5 // pred_region
      // Predicated region
      $region49: #{se_bottleneck_forward.1} parent=47 // pred_check
        %p278 = pneg %p35
      $region50: #{se_bottleneck_forward.1} parent=47 // pred_check_branch
        %280 = sbr.rel (%p278) target = $region52
      $region51: #{se_bottleneck_forward.1} parent=47 // pred_region
        %p281 = scmp.lt.s32.totalorder %s15, 1
        %s282 = scalar_select %p281, %s15, 1
        %s283 = smul.addr %s282, 64
        %s284 = smul.addr %s283, 8
        %s285 = scalar_lea.vmem %s0, %s284
      $region52: #{se_bottleneck_forward.1} parent=47 // pred_fallthru
        _
    $region48: #{se_bottleneck_forward.1} parent=5 // pred_fallthru
      _
    %p286 = scmp.le.s32.totalorder 1, %s15
    %p287 = scmp.lt.s32.totalorder %s15, 3
    %p288 = pnand %p286, %p287
    %p289 = pneg %p288
    // Predicated region
    $region53: #{se_bottleneck_forward.1} parent=5 // pred_check
      _
    $region54: #{se_bottleneck_forward.1} parent=5 // pred_check_branch
      %291 = sbr.rel (%p288) target = $region56
    $region55: #{se_bottleneck_forward.1} parent=5 // pred_region
      %s292 = ssub.s32 %s15, 1
      %p293 = scmp.lt.s32.totalorder %s20, 1
      %s294 = scalar_select %p293, %s20, 1
      %s295 = smul.addr %s294, 64
      %s296 = smul.addr %s295, 8
      %s297 = scalar_lea.vmem %s0, %s296
      %p298 = pneg %p41
      %p299 = pneg %p38
      %p300 = pneg %p62
      %p301 = pneg %p59
      %p302 = pneg %p83
      %p303 = pneg %p80
      %p304 = pneg %p104
      %p305 = pneg %p101
      %p306 = pneg %p125
      %p307 = pneg %p122
      %p308 = pneg %p146
      %p309 = pneg %p143
      %p310 = pneg %p167
      %p311 = pneg %p164
      %p312 = pneg %p188
      %p313 = pneg %p185
      %p314 = pneg %p209
      %p315 = pneg %p206
      %p316 = pneg %p235
      %p317 = pneg %p232
      %p318 = scmp.lt.s32.totalorder %s20, 1
      %s319 = scalar_select %p318, %s20, 1
      %s320 = smul.addr %s319, 64
      %s321 = smul.addr %s320, 8
      %s322 = scalar_lea.vmem %s9, %s321
      %p323 = scmp.lt.s32.totalorder %s20, 1
      %s324 = scalar_select %p323, %s20, 1
      %s325 = smul.addr %s324, 64
      %s326 = smul.addr %s325, 8
      %s327 = scalar_lea.vmem %s0, %s326
      %p328 = scmp.lt.s32.totalorder %s20, 1
      %s329 = scalar_select %p328, %s20, 1
      %s330 = smul.addr %s329, 64
      %s331 = smul.addr %s330, 8
      %s332 = scalar_lea.vmem %s9, %s331
      %v334 = vld [vmem:[%s327] sm:$0xff]
      %v335 = vld [vmem:[%s327 + $0x8] sm:$0xff]
      %v336 = vld [vmem:[%s327 + $0x10] sm:$0xff]
      %v337 = vld [vmem:[%s327 + $0x18] sm:$0xff]
      %v338 = vld [vmem:[%s327 + $0x20] sm:$0xff]
      %v339 = vld [vmem:[%s327 + $0x28] sm:$0xff]
      %v340 = vld [vmem:[%s327 + $0x30] sm:$0xff]
      %v341 = vld [vmem:[%s327 + $0x38] sm:$0xff]
      %v342 = vld [vmem:[%s327 + $0x40] sm:$0xff]
      %v343 = vld [vmem:[%s327 + $0x48] sm:$0xff]
      %v344 = vld [vmem:[%s327 + $0x50] sm:$0xff]
      %v345 = vld [vmem:[%s327 + $0x58] sm:$0xff]
      %v346 = vld [vmem:[%s327 + $0x60] sm:$0xff]
      %v347 = vld [vmem:[%s327 + $0x68] sm:$0xff]
      %v348 = vld [vmem:[%s327 + $0x70] sm:$0xff]
      %v349 = vld [vmem:[%s327 + $0x78] sm:$0xff]
      %v350 = vld [vmem:[%s327 + $0x80] sm:$0xff]
      %v351 = vld [vmem:[%s327 + $0x88] sm:$0xff]
      %v352 = vld [vmem:[%s327 + $0x90] sm:$0xff]
      %v353 = vld [vmem:[%s327 + $0x98] sm:$0xff]
      %v354 = vld [vmem:[%s327 + $0xa0] sm:$0xff]
      %v355 = vld [vmem:[%s327 + $0xa8] sm:$0xff]
      %v356 = vld [vmem:[%s327 + $0xb0] sm:$0xff]
      %v357 = vld [vmem:[%s327 + $0xb8] sm:$0xff]
      %v358 = vld [vmem:[%s327 + $0xc0] sm:$0xff]
      %v359 = vld [vmem:[%s327 + $0xc8] sm:$0xff]
      %v360 = vld [vmem:[%s327 + $0xd0] sm:$0xff]
      %v361 = vld [vmem:[%s327 + $0xd8] sm:$0xff]
      %v362 = vld [vmem:[%s327 + $0xe0] sm:$0xff]
      %v363 = vld [vmem:[%s327 + $0xe8] sm:$0xff]
      %v364 = vld [vmem:[%s327 + $0xf0] sm:$0xff]
      %v365 = vld [vmem:[%s327 + $0xf8] sm:$0xff]
      %v366 = vld [vmem:[%s327 + $0x100] sm:$0xff]
      %v367 = vld [vmem:[%s327 + $0x108] sm:$0xff]
      %v368 = vld [vmem:[%s327 + $0x110] sm:$0xff]
      %v369 = vld [vmem:[%s327 + $0x118] sm:$0xff]
      %v370 = vld [vmem:[%s327 + $0x120] sm:$0xff]
      %v371 = vld [vmem:[%s327 + $0x128] sm:$0xff]
      %v372 = vld [vmem:[%s327 + $0x130] sm:$0xff]
      %v373 = vld [vmem:[%s327 + $0x138] sm:$0xff]
      %v374 = vld [vmem:[%s327 + $0x140] sm:$0xff]
      %v375 = vld [vmem:[%s327 + $0x148] sm:$0xff]
      %v376 = vld [vmem:[%s327 + $0x150] sm:$0xff]
      %v377 = vld [vmem:[%s327 + $0x158] sm:$0xff]
      %v378 = vld [vmem:[%s327 + $0x160] sm:$0xff]
      %v379 = vld [vmem:[%s327 + $0x168] sm:$0xff]
      %v380 = vld [vmem:[%s327 + $0x170] sm:$0xff]
      %v381 = vld [vmem:[%s327 + $0x178] sm:$0xff]
      %v382 = vld [vmem:[%s327 + $0x180] sm:$0xff]
      %v383 = vld [vmem:[%s327 + $0x188] sm:$0xff]
      %v384 = vld [vmem:[%s327 + $0x190] sm:$0xff]
      %v385 = vld [vmem:[%s327 + $0x198] sm:$0xff]
      %v386 = vld [vmem:[%s327 + $0x1a0] sm:$0xff]
      %v387 = vld [vmem:[%s327 + $0x1a8] sm:$0xff]
      %v388 = vld [vmem:[%s327 + $0x1b0] sm:$0xff]
      %v389 = vld [vmem:[%s327 + $0x1b8] sm:$0xff]
      %v390 = vld [vmem:[%s327 + $0x1c0] sm:$0xff]
      %v391 = vld [vmem:[%s327 + $0x1c8] sm:$0xff]
      %v392 = vld [vmem:[%s327 + $0x1d0] sm:$0xff]
      %v393 = vld [vmem:[%s327 + $0x1d8] sm:$0xff]
      %v394 = vld [vmem:[%s327 + $0x1e0] sm:$0xff]
      %v395 = vld [vmem:[%s327 + $0x1e8] sm:$0xff]
      %v396 = vld [vmem:[%s327 + $0x1f0] sm:$0xff]
      %v397 = vld [vmem:[%s327 + $0x1f8] sm:$0xff]
      %v398 = vpack.c.bf16 %v336, %v334
      %v399 = vpack.c.bf16 %v337, %v335
      %v400 = vpack.c.bf16 %v340, %v338
      %v401 = vpack.c.bf16 %v341, %v339
      %v402 = vpack.c.bf16 %v344, %v342
      %v403 = vpack.c.bf16 %v345, %v343
      %v404 = vpack.c.bf16 %v348, %v346
      %v405 = vpack.c.bf16 %v349, %v347
      %v406 = vpack.c.bf16 %v352, %v350
      %v407 = vpack.c.bf16 %v353, %v351
      %v408 = vpack.c.bf16 %v356, %v354
      %v409 = vpack.c.bf16 %v357, %v355
      %v410 = vpack.c.bf16 %v360, %v358
      %v411 = vpack.c.bf16 %v361, %v359
      %v412 = vpack.c.bf16 %v364, %v362
      %v413 = vpack.c.bf16 %v365, %v363
      %v414 = vpack.c.bf16 %v368, %v366
      %v415 = vpack.c.bf16 %v369, %v367
      %v416 = vpack.c.bf16 %v372, %v370
      %v417 = vpack.c.bf16 %v373, %v371
      %v418 = vpack.c.bf16 %v376, %v374
      %v419 = vpack.c.bf16 %v377, %v375
      %v420 = vpack.c.bf16 %v380, %v378
      %v421 = vpack.c.bf16 %v381, %v379
      %v422 = vpack.c.bf16 %v384, %v382
      %v423 = vpack.c.bf16 %v385, %v383
      %v424 = vpack.c.bf16 %v388, %v386
      %v425 = vpack.c.bf16 %v389, %v387
      %v426 = vpack.c.bf16 %v392, %v390
      %v427 = vpack.c.bf16 %v393, %v391
      %v428 = vpack.c.bf16 %v396, %v394
      %v429 = vpack.c.bf16 %v397, %v395
      %v430 = vld [vmem:[%s1] sm:$0xf]
      %v431 = vld [vmem:[%s1 + $0x4] sm:$0xf]
      %v432 = vld [vmem:[%s1 + $0x8] sm:$0xf]
      %v433 = vld [vmem:[%s1 + $0xc] sm:$0xf]
      %v434 = vld [vmem:[%s1 + $0x10] sm:$0xf]
      %v435 = vld [vmem:[%s1 + $0x14] sm:$0xf]
      %v436 = vld [vmem:[%s1 + $0x18] sm:$0xf]
      %v437 = vld [vmem:[%s1 + $0x1c] sm:$0xf]
      %v438 = vld [vmem:[%s1 + $0x20] sm:$0xf]
      %v439 = vld [vmem:[%s1 + $0x24] sm:$0xf]
      %v440 = vld [vmem:[%s1 + $0x28] sm:$0xf]
      %v441 = vld [vmem:[%s1 + $0x2c] sm:$0xf]
      %v442 = vld [vmem:[%s1 + $0x30] sm:$0xf]
      %v443 = vld [vmem:[%s1 + $0x34] sm:$0xf]
      %v444 = vld [vmem:[%s1 + $0x38] sm:$0xf]
      %v445 = vld [vmem:[%s1 + $0x3c] sm:$0xf]
      %v446 = vld [vmem:[%s1 + $0x40] sm:$0xf]
      %v447 = vld [vmem:[%s1 + $0x44] sm:$0xf]
      %v448 = vld [vmem:[%s1 + $0x48] sm:$0xf]
      %v449 = vld [vmem:[%s1 + $0x4c] sm:$0xf]
      %v450 = vld [vmem:[%s1 + $0x50] sm:$0xf]
      %v451 = vld [vmem:[%s1 + $0x54] sm:$0xf]
      %v452 = vld [vmem:[%s1 + $0x58] sm:$0xf]
      %v453 = vld [vmem:[%s1 + $0x5c] sm:$0xf]
      %v454 = vld [vmem:[%s1 + $0x60] sm:$0xf]
      %v455 = vld [vmem:[%s1 + $0x64] sm:$0xf]
      %v456 = vld [vmem:[%s1 + $0x68] sm:$0xf]
      %v457 = vld [vmem:[%s1 + $0x6c] sm:$0xf]
      %v458 = vld [vmem:[%s1 + $0x70] sm:$0xf]
      %v459 = vld [vmem:[%s1 + $0x74] sm:$0xf]
      %v460 = vld [vmem:[%s1 + $0x78] sm:$0xf]
      %v461 = vld [vmem:[%s1 + $0x7c] sm:$0xf]
      %v462 = vld [vmem:[%s2] sm:$0x1]
      %v464 = vlaneseq
      %v465 = vshrl.u32 %v464, 7
      %v466 = vsub.s32 0, %v465
      %v467 = vrot.slane %v462, %v466
      %469 = vxpose.xlu0.c.b16.start [1/8] %v398, 128
      %470 = vxpose.xlu0.c.b16.cont [2/8] %v400, 128
      %471 = vxpose.xlu0.c.b16.cont [3/8] %v402, 128
      %472 = vxpose.xlu0.c.b16.cont [4/8] %v404, 128
      %473 = vxpose.xlu0.c.b16.cont [5/8] %v406, 128
      %474 = vxpose.xlu0.c.b16.cont [6/8] %v408, 128
      %475 = vxpose.xlu0.c.b16.cont [7/8] %v410, 128
      %476 = vxpose.xlu0.c.b16.end [8/8] %v412, 128
      %v477 = vpop.trf.xlu0
      %v478 = vpop.trf.xlu0
      %v479 = vpop.trf.xlu0
      %v480 = vpop.trf.xlu0
      %v481 = vpop.trf.xlu0
      %v482 = vpop.trf.xlu0
      %v483 = vpop.trf.xlu0
      %v484 = vpop.trf.xlu0
      %485 = vxpose.xlu0.c.b16.start [1/8] %v399, 128
      %486 = vxpose.xlu0.c.b16.cont [2/8] %v401, 128
      %487 = vxpose.xlu0.c.b16.cont [3/8] %v403, 128
      %488 = vxpose.xlu0.c.b16.cont [4/8] %v405, 128
      %489 = vxpose.xlu0.c.b16.cont [5/8] %v407, 128
      %490 = vxpose.xlu0.c.b16.cont [6/8] %v409, 128
      %491 = vxpose.xlu0.c.b16.cont [7/8] %v411, 128
      %492 = vxpose.xlu0.c.b16.end [8/8] %v413, 128
      %v493 = vpop.trf.xlu0
      %v494 = vpop.trf.xlu0
      %v495 = vpop.trf.xlu0
      %v496 = vpop.trf.xlu0
      %v497 = vpop.trf.xlu0
      %v498 = vpop.trf.xlu0
      %v499 = vpop.trf.xlu0
      %v500 = vpop.trf.xlu0
      %501 = vxpose.xlu0.c.b16.start [1/8] %v414, 128
      %502 = vxpose.xlu0.c.b16.cont [2/8] %v416, 128
      %503 = vxpose.xlu0.c.b16.cont [3/8] %v418, 128
      %504 = vxpose.xlu0.c.b16.cont [4/8] %v420, 128
      %505 = vxpose.xlu0.c.b16.cont [5/8] %v422, 128
      %506 = vxpose.xlu0.c.b16.cont [6/8] %v424, 128
      %507 = vxpose.xlu0.c.b16.cont [7/8] %v426, 128
      %508 = vxpose.xlu0.c.b16.end [8/8] %v428, 128
      %v509 = vpop.trf.xlu0
      %v510 = vpop.trf.xlu0
      %v511 = vpop.trf.xlu0
      %v512 = vpop.trf.xlu0
      %v513 = vpop.trf.xlu0
      %v514 = vpop.trf.xlu0
      %v515 = vpop.trf.xlu0
      %v516 = vpop.trf.xlu0
      %517 = vxpose.xlu0.c.b16.start [1/8] %v415, 128
      %518 = vxpose.xlu0.c.b16.cont [2/8] %v417, 128
      %519 = vxpose.xlu0.c.b16.cont [3/8] %v419, 128
      %520 = vxpose.xlu0.c.b16.cont [4/8] %v421, 128
      %521 = vxpose.xlu0.c.b16.cont [5/8] %v423, 128
      %522 = vxpose.xlu0.c.b16.cont [6/8] %v425, 128
      %523 = vxpose.xlu0.c.b16.cont [7/8] %v427, 128
      %524 = vxpose.xlu0.c.b16.end [8/8] %v429, 128
      %v525 = vpop.trf.xlu0
      %v526 = vpop.trf.xlu0
      %v527 = vpop.trf.xlu0
      %v528 = vpop.trf.xlu0
      %v529 = vpop.trf.xlu0
      %v530 = vpop.trf.xlu0
      %v531 = vpop.trf.xlu0
      %v532 = vpop.trf.xlu0
      %v565 = vunpack.c.l.b16 %v430
      %v566 = vunpack.c.l.b16 %v431
      %v567 = vunpack.c.l.b16 %v432
      %v568 = vunpack.c.l.b16 %v433
      %v569 = vunpack.c.l.b16 %v434
      %v570 = vunpack.c.l.b16 %v435
      %v571 = vunpack.c.l.b16 %v436
      %v572 = vunpack.c.l.b16 %v437
      %v573 = vunpack.c.l.b16 %v438
      %v574 = vunpack.c.l.b16 %v439
      %v575 = vunpack.c.l.b16 %v440
      %v576 = vunpack.c.l.b16 %v441
      %v577 = vunpack.c.l.b16 %v442
      %v578 = vunpack.c.l.b16 %v443
      %v579 = vunpack.c.l.b16 %v444
      %v580 = vunpack.c.l.b16 %v445
      %v581 = vunpack.c.l.b16 %v446
      %v582 = vunpack.c.l.b16 %v447
      %v583 = vunpack.c.l.b16 %v448
      %v584 = vunpack.c.l.b16 %v449
      %v585 = vunpack.c.l.b16 %v450
      %v586 = vunpack.c.l.b16 %v451
      %v587 = vunpack.c.l.b16 %v452
      %v588 = vunpack.c.l.b16 %v453
      %v589 = vunpack.c.l.b16 %v454
      %v590 = vunpack.c.l.b16 %v455
      %v591 = vunpack.c.l.b16 %v456
      %v592 = vunpack.c.l.b16 %v457
      %v593 = vunpack.c.l.b16 %v458
      %v594 = vunpack.c.l.b16 %v459
      %v595 = vunpack.c.l.b16 %v460
      %v596 = vunpack.c.l.b16 %v461
      %v597 = vpack.c.b16 %v566, %v565
      %v598 = vpack.c.b16 %v568, %v567
      %v599 = vpack.c.b16 %v570, %v569
      %v600 = vpack.c.b16 %v572, %v571
      %v601 = vpack.c.b16 %v574, %v573
      %v602 = vpack.c.b16 %v576, %v575
      %v603 = vpack.c.b16 %v578, %v577
      %v604 = vpack.c.b16 %v580, %v579
      %v605 = vpack.c.b16 %v582, %v581
      %v606 = vpack.c.b16 %v584, %v583
      %v607 = vpack.c.b16 %v586, %v585
      %v608 = vpack.c.b16 %v588, %v587
      %v609 = vpack.c.b16 %v590, %v589
      %v610 = vpack.c.b16 %v592, %v591
      %v611 = vpack.c.b16 %v594, %v593
      %v612 = vpack.c.b16 %v596, %v595
      %629 = vmatprep.subr.bf16.mxu0 0
      %630 = vmatpush1.bf16.msra.mxu0 %v604
      %631 = vmatprep.subr.bf16.mxu0 0
      %632 = vmatpush1.bf16.msra.mxu0 %v603
      %633 = vmatprep.subr.bf16.mxu0 0
      %634 = vmatpush1.bf16.msra.mxu0 %v602
      %635 = vmatprep.subr.bf16.mxu0 0
      %636 = vmatpush1.bf16.msra.mxu0 %v601
      %637 = vmatprep.subr.bf16.mxu0 0
      %638 = vmatpush1.bf16.msra.mxu0 %v600
      %639 = vmatprep.subr.bf16.mxu0 0
      %640 = vmatpush1.bf16.msra.mxu0 %v599
      %641 = vmatprep.subr.bf16.mxu0 0
      %642 = vmatpush1.bf16.msra.mxu0 %v598
      %643 = vmatprep.subr.bf16.mxu0 0
      %644 = vmatpush1.bf16.msra.mxu0 %v597
      %645 = vmatprep.subr.bf16.mxu0 0
      %646 = vmatpush2.bf16.msra.mxu0 %v612
      %647 = vmatprep.subr.bf16.mxu0 0
      %648 = vmatpush2.bf16.msra.mxu0 %v611
      %649 = vmatprep.subr.bf16.mxu0 0
      %650 = vmatpush2.bf16.msra.mxu0 %v610
      %651 = vmatprep.subr.bf16.mxu0 0
      %652 = vmatpush2.bf16.msra.mxu0 %v609
      %653 = vmatprep.subr.bf16.mxu0 0
      %654 = vmatpush2.bf16.msra.mxu0 %v608
      %655 = vmatprep.subr.bf16.mxu0 0
      %656 = vmatpush2.bf16.msra.mxu0 %v607
      %657 = vmatprep.subr.bf16.mxu0 0
      %658 = vmatpush2.bf16.msra.mxu0 %v606
      %659 = vmatprep.subr.bf16.mxu0 0
      %660 = vmatpush2.bf16.msra.mxu0 %v605
      %661 = vmatprep.mubr.bf16.mxu0 %v509
      %662 = vmatmul.mubr.bf16.gmra.mxu0 %v477
      %v663 = vpop.f32.mrf.mxu0
      %v664 = vadd.f32 %v467, %v663
      %v665 = vpop.f32.mrf.mxu0
      %v666 = vpop.f32.mrf.mxu0
      %v667 = vadd.f32 %v467, %v666
      %v668 = vpop.f32.mrf.mxu0
      %669 = vmatprep.mubr.bf16.mxu0 %v510
      %670 = vmatmul.mubr.bf16.gmra.mxu0 %v478
      %v671 = vpop.f32.mrf.mxu0
      %v672 = vadd.f32 %v467, %v671
      %v673 = vpop.f32.mrf.mxu0
      %v674 = vpop.f32.mrf.mxu0
      %v675 = vadd.f32 %v467, %v674
      %v676 = vpop.f32.mrf.mxu0
      %677 = vmatprep.mubr.bf16.mxu0 %v511
      %678 = vmatmul.mubr.bf16.gmra.mxu0 %v479
      %v679 = vpop.f32.mrf.mxu0
      %v680 = vadd.f32 %v467, %v679
      %v681 = vpop.f32.mrf.mxu0
      %v682 = vpop.f32.mrf.mxu0
      %v683 = vadd.f32 %v467, %v682
      %v684 = vpop.f32.mrf.mxu0
      %685 = vmatprep.mubr.bf16.mxu0 %v512
      %686 = vmatmul.mubr.bf16.gmra.mxu0 %v480
      %v687 = vpop.f32.mrf.mxu0
      %v688 = vadd.f32 %v467, %v687
      %v689 = vpop.f32.mrf.mxu0
      %v690 = vpop.f32.mrf.mxu0
      %v691 = vadd.f32 %v467, %v690
      %v692 = vpop.f32.mrf.mxu0
      %693 = vmatprep.mubr.bf16.mxu0 %v513
      %694 = vmatmul.mubr.bf16.gmra.mxu0 %v481
      %v695 = vpop.f32.mrf.mxu0
      %v696 = vadd.f32 %v467, %v695
      %v697 = vpop.f32.mrf.mxu0
      %v698 = vpop.f32.mrf.mxu0
      %v699 = vadd.f32 %v467, %v698
      %v700 = vpop.f32.mrf.mxu0
      %701 = vmatprep.mubr.bf16.mxu0 %v514
      %702 = vmatmul.mubr.bf16.gmra.mxu0 %v482
      %v703 = vpop.f32.mrf.mxu0
      %v704 = vadd.f32 %v467, %v703
      %v705 = vpop.f32.mrf.mxu0
      %v706 = vpop.f32.mrf.mxu0
      %v707 = vadd.f32 %v467, %v706
      %v708 = vpop.f32.mrf.mxu0
      %709 = vmatprep.mubr.bf16.mxu0 %v515
      %710 = vmatmul.mubr.bf16.gmra.mxu0 %v483
      %v711 = vpop.f32.mrf.mxu0
      %v712 = vadd.f32 %v467, %v711
      %v713 = vpop.f32.mrf.mxu0
      %v714 = vpop.f32.mrf.mxu0
      %v715 = vadd.f32 %v467, %v714
      %v716 = vpop.f32.mrf.mxu0
      %717 = vmatprep.mubr.bf16.mxu0 %v516
      %718 = vmatmul.mubr.bf16.gmra.mxu0 %v484
      %v719 = vpop.f32.mrf.mxu0
      %v720 = vadd.f32 %v467, %v719
      %v721 = vpop.f32.mrf.mxu0
      %v722 = vpop.f32.mrf.mxu0
      %v723 = vadd.f32 %v467, %v722
      %v724 = vpop.f32.mrf.mxu0
      %725 = vmatprep.mubr.bf16.mxu0 %v525
      %726 = vmatmul.mubr.bf16.gmra.mxu0 %v493
      %v727 = vpop.f32.mrf.mxu0
      %v728 = vadd.f32 %v467, %v727
      %v729 = vpop.f32.mrf.mxu0
      %v730 = vpop.f32.mrf.mxu0
      %v731 = vadd.f32 %v467, %v730
      %v732 = vpop.f32.mrf.mxu0
      %733 = vmatprep.mubr.bf16.mxu0 %v526
      %734 = vmatmul.mubr.bf16.gmra.mxu0 %v494
      %v735 = vpop.f32.mrf.mxu0
      %v736 = vadd.f32 %v467, %v735
      %v737 = vpop.f32.mrf.mxu0
      %v738 = vpop.f32.mrf.mxu0
      %v739 = vadd.f32 %v467, %v738
      %v740 = vpop.f32.mrf.mxu0
      %741 = vmatprep.mubr.bf16.mxu0 %v527
      %742 = vmatmul.mubr.bf16.gmra.mxu0 %v495
      %v743 = vpop.f32.mrf.mxu0
      %v744 = vadd.f32 %v467, %v743
      %v745 = vpop.f32.mrf.mxu0
      %v746 = vpop.f32.mrf.mxu0
      %v747 = vadd.f32 %v467, %v746
      %v748 = vpop.f32.mrf.mxu0
      %749 = vmatprep.mubr.bf16.mxu0 %v528
      %750 = vmatmul.mubr.bf16.gmra.mxu0 %v496
      %v751 = vpop.f32.mrf.mxu0
      %v752 = vadd.f32 %v467, %v751
      %v753 = vpop.f32.mrf.mxu0
      %v754 = vpop.f32.mrf.mxu0
      %v755 = vadd.f32 %v467, %v754
      %v756 = vpop.f32.mrf.mxu0
      %757 = vmatprep.mubr.bf16.mxu0 %v529
      %758 = vmatmul.mubr.bf16.gmra.mxu0 %v497
      %v759 = vpop.f32.mrf.mxu0
      %v760 = vadd.f32 %v467, %v759
      %v761 = vpop.f32.mrf.mxu0
      %v762 = vpop.f32.mrf.mxu0
      %v763 = vadd.f32 %v467, %v762
      %v764 = vpop.f32.mrf.mxu0
      %765 = vmatprep.mubr.bf16.mxu0 %v530
      %766 = vmatmul.mubr.bf16.gmra.mxu0 %v498
      %v767 = vpop.f32.mrf.mxu0
      %v768 = vadd.f32 %v467, %v767
      %v769 = vpop.f32.mrf.mxu0
      %v770 = vpop.f32.mrf.mxu0
      %v771 = vadd.f32 %v467, %v770
      %v772 = vpop.f32.mrf.mxu0
      %773 = vmatprep.mubr.bf16.mxu0 %v531
      %774 = vmatmul.mubr.bf16.gmra.mxu0 %v499
      %v775 = vpop.f32.mrf.mxu0
      %v776 = vadd.f32 %v467, %v775
      %v777 = vpop.f32.mrf.mxu0
      %v778 = vpop.f32.mrf.mxu0
      %v779 = vadd.f32 %v467, %v778
      %v780 = vpop.f32.mrf.mxu0
      %781 = vmatprep.mubr.bf16.mxu0 %v532
      %782 = vmatmul.mubr.bf16.gmra.mxu0 %v500
      %v783 = vpop.f32.mrf.mxu0
      %v784 = vadd.f32 %v467, %v783
      %v785 = vpop.f32.mrf.mxu0
      %v786 = vpop.f32.mrf.mxu0
      %v787 = vadd.f32 %v467, %v786
      %v788 = vpop.f32.mrf.mxu0
      %789 = vdwg.mxu0
      %v790 = vmax.f32 %v664, 0.0
      %v791 = vmax.f32 %v667, 0.0
      %v792 = vmax.f32 %v672, 0.0
      %v793 = vmax.f32 %v675, 0.0
      %v794 = vmax.f32 %v680, 0.0
      %v795 = vmax.f32 %v683, 0.0
      %v796 = vmax.f32 %v688, 0.0
      %v797 = vmax.f32 %v691, 0.0
      %v798 = vmax.f32 %v696, 0.0
      %v799 = vmax.f32 %v699, 0.0
      %v800 = vmax.f32 %v704, 0.0
      %v801 = vmax.f32 %v707, 0.0
      %v802 = vmax.f32 %v712, 0.0
      %v803 = vmax.f32 %v715, 0.0
      %v804 = vmax.f32 %v720, 0.0
      %v805 = vmax.f32 %v723, 0.0
      %v806 = vmax.f32 %v728, 0.0
      %v807 = vmax.f32 %v731, 0.0
      %v808 = vmax.f32 %v736, 0.0
      %v809 = vmax.f32 %v739, 0.0
      %v810 = vmax.f32 %v744, 0.0
      %v811 = vmax.f32 %v747, 0.0
      %v812 = vmax.f32 %v752, 0.0
      %v813 = vmax.f32 %v755, 0.0
      %v814 = vmax.f32 %v760, 0.0
      %v815 = vmax.f32 %v763, 0.0
      %v816 = vmax.f32 %v768, 0.0
      %v817 = vmax.f32 %v771, 0.0
      %v818 = vmax.f32 %v776, 0.0
      %v819 = vmax.f32 %v779, 0.0
      %v820 = vmax.f32 %v784, 0.0
      %v821 = vmax.f32 %v787, 0.0
      %vm822 = vcmask 523264
      %823 = vst.msk [vmem:[#allocation2] sm:$0xff] %vm822, 0.0
      %824 = vst.msk [vmem:[#allocation2 + $0x8] sm:$0xff] %vm822, 0.0
      %vm825 = vcmask 517120
      %826 = vst.msk [vmem:[#allocation2 + $0x10] sm:$0x3] %vm825, 0.0
      %827 = vst.msk [vmem:[#allocation2 + $0x18] sm:$0xff] %vm822, 0.0
      %828 = vst.msk [vmem:[#allocation2 + $0x20] sm:$0xff] %vm822, 0.0
      %829 = vst.msk [vmem:[#allocation2 + $0x28] sm:$0x3] %vm825, 0.0
      %830 = vst.msk [vmem:[#allocation2 + $0x30] sm:$0xff] %vm822, 0.0
      %831 = vst.msk [vmem:[#allocation2 + $0x38] sm:$0xff] %vm822, 0.0
      %832 = vst.msk [vmem:[#allocation2 + $0x40] sm:$0x3] %vm825, 0.0
      %833 = vst.msk [vmem:[#allocation2 + $0x48] sm:$0xff] %vm822, 0.0
      %834 = vst.msk [vmem:[#allocation2 + $0x50] sm:$0xff] %vm822, 0.0
      %835 = vst.msk [vmem:[#allocation2 + $0x58] sm:$0x3] %vm825, 0.0
      %836 = vst.msk [vmem:[#allocation2 + $0x60] sm:$0xff] %vm822, 0.0
      %837 = vst.msk [vmem:[#allocation2 + $0x68] sm:$0xff] %vm822, 0.0
      %838 = vst.msk [vmem:[#allocation2 + $0x70] sm:$0x3] %vm825, 0.0
      %839 = vst.msk [vmem:[#allocation2 + $0x78] sm:$0xff] %vm822, 0.0
      %840 = vst.msk [vmem:[#allocation2 + $0x80] sm:$0xff] %vm822, 0.0
      %841 = vst.msk [vmem:[#allocation2 + $0x88] sm:$0x3] %vm825, 0.0
      %842 = vst.msk [vmem:[#allocation2 + $0x90] sm:$0xff] %vm822, 0.0
      %843 = vst.msk [vmem:[#allocation2 + $0x98] sm:$0xff] %vm822, 0.0
      %844 = vst.msk [vmem:[#allocation2 + $0xa0] sm:$0x3] %vm825, 0.0
      %845 = vst.msk [vmem:[#allocation2 + $0xa8] sm:$0xff] %vm822, 0.0
      %846 = vst.msk [vmem:[#allocation2 + $0xb0] sm:$0xff] %vm822, 0.0
      %847 = vst.msk [vmem:[#allocation2 + $0xb8] sm:$0x3] %vm825, 0.0
      %848 = vst.msk [vmem:[#allocation2 + $0xc0] sm:$0xff] %vm822, 0.0
      %849 = vst.msk [vmem:[#allocation2 + $0xc8] sm:$0xff] %vm822, 0.0
      %850 = vst.msk [vmem:[#allocation2 + $0xd0] sm:$0x3] %vm825, 0.0
      %851 = vst.msk [vmem:[#allocation2 + $0xd8] sm:$0xff] %vm822, 0.0
      %852 = vst.msk [vmem:[#allocation2 + $0xe0] sm:$0xff] %vm822, 0.0
      %853 = vst.msk [vmem:[#allocation2 + $0xe8] sm:$0x3] %vm825, 0.0
      %854 = vst.msk [vmem:[#allocation2 + $0xf0] sm:$0xff] %vm822, 0.0
      %855 = vst.msk [vmem:[#allocation2 + $0xf8] sm:$0xff] %vm822, 0.0
      %856 = vst.msk [vmem:[#allocation2 + $0x100] sm:$0x3] %vm825, 0.0
      %857 = vst.msk [vmem:[#allocation2 + $0x108] sm:$0xff] %vm822, 0.0
      %858 = vst.msk [vmem:[#allocation2 + $0x110] sm:$0xff] %vm822, 0.0
      %859 = vst.msk [vmem:[#allocation2 + $0x118] sm:$0x3] %vm825, 0.0
      %860 = vst.msk [vmem:[#allocation2 + $0x120] sm:$0xff] %vm822, 0.0
      %861 = vst.msk [vmem:[#allocation2 + $0x128] sm:$0xff] %vm822, 0.0
      %862 = vst.msk [vmem:[#allocation2 + $0x130] sm:$0x3] %vm825, 0.0
      %863 = vst.msk [vmem:[#allocation2 + $0x138] sm:$0xff] %vm822, 0.0
      %864 = vst.msk [vmem:[#allocation2 + $0x140] sm:$0xff] %vm822, 0.0
      %865 = vst.msk [vmem:[#allocation2 + $0x148] sm:$0x3] %vm825, 0.0
      %866 = vst.msk [vmem:[#allocation2 + $0x150] sm:$0xff] %vm822, 0.0
      %867 = vst.msk [vmem:[#allocation2 + $0x158] sm:$0xff] %vm822, 0.0
      %868 = vst.msk [vmem:[#allocation2 + $0x160] sm:$0x3] %vm825, 0.0
      %869 = vst.msk [vmem:[#allocation2 + $0x168] sm:$0xff] %vm822, 0.0
      %870 = vst.msk [vmem:[#allocation2 + $0x170] sm:$0xff] %vm822, 0.0
      %871 = vst.msk [vmem:[#allocation2 + $0x178] sm:$0x3] %vm825, 0.0
      %872 = vst.msk [vmem:[#allocation2 + $0x180] sm:$0xff] %vm822, 0.0
      %873 = vst.msk [vmem:[#allocation2 + $0x188] sm:$0xff] %vm822, 0.0
      %874 = vst.msk [vmem:[#allocation2 + $0x190] sm:$0x3] %vm825, 0.0
      %875 = vst.msk [vmem:[#allocation2 + $0x198] sm:$0xff] %vm822, 0.0
      %876 = vst.msk [vmem:[#allocation2 + $0x1a0] sm:$0xff] %vm822, 0.0
      %877 = vst.msk [vmem:[#allocation2 + $0x1a8] sm:$0x3] %vm825, 0.0
      %s878 = scalar_lea.vmem [#allocation2], 24
      %879 = vst.msk [vmem:[%s878 + $0x1] sm:$0xff] %vm822, %v790
      %880 = vst.msk [vmem:[%s878 + $0x9] sm:$0xff] %vm822, %v791
      %881 = vst.msk [vmem:[%s878 + $0x19] sm:$0xff] %vm822, %v792
      %882 = vst.msk [vmem:[%s878 + $0x21] sm:$0xff] %vm822, %v793
      %883 = vst.msk [vmem:[%s878 + $0x31] sm:$0xff] %vm822, %v794
      %884 = vst.msk [vmem:[%s878 + $0x39] sm:$0xff] %vm822, %v795
      %885 = vst.msk [vmem:[%s878 + $0x49] sm:$0xff] %vm822, %v796
      %886 = vst.msk [vmem:[%s878 + $0x51] sm:$0xff] %vm822, %v797
      %887 = vst.msk [vmem:[%s878 + $0x61] sm:$0xff] %vm822, %v798
      %888 = vst.msk [vmem:[%s878 + $0x69] sm:$0xff] %vm822, %v799
      %889 = vst.msk [vmem:[%s878 + $0x79] sm:$0xff] %vm822, %v800
      %890 = vst.msk [vmem:[%s878 + $0x81] sm:$0xff] %vm822, %v801
      %891 = vst.msk [vmem:[%s878 + $0x91] sm:$0xff] %vm822, %v802
      %892 = vst.msk [vmem:[%s878 + $0x99] sm:$0xff] %vm822, %v803
      %893 = vst.msk [vmem:[%s878 + $0xa9] sm:$0xff] %vm822, %v804
      %894 = vst.msk [vmem:[%s878 + $0xb1] sm:$0xff] %vm822, %v805
      %895 = vst.msk [vmem:[%s878 + $0xc1] sm:$0xff] %vm822, %v806
      %896 = vst.msk [vmem:[%s878 + $0xc9] sm:$0xff] %vm822, %v807
      %897 = vst.msk [vmem:[%s878 + $0xd9] sm:$0xff] %vm822, %v808
      %898 = vst.msk [vmem:[%s878 + $0xe1] sm:$0xff] %vm822, %v809
      %899 = vst.msk [vmem:[%s878 + $0xf1] sm:$0xff] %vm822, %v810
      %900 = vst.msk [vmem:[%s878 + $0xf9] sm:$0xff] %vm822, %v811
      %901 = vst.msk [vmem:[%s878 + $0x109] sm:$0xff] %vm822, %v812
      %902 = vst.msk [vmem:[%s878 + $0x111] sm:$0xff] %vm822, %v813
      %903 = vst.msk [vmem:[%s878 + $0x121] sm:$0xff] %vm822, %v814
      %904 = vst.msk [vmem:[%s878 + $0x129] sm:$0xff] %vm822, %v815
      %905 = vst.msk [vmem:[%s878 + $0x139] sm:$0xff] %vm822, %v816
      %906 = vst.msk [vmem:[%s878 + $0x141] sm:$0xff] %vm822, %v817
      %907 = vst.msk [vmem:[%s878 + $0x151] sm:$0xff] %vm822, %v818
      %908 = vst.msk [vmem:[%s878 + $0x159] sm:$0xff] %vm822, %v819
      %909 = vst.msk [vmem:[%s878 + $0x169] sm:$0xff] %vm822, %v820
      %910 = vst.msk [vmem:[%s878 + $0x171] sm:$0xff] %vm822, %v821
      %v911 = vld [vmem:[#allocation2] sm:$0xff]
      %v912 = vld [vmem:[#allocation2 + $0x8] sm:$0xff]
      %v913 = vld [vmem:[#allocation2 + $0x18] sm:$0xff]
      %v914 = vld [vmem:[#allocation2 + $0x20] sm:$0xff]
      %v915 = vld [vmem:[#allocation2 + $0x30] sm:$0xff]
      %v916 = vld [vmem:[#allocation2 + $0x38] sm:$0xff]
      %v917 = vld [vmem:[#allocation2 + $0x48] sm:$0xff]
      %v918 = vld [vmem:[#allocation2 + $0x50] sm:$0xff]
      %v919 = vld [vmem:[#allocation2 + $0x60] sm:$0xff]
      %v920 = vld [vmem:[#allocation2 + $0x68] sm:$0xff]
      %v921 = vld [vmem:[#allocation2 + $0x78] sm:$0xff]
      %v922 = vld [vmem:[#allocation2 + $0x80] sm:$0xff]
      %v923 = vld [vmem:[#allocation2 + $0x90] sm:$0xff]
      %v924 = vld [vmem:[#allocation2 + $0x98] sm:$0xff]
      %v925 = vld [vmem:[#allocation2 + $0xa8] sm:$0xff]
      %v926 = vld [vmem:[#allocation2 + $0xb0] sm:$0xff]
      %v927 = vld [vmem:[#allocation2 + $0xc0] sm:$0xff]
      %v928 = vld [vmem:[#allocation2 + $0xc8] sm:$0xff]
      %v929 = vld [vmem:[#allocation2 + $0xd8] sm:$0xff]
      %v930 = vld [vmem:[#allocation2 + $0xe0] sm:$0xff]
      %v931 = vld [vmem:[#allocation2 + $0xf0] sm:$0xff]
      %v932 = vld [vmem:[#allocation2 + $0xf8] sm:$0xff]
      %v933 = vld [vmem:[#allocation2 + $0x108] sm:$0xff]
      %v934 = vld [vmem:[#allocation2 + $0x110] sm:$0xff]
      %v935 = vld [vmem:[#allocation2 + $0x120] sm:$0xff]
      %v936 = vld [vmem:[#allocation2 + $0x128] sm:$0xff]
      %v937 = vld [vmem:[#allocation2 + $0x138] sm:$0xff]
      %v938 = vld [vmem:[#allocation2 + $0x140] sm:$0xff]
      %v939 = vld [vmem:[#allocation2 + $0x150] sm:$0xff]
      %v940 = vld [vmem:[#allocation2 + $0x158] sm:$0xff]
      %v941 = vld [vmem:[#allocation2 + $0x168] sm:$0xff]
      %v942 = vld [vmem:[#allocation2 + $0x170] sm:$0xff]
      %v943 = vld [vmem:[#allocation2 + $0x1] sm:$0xff]
      %v944 = vld [vmem:[#allocation2 + $0x9] sm:$0xff]
      %v945 = vld [vmem:[#allocation2 + $0x19] sm:$0xff]
      %v946 = vld [vmem:[#allocation2 + $0x21] sm:$0xff]
      %v947 = vld [vmem:[#allocation2 + $0x31] sm:$0xff]
      %v948 = vld [vmem:[#allocation2 + $0x39] sm:$0xff]
      %v949 = vld [vmem:[#allocation2 + $0x49] sm:$0xff]
      %v950 = vld [vmem:[#allocation2 + $0x51] sm:$0xff]
      %v951 = vld [vmem:[#allocation2 + $0x61] sm:$0xff]
      %v952 = vld [vmem:[#allocation2 + $0x69] sm:$0xff]
      %v953 = vld [vmem:[#allocation2 + $0x79] sm:$0xff]
      %v954 = vld [vmem:[#allocation2 + $0x81] sm:$0xff]
      %v955 = vld [vmem:[#allocation2 + $0x91] sm:$0xff]
      %v956 = vld [vmem:[#allocation2 + $0x99] sm:$0xff]
      %v957 = vld [vmem:[#allocation2 + $0xa9] sm:$0xff]
      %v958 = vld [vmem:[#allocation2 + $0xb1] sm:$0xff]
      %v959 = vld [vmem:[#allocation2 + $0xc1] sm:$0xff]
      %v960 = vld [vmem:[#allocation2 + $0xc9] sm:$0xff]
      %v961 = vld [vmem:[#allocation2 + $0xd9] sm:$0xff]
      %v962 = vld [vmem:[#allocation2 + $0xe1] sm:$0xff]
      %v963 = vld [vmem:[#allocation2 + $0xf1] sm:$0xff]
      %v964 = vld [vmem:[#allocation2 + $0xf9] sm:$0xff]
      %v965 = vld [vmem:[#allocation2 + $0x109] sm:$0xff]
      %v966 = vld [vmem:[#allocation2 + $0x111] sm:$0xff]
      %v967 = vld [vmem:[#allocation2 + $0x121] sm:$0xff]
      %v968 = vld [vmem:[#allocation2 + $0x129] sm:$0xff]
      %v969 = vld [vmem:[#allocation2 + $0x139] sm:$0xff]
      %v970 = vld [vmem:[#allocation2 + $0x141] sm:$0xff]
      %v971 = vld [vmem:[#allocation2 + $0x151] sm:$0xff]
      %v972 = vld [vmem:[#allocation2 + $0x159] sm:$0xff]
      %v973 = vld [vmem:[#allocation2 + $0x169] sm:$0xff]
      %v974 = vld [vmem:[#allocation2 + $0x171] sm:$0xff]
      %v975 = vld [vmem:[#allocation2 + $0x2] sm:$0xff]
      %v976 = vld [vmem:[#allocation2 + $0xa] sm:$0xff]
      %v977 = vld [vmem:[#allocation2 + $0x1a] sm:$0xff]
      %v978 = vld [vmem:[#allocation2 + $0x22] sm:$0xff]
      %v979 = vld [vmem:[#allocation2 + $0x32] sm:$0xff]
      %v980 = vld [vmem:[#allocation2 + $0x3a] sm:$0xff]
      %v981 = vld [vmem:[#allocation2 + $0x4a] sm:$0xff]
      %v982 = vld [vmem:[#allocation2 + $0x52] sm:$0xff]
      %v983 = vld [vmem:[#allocation2 + $0x62] sm:$0xff]
      %v984 = vld [vmem:[#allocation2 + $0x6a] sm:$0xff]
      %v985 = vld [vmem:[#allocation2 + $0x7a] sm:$0xff]
      %v986 = vld [vmem:[#allocation2 + $0x82] sm:$0xff]
      %v987 = vld [vmem:[#allocation2 + $0x92] sm:$0xff]
      %v988 = vld [vmem:[#allocation2 + $0x9a] sm:$0xff]
      %v989 = vld [vmem:[#allocation2 + $0xaa] sm:$0xff]
      %v990 = vld [vmem:[#allocation2 + $0xb2] sm:$0xff]
      %v991 = vld [vmem:[#allocation2 + $0xc2] sm:$0xff]
      %v992 = vld [vmem:[#allocation2 + $0xca] sm:$0xff]
      %v993 = vld [vmem:[#allocation2 + $0xda] sm:$0xff]
      %v994 = vld [vmem:[#allocation2 + $0xe2] sm:$0xff]
      %v995 = vld [vmem:[#allocation2 + $0xf2] sm:$0xff]
      %v996 = vld [vmem:[#allocation2 + $0xfa] sm:$0xff]
      %v997 = vld [vmem:[#allocation2 + $0x10a] sm:$0xff]
      %v998 = vld [vmem:[#allocation2 + $0x112] sm:$0xff]
      %v999 = vld [vmem:[#allocation2 + $0x122] sm:$0xff]
      %v1000 = vld [vmem:[#allocation2 + $0x12a] sm:$0xff]
      %v1001 = vld [vmem:[#allocation2 + $0x13a] sm:$0xff]
      %v1002 = vld [vmem:[#allocation2 + $0x142] sm:$0xff]
      %v1003 = vld [vmem:[#allocation2 + $0x152] sm:$0xff]
      %v1004 = vld [vmem:[#allocation2 + $0x15a] sm:$0xff]
      %v1005 = vld [vmem:[#allocation2 + $0x16a] sm:$0xff]
      %v1006 = vld [vmem:[#allocation2 + $0x172] sm:$0xff]
      %v1007 = vld [vmem:[%s878] sm:$0xff]
      %v1008 = vld [vmem:[%s878 + $0x8] sm:$0xff]
      %v1009 = vld [vmem:[%s878 + $0x18] sm:$0xff]
      %v1010 = vld [vmem:[%s878 + $0x20] sm:$0xff]
      %v1011 = vld [vmem:[%s878 + $0x30] sm:$0xff]
      %v1012 = vld [vmem:[%s878 + $0x38] sm:$0xff]
      %v1013 = vld [vmem:[%s878 + $0x48] sm:$0xff]
      %v1014 = vld [vmem:[%s878 + $0x50] sm:$0xff]
      %v1015 = vld [vmem:[%s878 + $0x60] sm:$0xff]
      %v1016 = vld [vmem:[%s878 + $0x68] sm:$0xff]
      %v1017 = vld [vmem:[%s878 + $0x78] sm:$0xff]
      %v1018 = vld [vmem:[%s878 + $0x80] sm:$0xff]
      %v1019 = vld [vmem:[%s878 + $0x90] sm:$0xff]
      %v1020 = vld [vmem:[%s878 + $0x98] sm:$0xff]
      %v1021 = vld [vmem:[%s878 + $0xa8] sm:$0xff]
      %v1022 = vld [vmem:[%s878 + $0xb0] sm:$0xff]
      %v1023 = vld [vmem:[%s878 + $0xc0] sm:$0xff]
      %v1024 = vld [vmem:[%s878 + $0xc8] sm:$0xff]
      %v1025 = vld [vmem:[%s878 + $0xd8] sm:$0xff]
      %v1026 = vld [vmem:[%s878 + $0xe0] sm:$0xff]
      %v1027 = vld [vmem:[%s878 + $0xf0] sm:$0xff]
      %v1028 = vld [vmem:[%s878 + $0xf8] sm:$0xff]
      %v1029 = vld [vmem:[%s878 + $0x108] sm:$0xff]
      %v1030 = vld [vmem:[%s878 + $0x110] sm:$0xff]
      %v1031 = vld [vmem:[%s878 + $0x120] sm:$0xff]
      %v1032 = vld [vmem:[%s878 + $0x128] sm:$0xff]
      %v1033 = vld [vmem:[%s878 + $0x138] sm:$0xff]
      %v1034 = vld [vmem:[%s878 + $0x140] sm:$0xff]
      %v1035 = vld [vmem:[%s878 + $0x150] sm:$0xff]
      %v1036 = vld [vmem:[%s878 + $0x158] sm:$0xff]
      %v1037 = vld [vmem:[%s878 + $0x168] sm:$0xff]
      %v1038 = vld [vmem:[%s878 + $0x170] sm:$0xff]
      %v1039 = vld [vmem:[%s878 + $0x1] sm:$0xff]
      %v1040 = vld [vmem:[%s878 + $0x9] sm:$0xff]
      %v1041 = vld [vmem:[%s878 + $0x19] sm:$0xff]
      %v1042 = vld [vmem:[%s878 + $0x21] sm:$0xff]
      %v1043 = vld [vmem:[%s878 + $0x31] sm:$0xff]
      %v1044 = vld [vmem:[%s878 + $0x39] sm:$0xff]
      %v1045 = vld [vmem:[%s878 + $0x49] sm:$0xff]
      %v1046 = vld [vmem:[%s878 + $0x51] sm:$0xff]
      %v1047 = vld [vmem:[%s878 + $0x61] sm:$0xff]
      %v1048 = vld [vmem:[%s878 + $0x69] sm:$0xff]
      %v1049 = vld [vmem:[%s878 + $0x79] sm:$0xff]
      %v1050 = vld [vmem:[%s878 + $0x81] sm:$0xff]
      %v1051 = vld [vmem:[%s878 + $0x91] sm:$0xff]
      %v1052 = vld [vmem:[%s878 + $0x99] sm:$0xff]
      %v1053 = vld [vmem:[%s878 + $0xa9] sm:$0xff]
      %v1054 = vld [vmem:[%s878 + $0xb1] sm:$0xff]
      %v1055 = vld [vmem:[%s878 + $0xc1] sm:$0xff]
      %v1056 = vld [vmem:[%s878 + $0xc9] sm:$0xff]
      %v1057 = vld [vmem:[%s878 + $0xd9] sm:$0xff]
      %v1058 = vld [vmem:[%s878 + $0xe1] sm:$0xff]
      %v1059 = vld [vmem:[%s878 + $0xf1] sm:$0xff]
      %v1060 = vld [vmem:[%s878 + $0xf9] sm:$0xff]
      %v1061 = vld [vmem:[%s878 + $0x109] sm:$0xff]
      %v1062 = vld [vmem:[%s878 + $0x111] sm:$0xff]
      %v1063 = vld [vmem:[%s878 + $0x121] sm:$0xff]
      %v1064 = vld [vmem:[%s878 + $0x129] sm:$0xff]
      %v1065 = vld [vmem:[%s878 + $0x139] sm:$0xff]
      %v1066 = vld [vmem:[%s878 + $0x141] sm:$0xff]
      %v1067 = vld [vmem:[%s878 + $0x151] sm:$0xff]
      %v1068 = vld [vmem:[%s878 + $0x159] sm:$0xff]
      %v1069 = vld [vmem:[%s878 + $0x169] sm:$0xff]
      %v1070 = vld [vmem:[%s878 + $0x171] sm:$0xff]
      %v1071 = vld [vmem:[%s878 + $0x2] sm:$0xff]
      %v1072 = vld [vmem:[%s878 + $0xa] sm:$0xff]
      %v1073 = vld [vmem:[%s878 + $0x1a] sm:$0xff]
      %v1074 = vld [vmem:[%s878 + $0x22] sm:$0xff]
      %v1075 = vld [vmem:[%s878 + $0x32] sm:$0xff]
      %v1076 = vld [vmem:[%s878 + $0x3a] sm:$0xff]
      %v1077 = vld [vmem:[%s878 + $0x4a] sm:$0xff]
      %v1078 = vld [vmem:[%s878 + $0x52] sm:$0xff]
      %v1079 = vld [vmem:[%s878 + $0x62] sm:$0xff]
      %v1080 = vld [vmem:[%s878 + $0x6a] sm:$0xff]
      %v1081 = vld [vmem:[%s878 + $0x7a] sm:$0xff]
      %v1082 = vld [vmem:[%s878 + $0x82] sm:$0xff]
      %v1083 = vld [vmem:[%s878 + $0x92] sm:$0xff]
      %v1084 = vld [vmem:[%s878 + $0x9a] sm:$0xff]
      %v1085 = vld [vmem:[%s878 + $0xaa] sm:$0xff]
      %v1086 = vld [vmem:[%s878 + $0xb2] sm:$0xff]
      %v1087 = vld [vmem:[%s878 + $0xc2] sm:$0xff]
      %v1088 = vld [vmem:[%s878 + $0xca] sm:$0xff]
      %v1089 = vld [vmem:[%s878 + $0xda] sm:$0xff]
      %v1090 = vld [vmem:[%s878 + $0xe2] sm:$0xff]
      %v1091 = vld [vmem:[%s878 + $0xf2] sm:$0xff]
      %v1092 = vld [vmem:[%s878 + $0xfa] sm:$0xff]
      %v1093 = vld [vmem:[%s878 + $0x10a] sm:$0xff]
      %v1094 = vld [vmem:[%s878 + $0x112] sm:$0xff]
      %v1095 = vld [vmem:[%s878 + $0x122] sm:$0xff]
      %v1096 = vld [vmem:[%s878 + $0x12a] sm:$0xff]
      %v1097 = vld [vmem:[%s878 + $0x13a] sm:$0xff]
      %v1098 = vld [vmem:[%s878 + $0x142] sm:$0xff]
      %v1099 = vld [vmem:[%s878 + $0x152] sm:$0xff]
      %v1100 = vld [vmem:[%s878 + $0x15a] sm:$0xff]
      %v1101 = vld [vmem:[%s878 + $0x16a] sm:$0xff]
      %v1102 = vld [vmem:[%s878 + $0x172] sm:$0xff]
      %s1103 = scalar_lea.vmem [#allocation2], 48
      %v1104 = vld [vmem:[%s1103] sm:$0xff]
      %v1105 = vld [vmem:[%s1103 + $0x8] sm:$0xff]
      %v1106 = vld [vmem:[%s1103 + $0x18] sm:$0xff]
      %v1107 = vld [vmem:[%s1103 + $0x20] sm:$0xff]
      %v1108 = vld [vmem:[%s1103 + $0x30] sm:$0xff]
      %v1109 = vld [vmem:[%s1103 + $0x38] sm:$0xff]
      %v1110 = vld [vmem:[%s1103 + $0x48] sm:$0xff]
      %v1111 = vld [vmem:[%s1103 + $0x50] sm:$0xff]
      %v1112 = vld [vmem:[%s1103 + $0x60] sm:$0xff]
      %v1113 = vld [vmem:[%s1103 + $0x68] sm:$0xff]
      %v1114 = vld [vmem:[%s1103 + $0x78] sm:$0xff]
      %v1115 = vld [vmem:[%s1103 + $0x80] sm:$0xff]
      %v1116 = vld [vmem:[%s1103 + $0x90] sm:$0xff]
      %v1117 = vld [vmem:[%s1103 + $0x98] sm:$0xff]
      %v1118 = vld [vmem:[%s1103 + $0xa8] sm:$0xff]
      %v1119 = vld [vmem:[%s1103 + $0xb0] sm:$0xff]
      %v1120 = vld [vmem:[%s1103 + $0xc0] sm:$0xff]
      %v1121 = vld [vmem:[%s1103 + $0xc8] sm:$0xff]
      %v1122 = vld [vmem:[%s1103 + $0xd8] sm:$0xff]
      %v1123 = vld [vmem:[%s1103 + $0xe0] sm:$0xff]
      %v1124 = vld [vmem:[%s1103 + $0xf0] sm:$0xff]
      %v1125 = vld [vmem:[%s1103 + $0xf8] sm:$0xff]
      %v1126 = vld [vmem:[%s1103 + $0x108] sm:$0xff]
      %v1127 = vld [vmem:[%s1103 + $0x110] sm:$0xff]
      %v1128 = vld [vmem:[%s1103 + $0x120] sm:$0xff]
      %v1129 = vld [vmem:[%s1103 + $0x128] sm:$0xff]
      %v1130 = vld [vmem:[%s1103 + $0x138] sm:$0xff]
      %v1131 = vld [vmem:[%s1103 + $0x140] sm:$0xff]
      %v1132 = vld [vmem:[%s1103 + $0x150] sm:$0xff]
      %v1133 = vld [vmem:[%s1103 + $0x158] sm:$0xff]
      %v1134 = vld [vmem:[%s1103 + $0x168] sm:$0xff]
      %v1135 = vld [vmem:[%s1103 + $0x170] sm:$0xff]
      %v1136 = vld [vmem:[%s1103 + $0x1] sm:$0xff]
      %v1137 = vld [vmem:[%s1103 + $0x9] sm:$0xff]
      %v1138 = vld [vmem:[%s1103 + $0x19] sm:$0xff]
      %v1139 = vld [vmem:[%s1103 + $0x21] sm:$0xff]
      %v1140 = vld [vmem:[%s1103 + $0x31] sm:$0xff]
      %v1141 = vld [vmem:[%s1103 + $0x39] sm:$0xff]
      %v1142 = vld [vmem:[%s1103 + $0x49] sm:$0xff]
      %v1143 = vld [vmem:[%s1103 + $0x51] sm:$0xff]
      %v1144 = vld [vmem:[%s1103 + $0x61] sm:$0xff]
      %v1145 = vld [vmem:[%s1103 + $0x69] sm:$0xff]
      %v1146 = vld [vmem:[%s1103 + $0x79] sm:$0xff]
      %v1147 = vld [vmem:[%s1103 + $0x81] sm:$0xff]
      %v1148 = vld [vmem:[%s1103 + $0x91] sm:$0xff]
      %v1149 = vld [vmem:[%s1103 + $0x99] sm:$0xff]
      %v1150 = vld [vmem:[%s1103 + $0xa9] sm:$0xff]
      %v1151 = vld [vmem:[%s1103 + $0xb1] sm:$0xff]
      %v1152 = vld [vmem:[%s1103 + $0xc1] sm:$0xff]
      %v1153 = vld [vmem:[%s1103 + $0xc9] sm:$0xff]
      %v1154 = vld [vmem:[%s1103 + $0xd9] sm:$0xff]
      %v1155 = vld [vmem:[%s1103 + $0xe1] sm:$0xff]
      %v1156 = vld [vmem:[%s1103 + $0xf1] sm:$0xff]
      %v1157 = vld [vmem:[%s1103 + $0xf9] sm:$0xff]
      %v1158 = vld [vmem:[%s1103 + $0x109] sm:$0xff]
      %v1159 = vld [vmem:[%s1103 + $0x111] sm:$0xff]
      %v1160 = vld [vmem:[%s1103 + $0x121] sm:$0xff]
      %v1161 = vld [vmem:[%s1103 + $0x129] sm:$0xff]
      %v1162 = vld [vmem:[%s1103 + $0x139] sm:$0xff]
      %v1163 = vld [vmem:[%s1103 + $0x141] sm:$0xff]
      %v1164 = vld [vmem:[%s1103 + $0x151] sm:$0xff]
      %v1165 = vld [vmem:[%s1103 + $0x159] sm:$0xff]
      %v1166 = vld [vmem:[%s1103 + $0x169] sm:$0xff]
      %v1167 = vld [vmem:[%s1103 + $0x171] sm:$0xff]
      %v1168 = vld [vmem:[%s1103 + $0x2] sm:$0xff]
      %v1169 = vld [vmem:[%s1103 + $0xa] sm:$0xff]
      %v1170 = vld [vmem:[%s1103 + $0x1a] sm:$0xff]
      %v1171 = vld [vmem:[%s1103 + $0x22] sm:$0xff]
      %v1172 = vld [vmem:[%s1103 + $0x32] sm:$0xff]
      %v1173 = vld [vmem:[%s1103 + $0x3a] sm:$0xff]
      %v1174 = vld [vmem:[%s1103 + $0x4a] sm:$0xff]
      %v1175 = vld [vmem:[%s1103 + $0x52] sm:$0xff]
      %v1176 = vld [vmem:[%s1103 + $0x62] sm:$0xff]
      %v1177 = vld [vmem:[%s1103 + $0x6a] sm:$0xff]
      %v1178 = vld [vmem:[%s1103 + $0x7a] sm:$0xff]
      %v1179 = vld [vmem:[%s1103 + $0x82] sm:$0xff]
      %v1180 = vld [vmem:[%s1103 + $0x92] sm:$0xff]
      %v1181 = vld [vmem:[%s1103 + $0x9a] sm:$0xff]
      %v1182 = vld [vmem:[%s1103 + $0xaa] sm:$0xff]
      %v1183 = vld [vmem:[%s1103 + $0xb2] sm:$0xff]
      %v1184 = vld [vmem:[%s1103 + $0xc2] sm:$0xff]
      %v1185 = vld [vmem:[%s1103 + $0xca] sm:$0xff]
      %v1186 = vld [vmem:[%s1103 + $0xda] sm:$0xff]
      %v1187 = vld [vmem:[%s1103 + $0xe2] sm:$0xff]
      %v1188 = vld [vmem:[%s1103 + $0xf2] sm:$0xff]
      %v1189 = vld [vmem:[%s1103 + $0xfa] sm:$0xff]
      %v1190 = vld [vmem:[%s1103 + $0x10a] sm:$0xff]
      %v1191 = vld [vmem:[%s1103 + $0x112] sm:$0xff]
      %v1192 = vld [vmem:[%s1103 + $0x122] sm:$0xff]
      %v1193 = vld [vmem:[%s1103 + $0x12a] sm:$0xff]
      %v1194 = vld [vmem:[%s1103 + $0x13a] sm:$0xff]
      %v1195 = vld [vmem:[%s1103 + $0x142] sm:$0xff]
      %v1196 = vld [vmem:[%s1103 + $0x152] sm:$0xff]
      %v1197 = vld [vmem:[%s1103 + $0x15a] sm:$0xff]
      %v1198 = vld [vmem:[%s1103 + $0x16a] sm:$0xff]
      %v1199 = vld [vmem:[%s1103 + $0x172] sm:$0xff]
      %1232 = vrot.lane.b32.xlu0 %v943, 64
      %v1233 = vpop.permute.xlu0 %1232
      %1234 = vrot.lane.b32.xlu0 %v944, 64
      %v1235 = vpop.permute.xlu0 %1234
      %1236 = vrot.lane.b32.xlu0 %v945, 64
      %v1237 = vpop.permute.xlu0 %1236
      %1238 = vrot.lane.b32.xlu0 %v946, 64
      %v1239 = vpop.permute.xlu0 %1238
      %1240 = vrot.lane.b32.xlu0 %v947, 64
      %v1241 = vpop.permute.xlu0 %1240
      %1242 = vrot.lane.b32.xlu0 %v948, 64
      %v1243 = vpop.permute.xlu0 %1242
      %1244 = vrot.lane.b32.xlu0 %v949, 64
      %v1245 = vpop.permute.xlu0 %1244
      %1246 = vrot.lane.b32.xlu0 %v950, 64
      %v1247 = vpop.permute.xlu0 %1246
      %1248 = vrot.lane.b32.xlu0 %v951, 64
      %v1249 = vpop.permute.xlu0 %1248
      %1250 = vrot.lane.b32.xlu0 %v952, 64
      %v1251 = vpop.permute.xlu0 %1250
      %1252 = vrot.lane.b32.xlu0 %v953, 64
      %v1253 = vpop.permute.xlu0 %1252
      %1254 = vrot.lane.b32.xlu0 %v954, 64
      %v1255 = vpop.permute.xlu0 %1254
      %1256 = vrot.lane.b32.xlu0 %v955, 64
      %v1257 = vpop.permute.xlu0 %1256
      %1258 = vrot.lane.b32.xlu0 %v956, 64
      %v1259 = vpop.permute.xlu0 %1258
      %1260 = vrot.lane.b32.xlu0 %v957, 64
      %v1261 = vpop.permute.xlu0 %1260
      %1262 = vrot.lane.b32.xlu0 %v958, 64
      %v1263 = vpop.permute.xlu0 %1262
      %1264 = vrot.lane.b32.xlu0 %v959, 64
      %v1265 = vpop.permute.xlu0 %1264
      %1266 = vrot.lane.b32.xlu0 %v960, 64
      %v1267 = vpop.permute.xlu0 %1266
      %1268 = vrot.lane.b32.xlu0 %v961, 64
      %v1269 = vpop.permute.xlu0 %1268
      %1270 = vrot.lane.b32.xlu0 %v962, 64
      %v1271 = vpop.permute.xlu0 %1270
      %1272 = vrot.lane.b32.xlu0 %v963, 64
      %v1273 = vpop.permute.xlu0 %1272
      %1274 = vrot.lane.b32.xlu0 %v964, 64
      %v1275 = vpop.permute.xlu0 %1274
      %1276 = vrot.lane.b32.xlu0 %v965, 64
      %v1277 = vpop.permute.xlu0 %1276
      %1278 = vrot.lane.b32.xlu0 %v966, 64
      %v1279 = vpop.permute.xlu0 %1278
      %1280 = vrot.lane.b32.xlu0 %v967, 64
      %v1281 = vpop.permute.xlu0 %1280
      %1282 = vrot.lane.b32.xlu0 %v968, 64
      %v1283 = vpop.permute.xlu0 %1282
      %1284 = vrot.lane.b32.xlu0 %v969, 64
      %v1285 = vpop.permute.xlu0 %1284
      %1286 = vrot.lane.b32.xlu0 %v970, 64
      %v1287 = vpop.permute.xlu0 %1286
      %1288 = vrot.lane.b32.xlu0 %v971, 64
      %v1289 = vpop.permute.xlu0 %1288
      %1290 = vrot.lane.b32.xlu0 %v972, 64
      %v1291 = vpop.permute.xlu0 %1290
      %1292 = vrot.lane.b32.xlu0 %v973, 64
      %v1293 = vpop.permute.xlu0 %1292
      %1294 = vrot.lane.b32.xlu0 %v974, 64
      %v1295 = vpop.permute.xlu0 %1294
      %1360 = vrot.lane.b32.xlu0 %v1007, 64
      %v1361 = vpop.permute.xlu0 %1360
      %1362 = vrot.lane.b32.xlu0 %v1008, 64
      %v1363 = vpop.permute.xlu0 %1362
      %1364 = vrot.lane.b32.xlu0 %v1009, 64
      %v1365 = vpop.permute.xlu0 %1364
      %1366 = vrot.lane.b32.xlu0 %v1010, 64
      %v1367 = vpop.permute.xlu0 %1366
      %1368 = vrot.lane.b32.xlu0 %v1011, 64
      %v1369 = vpop.permute.xlu0 %1368
      %1370 = vrot.lane.b32.xlu0 %v1012, 64
      %v1371 = vpop.permute.xlu0 %1370
      %1372 = vrot.lane.b32.xlu0 %v1013, 64
      %v1373 = vpop.permute.xlu0 %1372
      %1374 = vrot.lane.b32.xlu0 %v1014, 64
      %v1375 = vpop.permute.xlu0 %1374
      %1376 = vrot.lane.b32.xlu0 %v1015, 64
      %v1377 = vpop.permute.xlu0 %1376
      %1378 = vrot.lane.b32.xlu0 %v1016, 64
      %v1379 = vpop.permute.xlu0 %1378
      %1380 = vrot.lane.b32.xlu0 %v1017, 64
      %v1381 = vpop.permute.xlu0 %1380
      %1382 = vrot.lane.b32.xlu0 %v1018, 64
      %v1383 = vpop.permute.xlu0 %1382
      %1384 = vrot.lane.b32.xlu0 %v1019, 64
      %v1385 = vpop.permute.xlu0 %1384
      %1386 = vrot.lane.b32.xlu0 %v1020, 64
      %v1387 = vpop.permute.xlu0 %1386
      %1388 = vrot.lane.b32.xlu0 %v1021, 64
      %v1389 = vpop.permute.xlu0 %1388
      %1390 = vrot.lane.b32.xlu0 %v1022, 64
      %v1391 = vpop.permute.xlu0 %1390
      %1392 = vrot.lane.b32.xlu0 %v1023, 64
      %v1393 = vpop.permute.xlu0 %1392
      %1394 = vrot.lane.b32.xlu0 %v1024, 64
      %v1395 = vpop.permute.xlu0 %1394
      %1396 = vrot.lane.b32.xlu0 %v1025, 64
      %v1397 = vpop.permute.xlu0 %1396
      %1398 = vrot.lane.b32.xlu0 %v1026, 64
      %v1399 = vpop.permute.xlu0 %1398
      %1400 = vrot.lane.b32.xlu0 %v1027, 64
      %v1401 = vpop.permute.xlu0 %1400
      %1402 = vrot.lane.b32.xlu0 %v1028, 64
      %v1403 = vpop.permute.xlu0 %1402
      %1404 = vrot.lane.b32.xlu0 %v1029, 64
      %v1405 = vpop.permute.xlu0 %1404
      %1406 = vrot.lane.b32.xlu0 %v1030, 64
      %v1407 = vpop.permute.xlu0 %1406
      %1408 = vrot.lane.b32.xlu0 %v1031, 64
      %v1409 = vpop.permute.xlu0 %1408
      %1410 = vrot.lane.b32.xlu0 %v1032, 64
      %v1411 = vpop.permute.xlu0 %1410
      %1412 = vrot.lane.b32.xlu0 %v1033, 64
      %v1413 = vpop.permute.xlu0 %1412
      %1414 = vrot.lane.b32.xlu0 %v1034, 64
      %v1415 = vpop.permute.xlu0 %1414
      %1416 = vrot.lane.b32.xlu0 %v1035, 64
      %v1417 = vpop.permute.xlu0 %1416
      %1418 = vrot.lane.b32.xlu0 %v1036, 64
      %v1419 = vpop.permute.xlu0 %1418
      %1420 = vrot.lane.b32.xlu0 %v1037, 64
      %v1421 = vpop.permute.xlu0 %1420
      %1422 = vrot.lane.b32.xlu0 %v1038, 64
      %v1423 = vpop.permute.xlu0 %1422
      %1488 = vrot.lane.b32.xlu0 %v1071, 64
      %v1489 = vpop.permute.xlu0 %1488
      %1490 = vrot.lane.b32.xlu0 %v1072, 64
      %v1491 = vpop.permute.xlu0 %1490
      %1492 = vrot.lane.b32.xlu0 %v1073, 64
      %v1493 = vpop.permute.xlu0 %1492
      %1494 = vrot.lane.b32.xlu0 %v1074, 64
      %v1495 = vpop.permute.xlu0 %1494
      %1496 = vrot.lane.b32.xlu0 %v1075, 64
      %v1497 = vpop.permute.xlu0 %1496
      %1498 = vrot.lane.b32.xlu0 %v1076, 64
      %v1499 = vpop.permute.xlu0 %1498
      %1500 = vrot.lane.b32.xlu0 %v1077, 64
      %v1501 = vpop.permute.xlu0 %1500
      %1502 = vrot.lane.b32.xlu0 %v1078, 64
      %v1503 = vpop.permute.xlu0 %1502
      %1504 = vrot.lane.b32.xlu0 %v1079, 64
      %v1505 = vpop.permute.xlu0 %1504
      %1506 = vrot.lane.b32.xlu0 %v1080, 64
      %v1507 = vpop.permute.xlu0 %1506
      %1508 = vrot.lane.b32.xlu0 %v1081, 64
      %v1509 = vpop.permute.xlu0 %1508
      %1510 = vrot.lane.b32.xlu0 %v1082, 64
      %v1511 = vpop.permute.xlu0 %1510
      %1512 = vrot.lane.b32.xlu0 %v1083, 64
      %v1513 = vpop.permute.xlu0 %1512
      %1514 = vrot.lane.b32.xlu0 %v1084, 64
      %v1515 = vpop.permute.xlu0 %1514
      %1516 = vrot.lane.b32.xlu0 %v1085, 64
      %v1517 = vpop.permute.xlu0 %1516
      %1518 = vrot.lane.b32.xlu0 %v1086, 64
      %v1519 = vpop.permute.xlu0 %1518
      %1520 = vrot.lane.b32.xlu0 %v1087, 64
      %v1521 = vpop.permute.xlu0 %1520
      %1522 = vrot.lane.b32.xlu0 %v1088, 64
      %v1523 = vpop.permute.xlu0 %1522
      %1524 = vrot.lane.b32.xlu0 %v1089, 64
      %v1525 = vpop.permute.xlu0 %1524
      %1526 = vrot.lane.b32.xlu0 %v1090, 64
      %v1527 = vpop.permute.xlu0 %1526
      %1528 = vrot.lane.b32.xlu0 %v1091, 64
      %v1529 = vpop.permute.xlu0 %1528
      %1530 = vrot.lane.b32.xlu0 %v1092, 64
      %v1531 = vpop.permute.xlu0 %1530
      %1532 = vrot.lane.b32.xlu0 %v1093, 64
      %v1533 = vpop.permute.xlu0 %1532
      %1534 = vrot.lane.b32.xlu0 %v1094, 64
      %v1535 = vpop.permute.xlu0 %1534
      %1536 = vrot.lane.b32.xlu0 %v1095, 64
      %v1537 = vpop.permute.xlu0 %1536
      %1538 = vrot.lane.b32.xlu0 %v1096, 64
      %v1539 = vpop.permute.xlu0 %1538
      %1540 = vrot.lane.b32.xlu0 %v1097, 64
      %v1541 = vpop.permute.xlu0 %1540
      %1542 = vrot.lane.b32.xlu0 %v1098, 64
      %v1543 = vpop.permute.xlu0 %1542
      %1544 = vrot.lane.b32.xlu0 %v1099, 64
      %v1545 = vpop.permute.xlu0 %1544
      %1546 = vrot.lane.b32.xlu0 %v1100, 64
      %v1547 = vpop.permute.xlu0 %1546
      %1548 = vrot.lane.b32.xlu0 %v1101, 64
      %v1549 = vpop.permute.xlu0 %1548
      %1550 = vrot.lane.b32.xlu0 %v1102, 64
      %v1551 = vpop.permute.xlu0 %1550
      %1616 = vrot.lane.b32.xlu0 %v1136, 64
      %v1617 = vpop.permute.xlu0 %1616
      %1618 = vrot.lane.b32.xlu0 %v1137, 64
      %v1619 = vpop.permute.xlu0 %1618
      %1620 = vrot.lane.b32.xlu0 %v1138, 64
      %v1621 = vpop.permute.xlu0 %1620
      %1622 = vrot.lane.b32.xlu0 %v1139, 64
      %v1623 = vpop.permute.xlu0 %1622
      %1624 = vrot.lane.b32.xlu0 %v1140, 64
      %v1625 = vpop.permute.xlu0 %1624
      %1626 = vrot.lane.b32.xlu0 %v1141, 64
      %v1627 = vpop.permute.xlu0 %1626
      %1628 = vrot.lane.b32.xlu0 %v1142, 64
      %v1629 = vpop.permute.xlu0 %1628
      %1630 = vrot.lane.b32.xlu0 %v1143, 64
      %v1631 = vpop.permute.xlu0 %1630
      %1632 = vrot.lane.b32.xlu0 %v1144, 64
      %v1633 = vpop.permute.xlu0 %1632
      %1634 = vrot.lane.b32.xlu0 %v1145, 64
      %v1635 = vpop.permute.xlu0 %1634
      %1636 = vrot.lane.b32.xlu0 %v1146, 64
      %v1637 = vpop.permute.xlu0 %1636
      %1638 = vrot.lane.b32.xlu0 %v1147, 64
      %v1639 = vpop.permute.xlu0 %1638
      %1640 = vrot.lane.b32.xlu0 %v1148, 64
      %v1641 = vpop.permute.xlu0 %1640
      %1642 = vrot.lane.b32.xlu0 %v1149, 64
      %v1643 = vpop.permute.xlu0 %1642
      %1644 = vrot.lane.b32.xlu0 %v1150, 64
      %v1645 = vpop.permute.xlu0 %1644
      %1646 = vrot.lane.b32.xlu0 %v1151, 64
      %v1647 = vpop.permute.xlu0 %1646
      %1648 = vrot.lane.b32.xlu0 %v1152, 64
      %v1649 = vpop.permute.xlu0 %1648
      %1650 = vrot.lane.b32.xlu0 %v1153, 64
      %v1651 = vpop.permute.xlu0 %1650
      %1652 = vrot.lane.b32.xlu0 %v1154, 64
      %v1653 = vpop.permute.xlu0 %1652
      %1654 = vrot.lane.b32.xlu0 %v1155, 64
      %v1655 = vpop.permute.xlu0 %1654
      %1656 = vrot.lane.b32.xlu0 %v1156, 64
      %v1657 = vpop.permute.xlu0 %1656
      %1658 = vrot.lane.b32.xlu0 %v1157, 64
      %v1659 = vpop.permute.xlu0 %1658
      %1660 = vrot.lane.b32.xlu0 %v1158, 64
      %v1661 = vpop.permute.xlu0 %1660
      %1662 = vrot.lane.b32.xlu0 %v1159, 64
      %v1663 = vpop.permute.xlu0 %1662
      %1664 = vrot.lane.b32.xlu0 %v1160, 64
      %v1665 = vpop.permute.xlu0 %1664
      %1666 = vrot.lane.b32.xlu0 %v1161, 64
      %v1667 = vpop.permute.xlu0 %1666
      %1668 = vrot.lane.b32.xlu0 %v1162, 64
      %v1669 = vpop.permute.xlu0 %1668
      %1670 = vrot.lane.b32.xlu0 %v1163, 64
      %v1671 = vpop.permute.xlu0 %1670
      %1672 = vrot.lane.b32.xlu0 %v1164, 64
      %v1673 = vpop.permute.xlu0 %1672
      %1674 = vrot.lane.b32.xlu0 %v1165, 64
      %v1675 = vpop.permute.xlu0 %1674
      %1676 = vrot.lane.b32.xlu0 %v1166, 64
      %v1677 = vpop.permute.xlu0 %1676
      %1678 = vrot.lane.b32.xlu0 %v1167, 64
      %v1679 = vpop.permute.xlu0 %1678
      %v1712 = vsel %vm822, %v911, %v1233
      %v1713 = vsel %vm822, %v912, %v1235
      %v1714 = vsel %vm822, %v913, %v1237
      %v1715 = vsel %vm822, %v914, %v1239
      %v1716 = vsel %vm822, %v915, %v1241
      %v1717 = vsel %vm822, %v916, %v1243
      %v1718 = vsel %vm822, %v917, %v1245
      %v1719 = vsel %vm822, %v918, %v1247
      %v1720 = vsel %vm822, %v919, %v1249
      %v1721 = vsel %vm822, %v920, %v1251
      %v1722 = vsel %vm822, %v921, %v1253
      %v1723 = vsel %vm822, %v922, %v1255
      %v1724 = vsel %vm822, %v923, %v1257
      %v1725 = vsel %vm822, %v924, %v1259
      %v1726 = vsel %vm822, %v925, %v1261
      %v1727 = vsel %vm822, %v926, %v1263
      %v1728 = vsel %vm822, %v927, %v1265
      %v1729 = vsel %vm822, %v928, %v1267
      %v1730 = vsel %vm822, %v929, %v1269
      %v1731 = vsel %vm822, %v930, %v1271
      %v1732 = vsel %vm822, %v931, %v1273
      %v1733 = vsel %vm822, %v932, %v1275
      %v1734 = vsel %vm822, %v933, %v1277
      %v1735 = vsel %vm822, %v934, %v1279
      %v1736 = vsel %vm822, %v935, %v1281
      %v1737 = vsel %vm822, %v936, %v1283
      %v1738 = vsel %vm822, %v937, %v1285
      %v1739 = vsel %vm822, %v938, %v1287
      %v1740 = vsel %vm822, %v939, %v1289
      %v1741 = vsel %vm822, %v940, %v1291
      %v1742 = vsel %vm822, %v941, %v1293
      %v1743 = vsel %vm822, %v942, %v1295
      %v1744 = vsel %vm822, %v975, %v1361
      %v1745 = vsel %vm822, %v976, %v1363
      %v1746 = vsel %vm822, %v977, %v1365
      %v1747 = vsel %vm822, %v978, %v1367
      %v1748 = vsel %vm822, %v979, %v1369
      %v1749 = vsel %vm822, %v980, %v1371
      %v1750 = vsel %vm822, %v981, %v1373
      %v1751 = vsel %vm822, %v982, %v1375
      %v1752 = vsel %vm822, %v983, %v1377
      %v1753 = vsel %vm822, %v984, %v1379
      %v1754 = vsel %vm822, %v985, %v1381
      %v1755 = vsel %vm822, %v986, %v1383
      %v1756 = vsel %vm822, %v987, %v1385
      %v1757 = vsel %vm822, %v988, %v1387
      %v1758 = vsel %vm822, %v989, %v1389
      %v1759 = vsel %vm822, %v990, %v1391
      %v1760 = vsel %vm822, %v991, %v1393
      %v1761 = vsel %vm822, %v992, %v1395
      %v1762 = vsel %vm822, %v993, %v1397
      %v1763 = vsel %vm822, %v994, %v1399
      %v1764 = vsel %vm822, %v995, %v1401
      %v1765 = vsel %vm822, %v996, %v1403
      %v1766 = vsel %vm822, %v997, %v1405
      %v1767 = vsel %vm822, %v998, %v1407
      %v1768 = vsel %vm822, %v999, %v1409
      %v1769 = vsel %vm822, %v1000, %v1411
      %v1770 = vsel %vm822, %v1001, %v1413
      %v1771 = vsel %vm822, %v1002, %v1415
      %v1772 = vsel %vm822, %v1003, %v1417
      %v1773 = vsel %vm822, %v1004, %v1419
      %v1774 = vsel %vm822, %v1005, %v1421
      %v1775 = vsel %vm822, %v1006, %v1423
      %v1776 = vsel %vm822, %v1039, %v1489
      %v1777 = vsel %vm822, %v1040, %v1491
      %v1778 = vsel %vm822, %v1041, %v1493
      %v1779 = vsel %vm822, %v1042, %v1495
      %v1780 = vsel %vm822, %v1043, %v1497
      %v1781 = vsel %vm822, %v1044, %v1499
      %v1782 = vsel %vm822, %v1045, %v1501
      %v1783 = vsel %vm822, %v1046, %v1503
      %v1784 = vsel %vm822, %v1047, %v1505
      %v1785 = vsel %vm822, %v1048, %v1507
      %v1786 = vsel %vm822, %v1049, %v1509
      %v1787 = vsel %vm822, %v1050, %v1511
      %v1788 = vsel %vm822, %v1051, %v1513
      %v1789 = vsel %vm822, %v1052, %v1515
      %v1790 = vsel %vm822, %v1053, %v1517
      %v1791 = vsel %vm822, %v1054, %v1519
      %v1792 = vsel %vm822, %v1055, %v1521
      %v1793 = vsel %vm822, %v1056, %v1523
      %v1794 = vsel %vm822, %v1057, %v1525
      %v1795 = vsel %vm822, %v1058, %v1527
      %v1796 = vsel %vm822, %v1059, %v1529
      %v1797 = vsel %vm822, %v1060, %v1531
      %v1798 = vsel %vm822, %v1061, %v1533
      %v1799 = vsel %vm822, %v1062, %v1535
      %v1800 = vsel %vm822, %v1063, %v1537
      %v1801 = vsel %vm822, %v1064, %v1539
      %v1802 = vsel %vm822, %v1065, %v1541
      %v1803 = vsel %vm822, %v1066, %v1543
      %v1804 = vsel %vm822, %v1067, %v1545
      %v1805 = vsel %vm822, %v1068, %v1547
      %v1806 = vsel %vm822, %v1069, %v1549
      %v1807 = vsel %vm822, %v1070, %v1551
      %v1808 = vsel %vm822, %v1104, %v1617
      %v1809 = vsel %vm822, %v1105, %v1619
      %v1810 = vsel %vm822, %v1106, %v1621
      %v1811 = vsel %vm822, %v1107, %v1623
      %v1812 = vsel %vm822, %v1108, %v1625
      %v1813 = vsel %vm822, %v1109, %v1627
      %v1814 = vsel %vm822, %v1110, %v1629
      %v1815 = vsel %vm822, %v1111, %v1631
      %v1816 = vsel %vm822, %v1112, %v1633
      %v1817 = vsel %vm822, %v1113, %v1635
      %v1818 = vsel %vm822, %v1114, %v1637
      %v1819 = vsel %vm822, %v1115, %v1639
      %v1820 = vsel %vm822, %v1116, %v1641
      %v1821 = vsel %vm822, %v1117, %v1643
      %v1822 = vsel %vm822, %v1118, %v1645
      %v1823 = vsel %vm822, %v1119, %v1647
      %v1824 = vsel %vm822, %v1120, %v1649
      %v1825 = vsel %vm822, %v1121, %v1651
      %v1826 = vsel %vm822, %v1122, %v1653
      %v1827 = vsel %vm822, %v1123, %v1655
      %v1828 = vsel %vm822, %v1124, %v1657
      %v1829 = vsel %vm822, %v1125, %v1659
      %v1830 = vsel %vm822, %v1126, %v1661
      %v1831 = vsel %vm822, %v1127, %v1663
      %v1832 = vsel %vm822, %v1128, %v1665
      %v1833 = vsel %vm822, %v1129, %v1667
      %v1834 = vsel %vm822, %v1130, %v1669
      %v1835 = vsel %vm822, %v1131, %v1671
      %v1836 = vsel %vm822, %v1132, %v1673
      %v1837 = vsel %vm822, %v1133, %v1675
      %v1838 = vsel %vm822, %v1134, %v1677
      %v1839 = vsel %vm822, %v1135, %v1679
      %v1840 = vpack.c.bf16 %v1713, %v1712
      %v1841 = vpack.c.bf16 %v1745, %v1744
      %v1842 = vpack.c.bf16 %v1777, %v1776
      %v1843 = vpack.c.bf16 %v1809, %v1808
      %v1844 = vpack.c.bf16 %v1169, %v1168
      %v1845 = vpack.c.bf16 %v1715, %v1714
      %v1846 = vpack.c.bf16 %v1747, %v1746
      %v1847 = vpack.c.bf16 %v1779, %v1778
      %v1848 = vpack.c.bf16 %v1811, %v1810
      %v1849 = vpack.c.bf16 %v1171, %v1170
      %v1850 = vpack.c.bf16 %v1717, %v1716
      %v1851 = vpack.c.bf16 %v1749, %v1748
      %v1852 = vpack.c.bf16 %v1781, %v1780
      %v1853 = vpack.c.bf16 %v1813, %v1812
      %v1854 = vpack.c.bf16 %v1173, %v1172
      %v1855 = vpack.c.bf16 %v1719, %v1718
      %v1856 = vpack.c.bf16 %v1751, %v1750
      %v1857 = vpack.c.bf16 %v1783, %v1782
      %v1858 = vpack.c.bf16 %v1815, %v1814
      %v1859 = vpack.c.bf16 %v1175, %v1174
      %v1860 = vpack.c.bf16 %v1721, %v1720
      %v1861 = vpack.c.bf16 %v1753, %v1752
      %v1862 = vpack.c.bf16 %v1785, %v1784
      %v1863 = vpack.c.bf16 %v1817, %v1816
      %v1864 = vpack.c.bf16 %v1177, %v1176
      %v1865 = vpack.c.bf16 %v1723, %v1722
      %v1866 = vpack.c.bf16 %v1755, %v1754
      %v1867 = vpack.c.bf16 %v1787, %v1786
      %v1868 = vpack.c.bf16 %v1819, %v1818
      %v1869 = vpack.c.bf16 %v1179, %v1178
      %v1870 = vpack.c.bf16 %v1725, %v1724
      %v1871 = vpack.c.bf16 %v1757, %v1756
      %v1872 = vpack.c.bf16 %v1789, %v1788
      %v1873 = vpack.c.bf16 %v1821, %v1820
      %v1874 = vpack.c.bf16 %v1181, %v1180
      %v1875 = vpack.c.bf16 %v1727, %v1726
      %v1876 = vpack.c.bf16 %v1759, %v1758
      %v1877 = vpack.c.bf16 %v1791, %v1790
      %v1878 = vpack.c.bf16 %v1823, %v1822
      %v1879 = vpack.c.bf16 %v1183, %v1182
      %v1880 = vpack.c.bf16 %v1729, %v1728
      %v1881 = vpack.c.bf16 %v1761, %v1760
      %v1882 = vpack.c.bf16 %v1793, %v1792
      %v1883 = vpack.c.bf16 %v1825, %v1824
      %v1884 = vpack.c.bf16 %v1185, %v1184
      %v1885 = vpack.c.bf16 %v1731, %v1730
      %v1886 = vpack.c.bf16 %v1763, %v1762
      %v1887 = vpack.c.bf16 %v1795, %v1794
      %v1888 = vpack.c.bf16 %v1827, %v1826
      %v1889 = vpack.c.bf16 %v1187, %v1186
      %v1890 = vpack.c.bf16 %v1733, %v1732
      %v1891 = vpack.c.bf16 %v1765, %v1764
      %v1892 = vpack.c.bf16 %v1797, %v1796
      %v1893 = vpack.c.bf16 %v1829, %v1828
      %v1894 = vpack.c.bf16 %v1189, %v1188
      %v1895 = vpack.c.bf16 %v1735, %v1734
      %v1896 = vpack.c.bf16 %v1767, %v1766
      %v1897 = vpack.c.bf16 %v1799, %v1798
      %v1898 = vpack.c.bf16 %v1831, %v1830
      %v1899 = vpack.c.bf16 %v1191, %v1190
      %v1900 = vpack.c.bf16 %v1737, %v1736
      %v1901 = vpack.c.bf16 %v1769, %v1768
      %v1902 = vpack.c.bf16 %v1801, %v1800
      %v1903 = vpack.c.bf16 %v1833, %v1832
      %v1904 = vpack.c.bf16 %v1193, %v1192
      %v1905 = vpack.c.bf16 %v1739, %v1738
      %v1906 = vpack.c.bf16 %v1771, %v1770
      %v1907 = vpack.c.bf16 %v1803, %v1802
      %v1908 = vpack.c.bf16 %v1835, %v1834
      %v1909 = vpack.c.bf16 %v1195, %v1194
      %v1910 = vpack.c.bf16 %v1741, %v1740
      %v1911 = vpack.c.bf16 %v1773, %v1772
      %v1912 = vpack.c.bf16 %v1805, %v1804
      %v1913 = vpack.c.bf16 %v1837, %v1836
      %v1914 = vpack.c.bf16 %v1197, %v1196
      %v1915 = vpack.c.bf16 %v1743, %v1742
      %v1916 = vpack.c.bf16 %v1775, %v1774
      %v1917 = vpack.c.bf16 %v1807, %v1806
      %v1918 = vpack.c.bf16 %v1839, %v1838
      %v1919 = vpack.c.bf16 %v1199, %v1198
      %v1920 = vld [vmem:[%s3] sm:$0xf]
      %v1921 = vld [vmem:[%s3 + $0x4] sm:$0xf]
      %v1922 = vld [vmem:[%s3 + $0x8] sm:$0xf]
      %v1923 = vld [vmem:[%s3 + $0xc] sm:$0xf]
      %v1924 = vld [vmem:[%s3 + $0x10] sm:$0xf]
      %v1925 = vld [vmem:[%s3 + $0x14] sm:$0xf]
      %v1926 = vld [vmem:[%s3 + $0x18] sm:$0xf]
      %v1927 = vld [vmem:[%s3 + $0x1c] sm:$0xf]
      %v1928 = vld [vmem:[%s3 + $0x20] sm:$0xf]
      %v1929 = vld [vmem:[%s3 + $0x24] sm:$0xf]
      %v1930 = vld [vmem:[%s3 + $0x28] sm:$0xf]
      %v1931 = vld [vmem:[%s3 + $0x2c] sm:$0xf]
      %v1932 = vld [vmem:[%s3 + $0x30] sm:$0xf]
      %v1933 = vld [vmem:[%s3 + $0x34] sm:$0xf]
      %v1934 = vld [vmem:[%s3 + $0x38] sm:$0xf]
      %v1935 = vld [vmem:[%s3 + $0x3c] sm:$0xf]
      %v1936 = vld [vmem:[%s3 + $0x40] sm:$0xf]
      %v1937 = vld [vmem:[%s3 + $0x44] sm:$0xf]
      %v1938 = vld [vmem:[%s3 + $0x48] sm:$0xf]
      %v1939 = vld [vmem:[%s3 + $0x4c] sm:$0xf]
      %v1940 = vld [vmem:[%s3 + $0x50] sm:$0xf]
      %v1941 = vld [vmem:[%s3 + $0x54] sm:$0xf]
      %v1942 = vld [vmem:[%s3 + $0x58] sm:$0xf]
      %v1943 = vld [vmem:[%s3 + $0x5c] sm:$0xf]
      %v1944 = vld [vmem:[%s3 + $0x60] sm:$0xf]
      %v1945 = vld [vmem:[%s3 + $0x64] sm:$0xf]
      %v1946 = vld [vmem:[%s3 + $0x68] sm:$0xf]
      %v1947 = vld [vmem:[%s3 + $0x6c] sm:$0xf]
      %v1948 = vld [vmem:[%s3 + $0x70] sm:$0xf]
      %v1949 = vld [vmem:[%s3 + $0x74] sm:$0xf]
      %v1950 = vld [vmem:[%s3 + $0x78] sm:$0xf]
      %v1951 = vld [vmem:[%s3 + $0x7c] sm:$0xf]
      %v1952 = vld [vmem:[%s3 + $0x80] sm:$0xf]
      %v1953 = vld [vmem:[%s3 + $0x84] sm:$0xf]
      %v1954 = vld [vmem:[%s3 + $0x88] sm:$0xf]
      %v1955 = vld [vmem:[%s3 + $0x8c] sm:$0xf]
      %v1956 = vld [vmem:[%s3 + $0x90] sm:$0xf]
      %v1957 = vld [vmem:[%s3 + $0x94] sm:$0xf]
      %v1958 = vld [vmem:[%s3 + $0x98] sm:$0xf]
      %v1959 = vld [vmem:[%s3 + $0x9c] sm:$0xf]
      %v1960 = vld [vmem:[%s3 + $0xa0] sm:$0xf]
      %v1961 = vld [vmem:[%s3 + $0xa4] sm:$0xf]
      %v1962 = vld [vmem:[%s3 + $0xa8] sm:$0xf]
      %v1963 = vld [vmem:[%s3 + $0xac] sm:$0xf]
      %v1964 = vld [vmem:[%s3 + $0xb0] sm:$0xf]
      %v1965 = vld [vmem:[%s3 + $0xb4] sm:$0xf]
      %v1966 = vld [vmem:[%s3 + $0xb8] sm:$0xf]
      %v1967 = vld [vmem:[%s3 + $0xbc] sm:$0xf]
      %v1968 = vld [vmem:[%s3 + $0xc0] sm:$0xf]
      %v1969 = vld [vmem:[%s3 + $0xc4] sm:$0xf]
      %v1970 = vld [vmem:[%s3 + $0xc8] sm:$0xf]
      %v1971 = vld [vmem:[%s3 + $0xcc] sm:$0xf]
      %v1972 = vld [vmem:[%s3 + $0xd0] sm:$0xf]
      %v1973 = vld [vmem:[%s3 + $0xd4] sm:$0xf]
      %v1974 = vld [vmem:[%s3 + $0xd8] sm:$0xf]
      %v1975 = vld [vmem:[%s3 + $0xdc] sm:$0xf]
      %v1976 = vld [vmem:[%s3 + $0xe0] sm:$0xf]
      %v1977 = vld [vmem:[%s3 + $0xe4] sm:$0xf]
      %v1978 = vld [vmem:[%s3 + $0xe8] sm:$0xf]
      %v1979 = vld [vmem:[%s3 + $0xec] sm:$0xf]
      %v1980 = vld [vmem:[%s3 + $0xf0] sm:$0xf]
      %v1981 = vld [vmem:[%s3 + $0xf4] sm:$0xf]
      %v1982 = vld [vmem:[%s3 + $0xf8] sm:$0xf]
      %v1983 = vld [vmem:[%s3 + $0xfc] sm:$0xf]
      %v1984 = vld [vmem:[%s3 + $0x100] sm:$0xf]
      %v1985 = vld [vmem:[%s3 + $0x104] sm:$0xf]
      %v1986 = vld [vmem:[%s3 + $0x108] sm:$0xf]
      %v1987 = vld [vmem:[%s3 + $0x10c] sm:$0xf]
      %v1988 = vld [vmem:[%s3 + $0x110] sm:$0xf]
      %v1989 = vld [vmem:[%s3 + $0x114] sm:$0xf]
      %v1990 = vld [vmem:[%s3 + $0x118] sm:$0xf]
      %v1991 = vld [vmem:[%s3 + $0x11c] sm:$0xf]
      %v1992 = vld [vmem:[%s4] sm:$0x1]
      %v1994 = vlaneseq
      %v1995 = vshrl.u32 %v1994, 7
      %v1996 = vsub.s32 0, %v1995
      %v1997 = vrot.slane %v1992, %v1996
      %v2071 = vunpack.c.l.b16 %v1920
      %v2072 = vunpack.c.l.b16 %v1921
      %v2073 = vunpack.c.l.b16 %v1922
      %v2074 = vunpack.c.l.b16 %v1923
      %v2075 = vunpack.c.l.b16 %v1924
      %v2076 = vunpack.c.l.b16 %v1925
      %v2077 = vunpack.c.l.b16 %v1926
      %v2078 = vunpack.c.l.b16 %v1927
      %v2079 = vunpack.c.l.b16 %v1928
      %v2080 = vunpack.c.l.b16 %v1929
      %v2081 = vunpack.c.l.b16 %v1930
      %v2082 = vunpack.c.l.b16 %v1931
      %v2083 = vunpack.c.l.b16 %v1932
      %v2084 = vunpack.c.l.b16 %v1933
      %v2085 = vunpack.c.l.b16 %v1934
      %v2086 = vunpack.c.l.b16 %v1935
      %v2087 = vunpack.c.l.b16 %v1936
      %v2088 = vunpack.c.l.b16 %v1937
      %v2089 = vunpack.c.l.b16 %v1938
      %v2090 = vunpack.c.l.b16 %v1939
      %v2091 = vunpack.c.l.b16 %v1940
      %v2092 = vunpack.c.l.b16 %v1941
      %v2093 = vunpack.c.l.b16 %v1942
      %v2094 = vunpack.c.l.b16 %v1943
      %v2095 = vunpack.c.l.b16 %v1944
      %v2096 = vunpack.c.l.b16 %v1945
      %v2097 = vunpack.c.l.b16 %v1946
      %v2098 = vunpack.c.l.b16 %v1947
      %v2099 = vunpack.c.l.b16 %v1948
      %v2100 = vunpack.c.l.b16 %v1949
      %v2101 = vunpack.c.l.b16 %v1950
      %v2102 = vunpack.c.l.b16 %v1951
      %v2103 = vunpack.c.l.b16 %v1952
      %v2104 = vunpack.c.l.b16 %v1953
      %v2105 = vunpack.c.l.b16 %v1954
      %v2106 = vunpack.c.l.b16 %v1955
      %v2107 = vunpack.c.l.b16 %v1956
      %v2108 = vunpack.c.l.b16 %v1957
      %v2109 = vunpack.c.l.b16 %v1958
      %v2110 = vunpack.c.l.b16 %v1959
      %v2111 = vunpack.c.l.b16 %v1960
      %v2112 = vunpack.c.l.b16 %v1961
      %v2113 = vunpack.c.l.b16 %v1962
      %v2114 = vunpack.c.l.b16 %v1963
      %v2115 = vunpack.c.l.b16 %v1964
      %v2116 = vunpack.c.l.b16 %v1965
      %v2117 = vunpack.c.l.b16 %v1966
      %v2118 = vunpack.c.l.b16 %v1967
      %v2119 = vunpack.c.l.b16 %v1968
      %v2120 = vunpack.c.l.b16 %v1969
      %v2121 = vunpack.c.l.b16 %v1970
      %v2122 = vunpack.c.l.b16 %v1971
      %v2123 = vunpack.c.l.b16 %v1972
      %v2124 = vunpack.c.l.b16 %v1973
      %v2125 = vunpack.c.l.b16 %v1974
      %v2126 = vunpack.c.l.b16 %v1975
      %v2127 = vunpack.c.l.b16 %v1976
      %v2128 = vunpack.c.l.b16 %v1977
      %v2129 = vunpack.c.l.b16 %v1978
      %v2130 = vunpack.c.l.b16 %v1979
      %v2131 = vunpack.c.l.b16 %v1980
      %v2132 = vunpack.c.l.b16 %v1981
      %v2133 = vunpack.c.l.b16 %v1982
      %v2134 = vunpack.c.l.b16 %v1983
      %v2135 = vunpack.c.l.b16 %v1984
      %v2136 = vunpack.c.l.b16 %v1985
      %v2137 = vunpack.c.l.b16 %v1986
      %v2138 = vunpack.c.l.b16 %v1987
      %v2139 = vunpack.c.l.b16 %v1988
      %v2140 = vunpack.c.l.b16 %v1989
      %v2141 = vunpack.c.l.b16 %v1990
      %v2142 = vunpack.c.l.b16 %v1991
      %v2143 = vpack.c.b16 %v2072, %v2071
      %v2144 = vpack.c.b16 %v2074, %v2073
      %v2145 = vpack.c.b16 %v2076, %v2075
      %v2146 = vpack.c.b16 %v2078, %v2077
      %v2147 = vpack.c.b16 %v2080, %v2079
      %v2148 = vpack.c.b16 %v2082, %v2081
      %v2149 = vpack.c.b16 %v2084, %v2083
      %v2150 = vpack.c.b16 %v2086, %v2085
      %v2151 = vpack.c.b16 %v2088, %v2087
      %v2152 = vpack.c.b16 %v2090, %v2089
      %v2153 = vpack.c.b16 %v2092, %v2091
      %v2154 = vpack.c.b16 %v2094, %v2093
      %v2155 = vpack.c.b16 %v2096, %v2095
      %v2156 = vpack.c.b16 %v2098, %v2097
      %v2157 = vpack.c.b16 %v2100, %v2099
      %v2158 = vpack.c.b16 %v2102, %v2101
      %v2159 = vpack.c.b16 %v2104, %v2103
      %v2160 = vpack.c.b16 %v2106, %v2105
      %v2161 = vpack.c.b16 %v2108, %v2107
      %v2162 = vpack.c.b16 %v2110, %v2109
      %v2163 = vpack.c.b16 %v2112, %v2111
      %v2164 = vpack.c.b16 %v2114, %v2113
      %v2165 = vpack.c.b16 %v2116, %v2115
      %v2166 = vpack.c.b16 %v2118, %v2117
      %v2167 = vpack.c.b16 %v2120, %v2119
      %v2168 = vpack.c.b16 %v2122, %v2121
      %v2169 = vpack.c.b16 %v2124, %v2123
      %v2170 = vpack.c.b16 %v2126, %v2125
      %v2171 = vpack.c.b16 %v2128, %v2127
      %v2172 = vpack.c.b16 %v2130, %v2129
      %v2173 = vpack.c.b16 %v2132, %v2131
      %v2174 = vpack.c.b16 %v2134, %v2133
      %v2175 = vpack.c.b16 %v2136, %v2135
      %v2176 = vpack.c.b16 %v2138, %v2137
      %v2177 = vpack.c.b16 %v2140, %v2139
      %v2178 = vpack.c.b16 %v2142, %v2141
      %v2216 = vsel %vm822, %v1844, 0
      %v2219 = vsel %vm822, %v1849, 0
      %v2222 = vsel %vm822, %v1854, 0
      %v2225 = vsel %vm822, %v1859, 0
      %v2228 = vsel %vm822, %v1864, 0
      %v2231 = vsel %vm822, %v1869, 0
      %v2234 = vsel %vm822, %v1874, 0
      %v2237 = vsel %vm822, %v1879, 0
      %v2240 = vsel %vm822, %v1884, 0
      %v2243 = vsel %vm822, %v1889, 0
      %v2246 = vsel %vm822, %v1894, 0
      %v2249 = vsel %vm822, %v1899, 0
      %v2252 = vsel %vm822, %v1904, 0
      %v2255 = vsel %vm822, %v1909, 0
      %v2258 = vsel %vm822, %v1914, 0
      %v2261 = vsel %vm822, %v1919, 0
      %2263 = vmatprep.subr.bf16.mxu0 0
      %2264 = vmatpush1.bf16.msra.mxu0 %v2150
      %2265 = vmatprep.subr.bf16.mxu0 0
      %2266 = vmatpush1.bf16.msra.mxu0 %v2149
      %2267 = vmatprep.subr.bf16.mxu0 0
      %2268 = vmatpush1.bf16.msra.mxu0 %v2148
      %2269 = vmatprep.subr.bf16.mxu0 0
      %2270 = vmatpush1.bf16.msra.mxu0 %v2147
      %2271 = vmatprep.subr.bf16.mxu0 0
      %2272 = vmatpush1.bf16.msra.mxu0 %v2146
      %2273 = vmatprep.subr.bf16.mxu0 0
      %2274 = vmatpush1.bf16.msra.mxu0 %v2145
      %2275 = vmatprep.subr.bf16.mxu0 0
      %2276 = vmatpush1.bf16.msra.mxu0 %v2144
      %2277 = vmatprep.subr.bf16.mxu0 0
      %2278 = vmatpush1.bf16.msra.mxu0 %v2143
      %2279 = vmatprep.subr.bf16.mxu0 0
      %2280 = vmatpush2.bf16.msra.mxu0 %v2158
      %2281 = vmatprep.subr.bf16.mxu0 0
      %2282 = vmatpush2.bf16.msra.mxu0 %v2157
      %2283 = vmatprep.subr.bf16.mxu0 0
      %2284 = vmatpush2.bf16.msra.mxu0 %v2156
      %2285 = vmatprep.subr.bf16.mxu0 0
      %2286 = vmatpush2.bf16.msra.mxu0 %v2155
      %2287 = vmatprep.subr.bf16.mxu0 0
      %2288 = vmatpush2.bf16.msra.mxu0 %v2154
      %2289 = vmatprep.subr.bf16.mxu0 0
      %2290 = vmatpush2.bf16.msra.mxu0 %v2153
      %2291 = vmatprep.subr.bf16.mxu0 0
      %2292 = vmatpush2.bf16.msra.mxu0 %v2152
      %2293 = vmatprep.subr.bf16.mxu0 0
      %2294 = vmatpush2.bf16.msra.mxu0 %v2151
      %2295 = vmatprep.mubr.bf16.mxu0 %v1841
      %2296 = vmatmul.mubr.bf16.gmra.mxu0 %v1840
      %v2297 = vpop.f32.mrf.mxu0
      %v2298 = vadd.f32 %v1997, %v2297
      %v2299 = vpop.f32.mrf.mxu0
      %v2300 = vpop.f32.mrf.mxu0
      %v2301 = vadd.f32 %v1997, %v2300
      %v2302 = vpop.f32.mrf.mxu0
      %2303 = vmatprep.mubr.bf16.mxu0 %v1846
      %2304 = vmatmul.mubr.bf16.gmra.mxu0 %v1845
      %v2305 = vpop.f32.mrf.mxu0
      %v2306 = vadd.f32 %v1997, %v2305
      %v2307 = vpop.f32.mrf.mxu0
      %v2308 = vpop.f32.mrf.mxu0
      %v2309 = vadd.f32 %v1997, %v2308
      %v2310 = vpop.f32.mrf.mxu0
      %2311 = vmatprep.mubr.bf16.mxu0 %v1851
      %2312 = vmatmul.mubr.bf16.gmra.mxu0 %v1850
      %v2313 = vpop.f32.mrf.mxu0
      %v2314 = vadd.f32 %v1997, %v2313
      %v2315 = vpop.f32.mrf.mxu0
      %v2316 = vpop.f32.mrf.mxu0
      %v2317 = vadd.f32 %v1997, %v2316
      %v2318 = vpop.f32.mrf.mxu0
      %2319 = vmatprep.mubr.bf16.mxu0 %v1856
      %2320 = vmatmul.mubr.bf16.gmra.mxu0 %v1855
      %v2321 = vpop.f32.mrf.mxu0
      %v2322 = vadd.f32 %v1997, %v2321
      %v2323 = vpop.f32.mrf.mxu0
      %v2324 = vpop.f32.mrf.mxu0
      %v2325 = vadd.f32 %v1997, %v2324
      %v2326 = vpop.f32.mrf.mxu0
      %2327 = vmatprep.mubr.bf16.mxu0 %v1861
      %2328 = vmatmul.mubr.bf16.gmra.mxu0 %v1860
      %v2329 = vpop.f32.mrf.mxu0
      %v2330 = vadd.f32 %v1997, %v2329
      %v2331 = vpop.f32.mrf.mxu0
      %v2332 = vpop.f32.mrf.mxu0
      %v2333 = vadd.f32 %v1997, %v2332
      %v2334 = vpop.f32.mrf.mxu0
      %2335 = vmatprep.mubr.bf16.mxu0 %v1866
      %2336 = vmatmul.mubr.bf16.gmra.mxu0 %v1865
      %v2337 = vpop.f32.mrf.mxu0
      %v2338 = vadd.f32 %v1997, %v2337
      %v2339 = vpop.f32.mrf.mxu0
      %v2340 = vpop.f32.mrf.mxu0
      %v2341 = vadd.f32 %v1997, %v2340
      %v2342 = vpop.f32.mrf.mxu0
      %2343 = vmatprep.mubr.bf16.mxu0 %v1871
      %2344 = vmatmul.mubr.bf16.gmra.mxu0 %v1870
      %v2345 = vpop.f32.mrf.mxu0
      %v2346 = vadd.f32 %v1997, %v2345
      %v2347 = vpop.f32.mrf.mxu0
      %v2348 = vpop.f32.mrf.mxu0
      %v2349 = vadd.f32 %v1997, %v2348
      %v2350 = vpop.f32.mrf.mxu0
      %2351 = vmatprep.mubr.bf16.mxu0 %v1876
      %2352 = vmatmul.mubr.bf16.gmra.mxu0 %v1875
      %v2353 = vpop.f32.mrf.mxu0
      %v2354 = vadd.f32 %v1997, %v2353
      %v2355 = vpop.f32.mrf.mxu0
      %v2356 = vpop.f32.mrf.mxu0
      %v2357 = vadd.f32 %v1997, %v2356
      %v2358 = vpop.f32.mrf.mxu0
      %2359 = vmatprep.mubr.bf16.mxu0 %v1881
      %2360 = vmatmul.mubr.bf16.gmra.mxu0 %v1880
      %v2361 = vpop.f32.mrf.mxu0
      %v2362 = vadd.f32 %v1997, %v2361
      %v2363 = vpop.f32.mrf.mxu0
      %v2364 = vpop.f32.mrf.mxu0
      %v2365 = vadd.f32 %v1997, %v2364
      %v2366 = vpop.f32.mrf.mxu0
      %2367 = vmatprep.mubr.bf16.mxu0 %v1886
      %2368 = vmatmul.mubr.bf16.gmra.mxu0 %v1885
      %v2369 = vpop.f32.mrf.mxu0
      %v2370 = vadd.f32 %v1997, %v2369
      %v2371 = vpop.f32.mrf.mxu0
      %v2372 = vpop.f32.mrf.mxu0
      %v2373 = vadd.f32 %v1997, %v2372
      %v2374 = vpop.f32.mrf.mxu0
      %2375 = vmatprep.mubr.bf16.mxu0 %v1891
      %2376 = vmatmul.mubr.bf16.gmra.mxu0 %v1890
      %v2377 = vpop.f32.mrf.mxu0
      %v2378 = vadd.f32 %v1997, %v2377
      %v2379 = vpop.f32.mrf.mxu0
      %v2380 = vpop.f32.mrf.mxu0
      %v2381 = vadd.f32 %v1997, %v2380
      %v2382 = vpop.f32.mrf.mxu0
      %2383 = vmatprep.mubr.bf16.mxu0 %v1896
      %2384 = vmatmul.mubr.bf16.gmra.mxu0 %v1895
      %v2385 = vpop.f32.mrf.mxu0
      %v2386 = vadd.f32 %v1997, %v2385
      %v2387 = vpop.f32.mrf.mxu0
      %v2388 = vpop.f32.mrf.mxu0
      %v2389 = vadd.f32 %v1997, %v2388
      %v2390 = vpop.f32.mrf.mxu0
      %2391 = vmatprep.mubr.bf16.mxu0 %v1901
      %2392 = vmatmul.mubr.bf16.gmra.mxu0 %v1900
      %v2393 = vpop.f32.mrf.mxu0
      %v2394 = vadd.f32 %v1997, %v2393
      %v2395 = vpop.f32.mrf.mxu0
      %v2396 = vpop.f32.mrf.mxu0
      %v2397 = vadd.f32 %v1997, %v2396
      %v2398 = vpop.f32.mrf.mxu0
      %2399 = vmatprep.mubr.bf16.mxu0 %v1906
      %2400 = vmatmul.mubr.bf16.gmra.mxu0 %v1905
      %v2401 = vpop.f32.mrf.mxu0
      %v2402 = vadd.f32 %v1997, %v2401
      %v2403 = vpop.f32.mrf.mxu0
      %v2404 = vpop.f32.mrf.mxu0
      %v2405 = vadd.f32 %v1997, %v2404
      %v2406 = vpop.f32.mrf.mxu0
      %2407 = vmatprep.mubr.bf16.mxu0 %v1911
      %2408 = vmatmul.mubr.bf16.gmra.mxu0 %v1910
      %v2409 = vpop.f32.mrf.mxu0
      %v2410 = vadd.f32 %v1997, %v2409
      %v2411 = vpop.f32.mrf.mxu0
      %v2412 = vpop.f32.mrf.mxu0
      %v2413 = vadd.f32 %v1997, %v2412
      %v2414 = vpop.f32.mrf.mxu0
      %2415 = vmatprep.mubr.bf16.mxu0 %v1916
      %2416 = vmatmul.mubr.bf16.gmra.mxu0 %v1915
      %v2417 = vpop.f32.mrf.mxu0
      %v2418 = vadd.f32 %v1997, %v2417
      %v2419 = vpop.f32.mrf.mxu0
      %v2420 = vpop.f32.mrf.mxu0
      %v2421 = vadd.f32 %v1997, %v2420
      %v2422 = vpop.f32.mrf.mxu0
      %2423 = vdwg.mxu0
      %2424 = vmatprep.subr.bf16.mxu0 0
      %2425 = vmatpush1.bf16.msra.mxu0 %v2166
      %2426 = vmatprep.subr.bf16.mxu0 0
      %2427 = vmatpush1.bf16.msra.mxu0 %v2165
      %2428 = vmatprep.subr.bf16.mxu0 0
      %2429 = vmatpush1.bf16.msra.mxu0 %v2164
      %2430 = vmatprep.subr.bf16.mxu0 0
      %2431 = vmatpush1.bf16.msra.mxu0 %v2163
      %2432 = vmatprep.subr.bf16.mxu0 0
      %2433 = vmatpush1.bf16.msra.mxu0 %v2162
      %2434 = vmatprep.subr.bf16.mxu0 0
      %2435 = vmatpush1.bf16.msra.mxu0 %v2161
      %2436 = vmatprep.subr.bf16.mxu0 0
      %2437 = vmatpush1.bf16.msra.mxu0 %v2160
      %2438 = vmatprep.subr.bf16.mxu0 0
      %2439 = vmatpush1.bf16.msra.mxu0 %v2159
      %2440 = vmatprep.subr.bf16.mxu0 0
      %2441 = vmatpush2.bf16.msra.mxu0 %v2174
      %2442 = vmatprep.subr.bf16.mxu0 0
      %2443 = vmatpush2.bf16.msra.mxu0 %v2173
      %2444 = vmatprep.subr.bf16.mxu0 0
      %2445 = vmatpush2.bf16.msra.mxu0 %v2172
      %2446 = vmatprep.subr.bf16.mxu0 0
      %2447 = vmatpush2.bf16.msra.mxu0 %v2171
      %2448 = vmatprep.subr.bf16.mxu0 0
      %2449 = vmatpush2.bf16.msra.mxu0 %v2170
      %2450 = vmatprep.subr.bf16.mxu0 0
      %2451 = vmatpush2.bf16.msra.mxu0 %v2169
      %2452 = vmatprep.subr.bf16.mxu0 0
      %2453 = vmatpush2.bf16.msra.mxu0 %v2168
      %2454 = vmatprep.subr.bf16.mxu0 0
      %2455 = vmatpush2.bf16.msra.mxu0 %v2167
      %2456 = vmatprep.mubr.bf16.mxu0 %v1843
      %2457 = vmatmul.mubr.bf16.gmra.mxu0 %v1842
      %v2458 = vpop.f32.mrf.mxu0
      %v2459 = vadd.f32 %v2298, %v2458
      %v2460 = vpop.f32.mrf.mxu0
      %v2461 = vpop.f32.mrf.mxu0
      %v2462 = vadd.f32 %v2301, %v2461
      %v2463 = vpop.f32.mrf.mxu0
      %2464 = vmatprep.mubr.bf16.mxu0 %v1848
      %2465 = vmatmul.mubr.bf16.gmra.mxu0 %v1847
      %v2466 = vpop.f32.mrf.mxu0
      %v2467 = vadd.f32 %v2306, %v2466
      %v2468 = vpop.f32.mrf.mxu0
      %v2469 = vpop.f32.mrf.mxu0
      %v2470 = vadd.f32 %v2309, %v2469
      %v2471 = vpop.f32.mrf.mxu0
      %2472 = vmatprep.mubr.bf16.mxu0 %v1853
      %2473 = vmatmul.mubr.bf16.gmra.mxu0 %v1852
      %v2474 = vpop.f32.mrf.mxu0
      %v2475 = vadd.f32 %v2314, %v2474
      %v2476 = vpop.f32.mrf.mxu0
      %v2477 = vpop.f32.mrf.mxu0
      %v2478 = vadd.f32 %v2317, %v2477
      %v2479 = vpop.f32.mrf.mxu0
      %2480 = vmatprep.mubr.bf16.mxu0 %v1858
      %2481 = vmatmul.mubr.bf16.gmra.mxu0 %v1857
      %v2482 = vpop.f32.mrf.mxu0
      %v2483 = vadd.f32 %v2322, %v2482
      %v2484 = vpop.f32.mrf.mxu0
      %v2485 = vpop.f32.mrf.mxu0
      %v2486 = vadd.f32 %v2325, %v2485
      %v2487 = vpop.f32.mrf.mxu0
      %2488 = vmatprep.mubr.bf16.mxu0 %v1863
      %2489 = vmatmul.mubr.bf16.gmra.mxu0 %v1862
      %v2490 = vpop.f32.mrf.mxu0
      %v2491 = vadd.f32 %v2330, %v2490
      %v2492 = vpop.f32.mrf.mxu0
      %v2493 = vpop.f32.mrf.mxu0
      %v2494 = vadd.f32 %v2333, %v2493
      %v2495 = vpop.f32.mrf.mxu0
      %2496 = vmatprep.mubr.bf16.mxu0 %v1868
      %2497 = vmatmul.mubr.bf16.gmra.mxu0 %v1867
      %v2498 = vpop.f32.mrf.mxu0
      %v2499 = vadd.f32 %v2338, %v2498
      %v2500 = vpop.f32.mrf.mxu0
      %v2501 = vpop.f32.mrf.mxu0
      %v2502 = vadd.f32 %v2341, %v2501
      %v2503 = vpop.f32.mrf.mxu0
      %2504 = vmatprep.mubr.bf16.mxu0 %v1873
      %2505 = vmatmul.mubr.bf16.gmra.mxu0 %v1872
      %v2506 = vpop.f32.mrf.mxu0
      %v2507 = vadd.f32 %v2346, %v2506
      %v2508 = vpop.f32.mrf.mxu0
      %v2509 = vpop.f32.mrf.mxu0
      %v2510 = vadd.f32 %v2349, %v2509
      %v2511 = vpop.f32.mrf.mxu0
      %2512 = vmatprep.mubr.bf16.mxu0 %v1878
      %2513 = vmatmul.mubr.bf16.gmra.mxu0 %v1877
      %v2514 = vpop.f32.mrf.mxu0
      %v2515 = vadd.f32 %v2354, %v2514
      %v2516 = vpop.f32.mrf.mxu0
      %v2517 = vpop.f32.mrf.mxu0
      %v2518 = vadd.f32 %v2357, %v2517
      %v2519 = vpop.f32.mrf.mxu0
      %2520 = vmatprep.mubr.bf16.mxu0 %v1883
      %2521 = vmatmul.mubr.bf16.gmra.mxu0 %v1882
      %v2522 = vpop.f32.mrf.mxu0
      %v2523 = vadd.f32 %v2362, %v2522
      %v2524 = vpop.f32.mrf.mxu0
      %v2525 = vpop.f32.mrf.mxu0
      %v2526 = vadd.f32 %v2365, %v2525
      %v2527 = vpop.f32.mrf.mxu0
      %2528 = vmatprep.mubr.bf16.mxu0 %v1888
      %2529 = vmatmul.mubr.bf16.gmra.mxu0 %v1887
      %v2530 = vpop.f32.mrf.mxu0
      %v2531 = vadd.f32 %v2370, %v2530
      %v2532 = vpop.f32.mrf.mxu0
      %v2533 = vpop.f32.mrf.mxu0
      %v2534 = vadd.f32 %v2373, %v2533
      %v2535 = vpop.f32.mrf.mxu0
      %2536 = vmatprep.mubr.bf16.mxu0 %v1893
      %2537 = vmatmul.mubr.bf16.gmra.mxu0 %v1892
      %v2538 = vpop.f32.mrf.mxu0
      %v2539 = vadd.f32 %v2378, %v2538
      %v2540 = vpop.f32.mrf.mxu0
      %v2541 = vpop.f32.mrf.mxu0
      %v2542 = vadd.f32 %v2381, %v2541
      %v2543 = vpop.f32.mrf.mxu0
      %2544 = vmatprep.mubr.bf16.mxu0 %v1898
      %2545 = vmatmul.mubr.bf16.gmra.mxu0 %v1897
      %v2546 = vpop.f32.mrf.mxu0
      %v2547 = vadd.f32 %v2386, %v2546
      %v2548 = vpop.f32.mrf.mxu0
      %v2549 = vpop.f32.mrf.mxu0
      %v2550 = vadd.f32 %v2389, %v2549
      %v2551 = vpop.f32.mrf.mxu0
      %2552 = vmatprep.mubr.bf16.mxu0 %v1903
      %2553 = vmatmul.mubr.bf16.gmra.mxu0 %v1902
      %v2554 = vpop.f32.mrf.mxu0
      %v2555 = vadd.f32 %v2394, %v2554
      %v2556 = vpop.f32.mrf.mxu0
      %v2557 = vpop.f32.mrf.mxu0
      %v2558 = vadd.f32 %v2397, %v2557
      %v2559 = vpop.f32.mrf.mxu0
      %2560 = vmatprep.mubr.bf16.mxu0 %v1908
      %2561 = vmatmul.mubr.bf16.gmra.mxu0 %v1907
      %v2562 = vpop.f32.mrf.mxu0
      %v2563 = vadd.f32 %v2402, %v2562
      %v2564 = vpop.f32.mrf.mxu0
      %v2565 = vpop.f32.mrf.mxu0
      %v2566 = vadd.f32 %v2405, %v2565
      %v2567 = vpop.f32.mrf.mxu0
      %2568 = vmatprep.mubr.bf16.mxu0 %v1913
      %2569 = vmatmul.mubr.bf16.gmra.mxu0 %v1912
      %v2570 = vpop.f32.mrf.mxu0
      %v2571 = vadd.f32 %v2410, %v2570
      %v2572 = vpop.f32.mrf.mxu0
      %v2573 = vpop.f32.mrf.mxu0
      %v2574 = vadd.f32 %v2413, %v2573
      %v2575 = vpop.f32.mrf.mxu0
      %2576 = vmatprep.mubr.bf16.mxu0 %v1918
      %2577 = vmatmul.mubr.bf16.gmra.mxu0 %v1917
      %v2578 = vpop.f32.mrf.mxu0
      %v2579 = vadd.f32 %v2418, %v2578
      %v2580 = vpop.f32.mrf.mxu0
      %v2581 = vpop.f32.mrf.mxu0
      %v2582 = vadd.f32 %v2421, %v2581
      %v2583 = vpop.f32.mrf.mxu0
      %2584 = vdwg.mxu0
      %2585 = vmatprep.subr.bf16.mxu0 0
      %2586 = vmatpush1.bf16.msra.mxu0 0
      %2587 = vmatprep.subr.bf16.mxu0 0
      %2588 = vmatpush1.bf16.msra.mxu0 0
      %2589 = vmatprep.subr.bf16.mxu0 0
      %2590 = vmatpush1.bf16.msra.mxu0 0
      %2591 = vmatprep.subr.bf16.mxu0 0
      %2592 = vmatpush1.bf16.msra.mxu0 0
      %2593 = vmatprep.subr.bf16.mxu0 0
      %2594 = vmatpush1.bf16.msra.mxu0 %v2178
      %2595 = vmatprep.subr.bf16.mxu0 0
      %2596 = vmatpush1.bf16.msra.mxu0 %v2177
      %2597 = vmatprep.subr.bf16.mxu0 0
      %2598 = vmatpush1.bf16.msra.mxu0 %v2176
      %2599 = vmatprep.subr.bf16.mxu0 0
      %2600 = vmatpush1.bf16.msra.mxu0 %v2175
      %2601 = vmatprep.subr.bf16.mxu0 0
      %2602 = vmatpush2.bf16.msra.mxu0 0
      %2603 = vmatprep.subr.bf16.mxu0 0
      %2604 = vmatpush2.bf16.msra.mxu0 0
      %2605 = vmatprep.subr.bf16.mxu0 0
      %2606 = vmatpush2.bf16.msra.mxu0 0
      %2607 = vmatprep.subr.bf16.mxu0 0
      %2608 = vmatpush2.bf16.msra.mxu0 0
      %2609 = vmatprep.subr.bf16.mxu0 0
      %2610 = vmatpush2.bf16.msra.mxu0 0
      %2611 = vmatprep.subr.bf16.mxu0 0
      %2612 = vmatpush2.bf16.msra.mxu0 0
      %2613 = vmatprep.subr.bf16.mxu0 0
      %2614 = vmatpush2.bf16.msra.mxu0 0
      %2615 = vmatprep.subr.bf16.mxu0 0
      %2616 = vmatpush2.bf16.msra.mxu0 0
      %2617 = vmatprep.mubr.bf16.mxu0 0
      %2618 = vmatmul.mubr.bf16.gmra.mxu0 %v2216
      %v2619 = vpop.f32.mrf.mxu0
      %v2620 = vadd.f32 %v2459, %v2619
      %v2621 = vpop.f32.mrf.mxu0
      %v2622 = vpop.f32.mrf.mxu0
      %v2623 = vadd.f32 %v2462, %v2622
      %v2624 = vpop.f32.mrf.mxu0
      %2625 = vmatprep.mubr.bf16.mxu0 0
      %2626 = vmatmul.mubr.bf16.gmra.mxu0 %v2219
      %v2627 = vpop.f32.mrf.mxu0
      %v2628 = vadd.f32 %v2467, %v2627
      %v2629 = vpop.f32.mrf.mxu0
      %v2630 = vpop.f32.mrf.mxu0
      %v2631 = vadd.f32 %v2470, %v2630
      %v2632 = vpop.f32.mrf.mxu0
      %2633 = vmatprep.mubr.bf16.mxu0 0
      %2634 = vmatmul.mubr.bf16.gmra.mxu0 %v2222
      %v2635 = vpop.f32.mrf.mxu0
      %v2636 = vadd.f32 %v2475, %v2635
      %v2637 = vpop.f32.mrf.mxu0
      %v2638 = vpop.f32.mrf.mxu0
      %v2639 = vadd.f32 %v2478, %v2638
      %v2640 = vpop.f32.mrf.mxu0
      %2641 = vmatprep.mubr.bf16.mxu0 0
      %2642 = vmatmul.mubr.bf16.gmra.mxu0 %v2225
      %v2643 = vpop.f32.mrf.mxu0
      %v2644 = vadd.f32 %v2483, %v2643
      %v2645 = vpop.f32.mrf.mxu0
      %v2646 = vpop.f32.mrf.mxu0
      %v2647 = vadd.f32 %v2486, %v2646
      %v2648 = vpop.f32.mrf.mxu0
      %2649 = vmatprep.mubr.bf16.mxu0 0
      %2650 = vmatmul.mubr.bf16.gmra.mxu0 %v2228
      %v2651 = vpop.f32.mrf.mxu0
      %v2652 = vadd.f32 %v2491, %v2651
      %v2653 = vpop.f32.mrf.mxu0
      %v2654 = vpop.f32.mrf.mxu0
      %v2655 = vadd.f32 %v2494, %v2654
      %v2656 = vpop.f32.mrf.mxu0
      %2657 = vmatprep.mubr.bf16.mxu0 0
      %2658 = vmatmul.mubr.bf16.gmra.mxu0 %v2231
      %v2659 = vpop.f32.mrf.mxu0
      %v2660 = vadd.f32 %v2499, %v2659
      %v2661 = vpop.f32.mrf.mxu0
      %v2662 = vpop.f32.mrf.mxu0
      %v2663 = vadd.f32 %v2502, %v2662
      %v2664 = vpop.f32.mrf.mxu0
      %2665 = vmatprep.mubr.bf16.mxu0 0
      %2666 = vmatmul.mubr.bf16.gmra.mxu0 %v2234
      %v2667 = vpop.f32.mrf.mxu0
      %v2668 = vadd.f32 %v2507, %v2667
      %v2669 = vpop.f32.mrf.mxu0
      %v2670 = vpop.f32.mrf.mxu0
      %v2671 = vadd.f32 %v2510, %v2670
      %v2672 = vpop.f32.mrf.mxu0
      %2673 = vmatprep.mubr.bf16.mxu0 0
      %2674 = vmatmul.mubr.bf16.gmra.mxu0 %v2237
      %v2675 = vpop.f32.mrf.mxu0
      %v2676 = vadd.f32 %v2515, %v2675
      %v2677 = vpop.f32.mrf.mxu0
      %v2678 = vpop.f32.mrf.mxu0
      %v2679 = vadd.f32 %v2518, %v2678
      %v2680 = vpop.f32.mrf.mxu0
      %2681 = vmatprep.mubr.bf16.mxu0 0
      %2682 = vmatmul.mubr.bf16.gmra.mxu0 %v2240
      %v2683 = vpop.f32.mrf.mxu0
      %v2684 = vadd.f32 %v2523, %v2683
      %v2685 = vpop.f32.mrf.mxu0
      %v2686 = vpop.f32.mrf.mxu0
      %v2687 = vadd.f32 %v2526, %v2686
      %v2688 = vpop.f32.mrf.mxu0
      %2689 = vmatprep.mubr.bf16.mxu0 0
      %2690 = vmatmul.mubr.bf16.gmra.mxu0 %v2243
      %v2691 = vpop.f32.mrf.mxu0
      %v2692 = vadd.f32 %v2531, %v2691
      %v2693 = vpop.f32.mrf.mxu0
      %v2694 = vpop.f32.mrf.mxu0
      %v2695 = vadd.f32 %v2534, %v2694
      %v2696 = vpop.f32.mrf.mxu0
      %2697 = vmatprep.mubr.bf16.mxu0 0
      %2698 = vmatmul.mubr.bf16.gmra.mxu0 %v2246
      %v2699 = vpop.f32.mrf.mxu0
      %v2700 = vadd.f32 %v2539, %v2699
      %v2701 = vpop.f32.mrf.mxu0
      %v2702 = vpop.f32.mrf.mxu0
      %v2703 = vadd.f32 %v2542, %v2702
      %v2704 = vpop.f32.mrf.mxu0
      %2705 = vmatprep.mubr.bf16.mxu0 0
      %2706 = vmatmul.mubr.bf16.gmra.mxu0 %v2249
      %v2707 = vpop.f32.mrf.mxu0
      %v2708 = vadd.f32 %v2547, %v2707
      %v2709 = vpop.f32.mrf.mxu0
      %v2710 = vpop.f32.mrf.mxu0
      %v2711 = vadd.f32 %v2550, %v2710
      %v2712 = vpop.f32.mrf.mxu0
      %2713 = vmatprep.mubr.bf16.mxu0 0
      %2714 = vmatmul.mubr.bf16.gmra.mxu0 %v2252
      %v2715 = vpop.f32.mrf.mxu0
      %v2716 = vadd.f32 %v2555, %v2715
      %v2717 = vpop.f32.mrf.mxu0
      %v2718 = vpop.f32.mrf.mxu0
      %v2719 = vadd.f32 %v2558, %v2718
      %v2720 = vpop.f32.mrf.mxu0
      %2721 = vmatprep.mubr.bf16.mxu0 0
      %2722 = vmatmul.mubr.bf16.gmra.mxu0 %v2255
      %v2723 = vpop.f32.mrf.mxu0
      %v2724 = vadd.f32 %v2563, %v2723
      %v2725 = vpop.f32.mrf.mxu0
      %v2726 = vpop.f32.mrf.mxu0
      %v2727 = vadd.f32 %v2566, %v2726
      %v2728 = vpop.f32.mrf.mxu0
      %2729 = vmatprep.mubr.bf16.mxu0 0
      %2730 = vmatmul.mubr.bf16.gmra.mxu0 %v2258
      %v2731 = vpop.f32.mrf.mxu0
      %v2732 = vadd.f32 %v2571, %v2731
      %v2733 = vpop.f32.mrf.mxu0
      %v2734 = vpop.f32.mrf.mxu0
      %v2735 = vadd.f32 %v2574, %v2734
      %v2736 = vpop.f32.mrf.mxu0
      %2737 = vmatprep.mubr.bf16.mxu0 0
      %2738 = vmatmul.mubr.bf16.gmra.mxu0 %v2261
      %v2739 = vpop.f32.mrf.mxu0
      %v2740 = vadd.f32 %v2579, %v2739
      %v2741 = vpop.f32.mrf.mxu0
      %v2742 = vpop.f32.mrf.mxu0
      %v2743 = vadd.f32 %v2582, %v2742
      %v2744 = vpop.f32.mrf.mxu0
      %2745 = vdwg.mxu0
      %v2746 = vmax.f32 %v2620, 0.0
      %v2747 = vmax.f32 %v2623, 0.0
      %v2748 = vmax.f32 %v2628, 0.0
      %v2749 = vmax.f32 %v2631, 0.0
      %v2750 = vmax.f32 %v2636, 0.0
      %v2751 = vmax.f32 %v2639, 0.0
      %v2752 = vmax.f32 %v2644, 0.0
      %v2753 = vmax.f32 %v2647, 0.0
      %v2754 = vmax.f32 %v2652, 0.0
      %v2755 = vmax.f32 %v2655, 0.0
      %v2756 = vmax.f32 %v2660, 0.0
      %v2757 = vmax.f32 %v2663, 0.0
      %v2758 = vmax.f32 %v2668, 0.0
      %v2759 = vmax.f32 %v2671, 0.0
      %v2760 = vmax.f32 %v2676, 0.0
      %v2761 = vmax.f32 %v2679, 0.0
      %v2762 = vmax.f32 %v2684, 0.0
      %v2763 = vmax.f32 %v2687, 0.0
      %v2764 = vmax.f32 %v2692, 0.0
      %v2765 = vmax.f32 %v2695, 0.0
      %v2766 = vmax.f32 %v2700, 0.0
      %v2767 = vmax.f32 %v2703, 0.0
      %v2768 = vmax.f32 %v2708, 0.0
      %v2769 = vmax.f32 %v2711, 0.0
      %v2770 = vmax.f32 %v2716, 0.0
      %v2771 = vmax.f32 %v2719, 0.0
      %v2772 = vmax.f32 %v2724, 0.0
      %v2773 = vmax.f32 %v2727, 0.0
      %v2774 = vmax.f32 %v2732, 0.0
      %v2775 = vmax.f32 %v2735, 0.0
      %v2776 = vmax.f32 %v2740, 0.0
      %v2777 = vmax.f32 %v2743, 0.0
      %v2778 = vpack.c.bf16 %v2747, %v2746
      %v2779 = vpack.c.bf16 %v2749, %v2748
      %v2780 = vpack.c.bf16 %v2751, %v2750
      %v2781 = vpack.c.bf16 %v2753, %v2752
      %v2782 = vpack.c.bf16 %v2755, %v2754
      %v2783 = vpack.c.bf16 %v2757, %v2756
      %v2784 = vpack.c.bf16 %v2759, %v2758
      %v2785 = vpack.c.bf16 %v2761, %v2760
      %v2786 = vpack.c.bf16 %v2763, %v2762
      %v2787 = vpack.c.bf16 %v2765, %v2764
      %v2788 = vpack.c.bf16 %v2767, %v2766
      %v2789 = vpack.c.bf16 %v2769, %v2768
      %v2790 = vpack.c.bf16 %v2771, %v2770
      %v2791 = vpack.c.bf16 %v2773, %v2772
      %v2792 = vpack.c.bf16 %v2775, %v2774
      %v2793 = vpack.c.bf16 %v2777, %v2776
      %v2794 = vld [vmem:[%s5] sm:$0xff]
      %v2795 = vld [vmem:[%s5 + $0x8] sm:$0xff]
      %v2796 = vld [vmem:[%s5 + $0x10] sm:$0xff]
      %v2797 = vld [vmem:[%s5 + $0x18] sm:$0xff]
      %v2798 = vld [vmem:[%s5 + $0x20] sm:$0xff]
      %v2799 = vld [vmem:[%s5 + $0x28] sm:$0xff]
      %v2800 = vld [vmem:[%s5 + $0x30] sm:$0xff]
      %v2801 = vld [vmem:[%s5 + $0x38] sm:$0xff]
      %v2802 = vld [vmem:[%s6] sm:$0x3]
      %v2804 = vlaneseq
      %v2805 = vshrl.u32 %v2804, 7
      %v2806 = vsub.s32 0, %v2805
      %v2807 = vrot.slane %v2802, %v2806
      %v2808 = vlaneseq
      %v2809 = vshrl.u32 %v2808, 7
      %v2810 = vsub.s32 1, %v2809
      %v2811 = vrot.slane %v2802, %v2810
      %v2822 = vunpack.c.l.b16 %v2794
      %v2823 = vunpack.c.h.b16 %v2794
      %v2824 = vunpack.c.l.b16 %v2795
      %v2825 = vunpack.c.h.b16 %v2795
      %v2826 = vunpack.c.l.b16 %v2796
      %v2827 = vunpack.c.h.b16 %v2796
      %v2828 = vunpack.c.l.b16 %v2797
      %v2829 = vunpack.c.h.b16 %v2797
      %v2830 = vunpack.c.l.b16 %v2798
      %v2831 = vunpack.c.h.b16 %v2798
      %v2832 = vunpack.c.l.b16 %v2799
      %v2833 = vunpack.c.h.b16 %v2799
      %v2834 = vunpack.c.l.b16 %v2800
      %v2835 = vunpack.c.h.b16 %v2800
      %v2836 = vunpack.c.l.b16 %v2801
      %v2837 = vunpack.c.h.b16 %v2801
      %v2838 = vpack.c.b16 %v2824, %v2822
      %v2839 = vpack.c.b16 %v2825, %v2823
      %v2840 = vpack.c.b16 %v2828, %v2826
      %v2841 = vpack.c.b16 %v2829, %v2827
      %v2842 = vpack.c.b16 %v2832, %v2830
      %v2843 = vpack.c.b16 %v2833, %v2831
      %v2844 = vpack.c.b16 %v2836, %v2834
      %v2845 = vpack.c.b16 %v2837, %v2835
      %v2855 = vsel %vm822, %v2778, 0
      %v2858 = vsel %vm822, %v2779, 0
      %v2861 = vsel %vm822, %v2780, 0
      %v2864 = vsel %vm822, %v2781, 0
      %v2867 = vsel %vm822, %v2782, 0
      %v2870 = vsel %vm822, %v2783, 0
      %v2873 = vsel %vm822, %v2784, 0
      %v2876 = vsel %vm822, %v2785, 0
      %v2879 = vsel %vm822, %v2786, 0
      %v2882 = vsel %vm822, %v2787, 0
      %v2885 = vsel %vm822, %v2788, 0
      %v2888 = vsel %vm822, %v2789, 0
      %v2891 = vsel %vm822, %v2790, 0
      %v2894 = vsel %vm822, %v2791, 0
      %v2897 = vsel %vm822, %v2792, 0
      %v2900 = vsel %vm822, %v2793, 0
      %2902 = vmatprep.subr.bf16.mxu0 0
      %2903 = vmatpush1.bf16.msra.mxu0 0
      %2904 = vmatprep.subr.bf16.mxu0 0
      %2905 = vmatpush1.bf16.msra.mxu0 0
      %2906 = vmatprep.subr.bf16.mxu0 0
      %2907 = vmatpush1.bf16.msra.mxu0 0
      %2908 = vmatprep.subr.bf16.mxu0 0
      %2909 = vmatpush1.bf16.msra.mxu0 0
      %2910 = vmatprep.subr.bf16.mxu0 %v2845
      %2911 = vmatpush1.bf16.msra.mxu0 %v2844
      %2912 = vmatprep.subr.bf16.mxu0 %v2843
      %2913 = vmatpush1.bf16.msra.mxu0 %v2842
      %2914 = vmatprep.subr.bf16.mxu0 %v2841
      %2915 = vmatpush1.bf16.msra.mxu0 %v2840
      %2916 = vmatprep.subr.bf16.mxu0 %v2839
      %2917 = vmatpush1.bf16.msra.mxu0 %v2838
      %2918 = vmatprep.subr.bf16.mxu0 0
      %2919 = vmatpush2.bf16.msra.mxu0 0
      %2920 = vmatprep.subr.bf16.mxu0 0
      %2921 = vmatpush2.bf16.msra.mxu0 0
      %2922 = vmatprep.subr.bf16.mxu0 0
      %2923 = vmatpush2.bf16.msra.mxu0 0
      %2924 = vmatprep.subr.bf16.mxu0 0
      %2925 = vmatpush2.bf16.msra.mxu0 0
      %2926 = vmatprep.subr.bf16.mxu0 0
      %2927 = vmatpush2.bf16.msra.mxu0 0
      %2928 = vmatprep.subr.bf16.mxu0 0
      %2929 = vmatpush2.bf16.msra.mxu0 0
      %2930 = vmatprep.subr.bf16.mxu0 0
      %2931 = vmatpush2.bf16.msra.mxu0 0
      %2932 = vmatprep.subr.bf16.mxu0 0
      %2933 = vmatpush2.bf16.msra.mxu0 0
      %2934 = vmatprep.mubr.bf16.mxu0 0
      %2935 = vmatmul.mubr.bf16.gmra.mxu0 %v2855
      %v2936 = vpop.f32.mrf.mxu0
      %v2937 = vadd.f32 %v2807, %v2936
      %v2938 = vpop.f32.mrf.mxu0
      %v2939 = vadd.f32 %v2811, %v2938
      %v2940 = vpop.f32.mrf.mxu0
      %v2941 = vadd.f32 %v2807, %v2940
      %v2942 = vpop.f32.mrf.mxu0
      %v2943 = vadd.f32 %v2811, %v2942
      %2944 = vmatprep.mubr.bf16.mxu0 0
      %2945 = vmatmul.mubr.bf16.gmra.mxu0 %v2858
      %v2946 = vpop.f32.mrf.mxu0
      %v2947 = vadd.f32 %v2807, %v2946
      %v2948 = vpop.f32.mrf.mxu0
      %v2949 = vadd.f32 %v2811, %v2948
      %v2950 = vpop.f32.mrf.mxu0
      %v2951 = vadd.f32 %v2807, %v2950
      %v2952 = vpop.f32.mrf.mxu0
      %v2953 = vadd.f32 %v2811, %v2952
      %2954 = vmatprep.mubr.bf16.mxu0 0
      %2955 = vmatmul.mubr.bf16.gmra.mxu0 %v2861
      %v2956 = vpop.f32.mrf.mxu0
      %v2957 = vadd.f32 %v2807, %v2956
      %v2958 = vpop.f32.mrf.mxu0
      %v2959 = vadd.f32 %v2811, %v2958
      %v2960 = vpop.f32.mrf.mxu0
      %v2961 = vadd.f32 %v2807, %v2960
      %v2962 = vpop.f32.mrf.mxu0
      %v2963 = vadd.f32 %v2811, %v2962
      %2964 = vmatprep.mubr.bf16.mxu0 0
      %2965 = vmatmul.mubr.bf16.gmra.mxu0 %v2864
      %v2966 = vpop.f32.mrf.mxu0
      %v2967 = vadd.f32 %v2807, %v2966
      %v2968 = vpop.f32.mrf.mxu0
      %v2969 = vadd.f32 %v2811, %v2968
      %v2970 = vpop.f32.mrf.mxu0
      %v2971 = vadd.f32 %v2807, %v2970
      %v2972 = vpop.f32.mrf.mxu0
      %v2973 = vadd.f32 %v2811, %v2972
      %2974 = vmatprep.mubr.bf16.mxu0 0
      %2975 = vmatmul.mubr.bf16.gmra.mxu0 %v2867
      %v2976 = vpop.f32.mrf.mxu0
      %v2977 = vadd.f32 %v2807, %v2976
      %v2978 = vpop.f32.mrf.mxu0
      %v2979 = vadd.f32 %v2811, %v2978
      %v2980 = vpop.f32.mrf.mxu0
      %v2981 = vadd.f32 %v2807, %v2980
      %v2982 = vpop.f32.mrf.mxu0
      %v2983 = vadd.f32 %v2811, %v2982
      %2984 = vmatprep.mubr.bf16.mxu0 0
      %2985 = vmatmul.mubr.bf16.gmra.mxu0 %v2870
      %v2986 = vpop.f32.mrf.mxu0
      %v2987 = vadd.f32 %v2807, %v2986
      %v2988 = vpop.f32.mrf.mxu0
      %v2989 = vadd.f32 %v2811, %v2988
      %v2990 = vpop.f32.mrf.mxu0
      %v2991 = vadd.f32 %v2807, %v2990
      %v2992 = vpop.f32.mrf.mxu0
      %v2993 = vadd.f32 %v2811, %v2992
      %2994 = vmatprep.mubr.bf16.mxu0 0
      %2995 = vmatmul.mubr.bf16.gmra.mxu0 %v2873
      %v2996 = vpop.f32.mrf.mxu0
      %v2997 = vadd.f32 %v2807, %v2996
      %v2998 = vpop.f32.mrf.mxu0
      %v2999 = vadd.f32 %v2811, %v2998
      %v3000 = vpop.f32.mrf.mxu0
      %v3001 = vadd.f32 %v2807, %v3000
      %v3002 = vpop.f32.mrf.mxu0
      %v3003 = vadd.f32 %v2811, %v3002
      %3004 = vmatprep.mubr.bf16.mxu0 0
      %3005 = vmatmul.mubr.bf16.gmra.mxu0 %v2876
      %v3006 = vpop.f32.mrf.mxu0
      %v3007 = vadd.f32 %v2807, %v3006
      %v3008 = vpop.f32.mrf.mxu0
      %v3009 = vadd.f32 %v2811, %v3008
      %v3010 = vpop.f32.mrf.mxu0
      %v3011 = vadd.f32 %v2807, %v3010
      %v3012 = vpop.f32.mrf.mxu0
      %v3013 = vadd.f32 %v2811, %v3012
      %3014 = vmatprep.mubr.bf16.mxu0 0
      %3015 = vmatmul.mubr.bf16.gmra.mxu0 %v2879
      %v3016 = vpop.f32.mrf.mxu0
      %v3017 = vadd.f32 %v2807, %v3016
      %v3018 = vpop.f32.mrf.mxu0
      %v3019 = vadd.f32 %v2811, %v3018
      %v3020 = vpop.f32.mrf.mxu0
      %v3021 = vadd.f32 %v2807, %v3020
      %v3022 = vpop.f32.mrf.mxu0
      %v3023 = vadd.f32 %v2811, %v3022
      %3024 = vmatprep.mubr.bf16.mxu0 0
      %3025 = vmatmul.mubr.bf16.gmra.mxu0 %v2882
      %v3026 = vpop.f32.mrf.mxu0
      %v3027 = vadd.f32 %v2807, %v3026
      %v3028 = vpop.f32.mrf.mxu0
      %v3029 = vadd.f32 %v2811, %v3028
      %v3030 = vpop.f32.mrf.mxu0
      %v3031 = vadd.f32 %v2807, %v3030
      %v3032 = vpop.f32.mrf.mxu0
      %v3033 = vadd.f32 %v2811, %v3032
      %3034 = vmatprep.mubr.bf16.mxu0 0
      %3035 = vmatmul.mubr.bf16.gmra.mxu0 %v2885
      %v3036 = vpop.f32.mrf.mxu0
      %v3037 = vadd.f32 %v2807, %v3036
      %v3038 = vpop.f32.mrf.mxu0
      %v3039 = vadd.f32 %v2811, %v3038
      %v3040 = vpop.f32.mrf.mxu0
      %v3041 = vadd.f32 %v2807, %v3040
      %v3042 = vpop.f32.mrf.mxu0
      %v3043 = vadd.f32 %v2811, %v3042
      %3044 = vmatprep.mubr.bf16.mxu0 0
      %3045 = vmatmul.mubr.bf16.gmra.mxu0 %v2888
      %v3046 = vpop.f32.mrf.mxu0
      %v3047 = vadd.f32 %v2807, %v3046
      %v3048 = vpop.f32.mrf.mxu0
      %v3049 = vadd.f32 %v2811, %v3048
      %v3050 = vpop.f32.mrf.mxu0
      %v3051 = vadd.f32 %v2807, %v3050
      %v3052 = vpop.f32.mrf.mxu0
      %v3053 = vadd.f32 %v2811, %v3052
      %3054 = vmatprep.mubr.bf16.mxu0 0
      %3055 = vmatmul.mubr.bf16.gmra.mxu0 %v2891
      %v3056 = vpop.f32.mrf.mxu0
      %v3057 = vadd.f32 %v2807, %v3056
      %v3058 = vpop.f32.mrf.mxu0
      %v3059 = vadd.f32 %v2811, %v3058
      %v3060 = vpop.f32.mrf.mxu0
      %v3061 = vadd.f32 %v2807, %v3060
      %v3062 = vpop.f32.mrf.mxu0
      %v3063 = vadd.f32 %v2811, %v3062
      %3064 = vmatprep.mubr.bf16.mxu0 0
      %3065 = vmatmul.mubr.bf16.gmra.mxu0 %v2894
      %v3066 = vpop.f32.mrf.mxu0
      %v3067 = vadd.f32 %v2807, %v3066
      %v3068 = vpop.f32.mrf.mxu0
      %v3069 = vadd.f32 %v2811, %v3068
      %v3070 = vpop.f32.mrf.mxu0
      %v3071 = vadd.f32 %v2807, %v3070
      %v3072 = vpop.f32.mrf.mxu0
      %v3073 = vadd.f32 %v2811, %v3072
      %3074 = vmatprep.mubr.bf16.mxu0 0
      %3075 = vmatmul.mubr.bf16.gmra.mxu0 %v2897
      %v3076 = vpop.f32.mrf.mxu0
      %v3077 = vadd.f32 %v2807, %v3076
      %v3078 = vpop.f32.mrf.mxu0
      %v3079 = vadd.f32 %v2811, %v3078
      %v3080 = vpop.f32.mrf.mxu0
      %v3081 = vadd.f32 %v2807, %v3080
      %v3082 = vpop.f32.mrf.mxu0
      %v3083 = vadd.f32 %v2811, %v3082
      %3084 = vmatprep.mubr.bf16.mxu0 0
      %3085 = vmatmul.mubr.bf16.gmra.mxu0 %v2900
      %v3086 = vpop.f32.mrf.mxu0
      %v3087 = vadd.f32 %v2807, %v3086
      %v3088 = vpop.f32.mrf.mxu0
      %v3089 = vadd.f32 %v2811, %v3088
      %v3090 = vpop.f32.mrf.mxu0
      %v3091 = vadd.f32 %v2807, %v3090
      %v3092 = vpop.f32.mrf.mxu0
      %v3093 = vadd.f32 %v2811, %v3092
      %3094 = vdwg.mxu0
      %v3095 = vadd.f32 %v2937, %v2941
      %v3096 = vadd.f32 %v3095, %v2947
      %v3097 = vadd.f32 %v3096, %v2951
      %v3098 = vadd.f32 %v3097, %v2957
      %v3099 = vadd.f32 %v3098, %v2961
      %v3100 = vadd.f32 %v3099, %v2967
      %v3101 = vadd.f32 %v3100, %v2971
      %v3102 = vadd.f32 %v3101, %v2977
      %v3103 = vadd.f32 %v3102, %v2981
      %v3104 = vadd.f32 %v3103, %v2987
      %v3105 = vadd.f32 %v3104, %v2991
      %v3106 = vadd.f32 %v3105, %v2997
      %v3107 = vadd.f32 %v3106, %v3001
      %v3108 = vadd.f32 %v3107, %v3007
      %v3109 = vadd.f32 %v3108, %v3011
      %v3110 = vadd.f32 %v3109, %v3017
      %v3111 = vadd.f32 %v3110, %v3021
      %v3112 = vadd.f32 %v3111, %v3027
      %v3113 = vadd.f32 %v3112, %v3031
      %v3114 = vadd.f32 %v3113, %v3037
      %v3115 = vadd.f32 %v3114, %v3041
      %v3116 = vadd.f32 %v3115, %v3047
      %v3117 = vadd.f32 %v3116, %v3051
      %v3118 = vadd.f32 %v3117, %v3057
      %v3119 = vadd.f32 %v3118, %v3061
      %v3120 = vadd.f32 %v3119, %v3067
      %v3121 = vadd.f32 %v3120, %v3071
      %v3122 = vadd.f32 %v3121, %v3077
      %v3123 = vadd.f32 %v3122, %v3081
      %v3124 = vadd.f32 %v3123, %v3087
      %v3125 = vadd.f32 %v3124, %v3091
      %v3126 = vrot.slane %v3125, 4
      %v3127 = vadd.f32 %v3125, %v3126
      %v3128 = vrot.slane %v3127, 2
      %v3129 = vadd.f32 %v3127, %v3128
      %v3130 = vrot.slane %v3129, 1
      %v3131 = vadd.f32 %v3129, %v3130
      %v3132 = vadd.f32 %v2939, %v2943
      %v3133 = vadd.f32 %v3132, %v2949
      %v3134 = vadd.f32 %v3133, %v2953
      %v3135 = vadd.f32 %v3134, %v2959
      %v3136 = vadd.f32 %v3135, %v2963
      %v3137 = vadd.f32 %v3136, %v2969
      %v3138 = vadd.f32 %v3137, %v2973
      %v3139 = vadd.f32 %v3138, %v2979
      %v3140 = vadd.f32 %v3139, %v2983
      %v3141 = vadd.f32 %v3140, %v2989
      %v3142 = vadd.f32 %v3141, %v2993
      %v3143 = vadd.f32 %v3142, %v2999
      %v3144 = vadd.f32 %v3143, %v3003
      %v3145 = vadd.f32 %v3144, %v3009
      %v3146 = vadd.f32 %v3145, %v3013
      %v3147 = vadd.f32 %v3146, %v3019
      %v3148 = vadd.f32 %v3147, %v3023
      %v3149 = vadd.f32 %v3148, %v3029
      %v3150 = vadd.f32 %v3149, %v3033
      %v3151 = vadd.f32 %v3150, %v3039
      %v3152 = vadd.f32 %v3151, %v3043
      %v3153 = vadd.f32 %v3152, %v3049
      %v3154 = vadd.f32 %v3153, %v3053
      %v3155 = vadd.f32 %v3154, %v3059
      %v3156 = vadd.f32 %v3155, %v3063
      %v3157 = vadd.f32 %v3156, %v3069
      %v3158 = vadd.f32 %v3157, %v3073
      %v3159 = vadd.f32 %v3158, %v3079
      %v3160 = vadd.f32 %v3159, %v3083
      %v3161 = vadd.f32 %v3160, %v3089
      %v3162 = vadd.f32 %v3161, %v3093
      %v3163 = vrot.slane %v3162, 4
      %v3164 = vadd.f32 %v3162, %v3163
      %v3165 = vrot.slane %v3164, 2
      %v3166 = vadd.f32 %v3164, %v3165
      %v3167 = vrot.slane %v3166, 1
      %v3168 = vadd.f32 %v3166, %v3167
      %v3169 = vrcp.pop 256.0
      %v3170 = vmul.f32 %v3131, %v3169
      %v3171 = vmul.f32 %v3168, %v3169
      %v3172 = vpack.c.bf16 %v3170, %v3170
      %v3173 = vpack.c.bf16 %v3171, %v3171
      %v3174 = vld [vmem:[%s7] sm:$0xf]
      %v3175 = vld [vmem:[%s7 + $0x4] sm:$0xf]
      %v3176 = vld [vmem:[%s7 + $0x8] sm:$0xf]
      %v3177 = vld [vmem:[%s7 + $0xc] sm:$0xf]
      %v3178 = vld [vmem:[%s7 + $0x10] sm:$0xf]
      %v3179 = vld [vmem:[%s7 + $0x14] sm:$0xf]
      %v3180 = vld [vmem:[%s7 + $0x18] sm:$0xf]
      %v3181 = vld [vmem:[%s7 + $0x1c] sm:$0xf]
      %v3182 = vld [vmem:[%s7 + $0x20] sm:$0xf]
      %v3183 = vld [vmem:[%s7 + $0x24] sm:$0xf]
      %v3184 = vld [vmem:[%s7 + $0x28] sm:$0xf]
      %v3185 = vld [vmem:[%s7 + $0x2c] sm:$0xf]
      %v3186 = vld [vmem:[%s7 + $0x30] sm:$0xf]
      %v3187 = vld [vmem:[%s7 + $0x34] sm:$0xf]
      %v3188 = vld [vmem:[%s7 + $0x38] sm:$0xf]
      %v3189 = vld [vmem:[%s7 + $0x3c] sm:$0xf]
      %v3190 = vld [vmem:[%s7 + $0x40] sm:$0xf]
      %v3191 = vld [vmem:[%s7 + $0x44] sm:$0xf]
      %v3192 = vld [vmem:[%s7 + $0x48] sm:$0xf]
      %v3193 = vld [vmem:[%s7 + $0x4c] sm:$0xf]
      %v3194 = vld [vmem:[%s7 + $0x50] sm:$0xf]
      %v3195 = vld [vmem:[%s7 + $0x54] sm:$0xf]
      %v3196 = vld [vmem:[%s7 + $0x58] sm:$0xf]
      %v3197 = vld [vmem:[%s7 + $0x5c] sm:$0xf]
      %v3198 = vld [vmem:[%s7 + $0x60] sm:$0xf]
      %v3199 = vld [vmem:[%s7 + $0x64] sm:$0xf]
      %v3200 = vld [vmem:[%s7 + $0x68] sm:$0xf]
      %v3201 = vld [vmem:[%s7 + $0x6c] sm:$0xf]
      %v3202 = vld [vmem:[%s7 + $0x70] sm:$0xf]
      %v3203 = vld [vmem:[%s7 + $0x74] sm:$0xf]
      %v3204 = vld [vmem:[%s7 + $0x78] sm:$0xf]
      %v3205 = vld [vmem:[%s7 + $0x7c] sm:$0xf]
      %v3238 = vunpack.c.l.b16 %v3174
      %v3239 = vunpack.c.l.b16 %v3175
      %v3240 = vunpack.c.l.b16 %v3176
      %v3241 = vunpack.c.l.b16 %v3177
      %v3242 = vunpack.c.l.b16 %v3178
      %v3243 = vunpack.c.l.b16 %v3179
      %v3244 = vunpack.c.l.b16 %v3180
      %v3245 = vunpack.c.l.b16 %v3181
      %v3246 = vunpack.c.l.b16 %v3182
      %v3247 = vunpack.c.l.b16 %v3183
      %v3248 = vunpack.c.l.b16 %v3184
      %v3249 = vunpack.c.l.b16 %v3185
      %v3250 = vunpack.c.l.b16 %v3186
      %v3251 = vunpack.c.l.b16 %v3187
      %v3252 = vunpack.c.l.b16 %v3188
      %v3253 = vunpack.c.l.b16 %v3189
      %v3254 = vunpack.c.l.b16 %v3190
      %v3255 = vunpack.c.l.b16 %v3191
      %v3256 = vunpack.c.l.b16 %v3192
      %v3257 = vunpack.c.l.b16 %v3193
      %v3258 = vunpack.c.l.b16 %v3194
      %v3259 = vunpack.c.l.b16 %v3195
      %v3260 = vunpack.c.l.b16 %v3196
      %v3261 = vunpack.c.l.b16 %v3197
      %v3262 = vunpack.c.l.b16 %v3198
      %v3263 = vunpack.c.l.b16 %v3199
      %v3264 = vunpack.c.l.b16 %v3200
      %v3265 = vunpack.c.l.b16 %v3201
      %v3266 = vunpack.c.l.b16 %v3202
      %v3267 = vunpack.c.l.b16 %v3203
      %v3268 = vunpack.c.l.b16 %v3204
      %v3269 = vunpack.c.l.b16 %v3205
      %v3270 = vpack.c.b16 %v3239, %v3238
      %v3271 = vpack.c.b16 %v3241, %v3240
      %v3272 = vpack.c.b16 %v3243, %v3242
      %v3273 = vpack.c.b16 %v3245, %v3244
      %v3274 = vpack.c.b16 %v3247, %v3246
      %v3275 = vpack.c.b16 %v3249, %v3248
      %v3276 = vpack.c.b16 %v3251, %v3250
      %v3277 = vpack.c.b16 %v3253, %v3252
      %v3278 = vpack.c.b16 %v3255, %v3254
      %v3279 = vpack.c.b16 %v3257, %v3256
      %v3280 = vpack.c.b16 %v3259, %v3258
      %v3281 = vpack.c.b16 %v3261, %v3260
      %v3282 = vpack.c.b16 %v3263, %v3262
      %v3283 = vpack.c.b16 %v3265, %v3264
      %v3284 = vpack.c.b16 %v3267, %v3266
      %v3285 = vpack.c.b16 %v3269, %v3268
      %3302 = vmatprep.subr.bf16.mxu0 0
      %3303 = vmatpush1.bf16.msra.mxu0 %v3277
      %3304 = vmatprep.subr.bf16.mxu0 0
      %3305 = vmatpush1.bf16.msra.mxu0 %v3276
      %3306 = vmatprep.subr.bf16.mxu0 0
      %3307 = vmatpush1.bf16.msra.mxu0 %v3275
      %3308 = vmatprep.subr.bf16.mxu0 0
      %3309 = vmatpush1.bf16.msra.mxu0 %v3274
      %3310 = vmatprep.subr.bf16.mxu0 0
      %3311 = vmatpush1.bf16.msra.mxu0 %v3273
      %3312 = vmatprep.subr.bf16.mxu0 0
      %3313 = vmatpush1.bf16.msra.mxu0 %v3272
      %3314 = vmatprep.subr.bf16.mxu0 0
      %3315 = vmatpush1.bf16.msra.mxu0 %v3271
      %3316 = vmatprep.subr.bf16.mxu0 0
      %3317 = vmatpush1.bf16.msra.mxu0 %v3270
      %3318 = vmatprep.subr.bf16.mxu0 0
      %3319 = vmatpush2.bf16.msra.mxu0 %v3285
      %3320 = vmatprep.subr.bf16.mxu0 0
      %3321 = vmatpush2.bf16.msra.mxu0 %v3284
      %3322 = vmatprep.subr.bf16.mxu0 0
      %3323 = vmatpush2.bf16.msra.mxu0 %v3283
      %3324 = vmatprep.subr.bf16.mxu0 0
      %3325 = vmatpush2.bf16.msra.mxu0 %v3282
      %3326 = vmatprep.subr.bf16.mxu0 0
      %3327 = vmatpush2.bf16.msra.mxu0 %v3281
      %3328 = vmatprep.subr.bf16.mxu0 0
      %3329 = vmatpush2.bf16.msra.mxu0 %v3280
      %3330 = vmatprep.subr.bf16.mxu0 0
      %3331 = vmatpush2.bf16.msra.mxu0 %v3279
      %3332 = vmatprep.subr.bf16.mxu0 0
      %3333 = vmatpush2.bf16.msra.mxu0 %v3278
      %3334 = vmatprep.mubr.bf16.mxu0 %v3173
      %3335 = vmatmul.mubr.bf16.gmra.mxu0 %v3172
      %v3336 = vpop.f32.mrf.mxu0
      %v3337 = vadd.f32 0.0, %v3336
      %v3338 = vpop.f32.mrf.mxu0
      %v3339 = vpop.f32.mrf.mxu0
      %v3340 = vpop.f32.mrf.mxu0
      %3341 = vdwg.mxu0
      %v3342 = vmax.f32 %v3337, 0.0
      %v3343 = vpack.c.bf16 %v3342, %v3342
      %v3344 = vld [vmem:[%s8] sm:$0xff]
      %v3345 = vld [vmem:[%s8 + $0x8] sm:$0xff]
      %v3348 = vunpack.c.l.b16 %v3344
      %v3349 = vunpack.c.h.b16 %v3344
      %v3350 = vunpack.c.l.b16 %v3345
      %v3351 = vunpack.c.h.b16 %v3345
      %v3352 = vpack.c.b16 %v3350, %v3348
      %v3353 = vpack.c.b16 %v3351, %v3349
      %vm3356 = vcmask 130048
      %v3358 = vsel %vm3356, %v3343, 0
      %3360 = vmatprep.subr.bf16.mxu0 0
      %3361 = vmatpush1.bf16.msra.mxu0 0
      %3362 = vmatprep.subr.bf16.mxu0 0
      %3363 = vmatpush1.bf16.msra.mxu0 0
      %3364 = vmatprep.subr.bf16.mxu0 0
      %3365 = vmatpush1.bf16.msra.mxu0 0
      %3366 = vmatprep.subr.bf16.mxu0 0
      %3367 = vmatpush1.bf16.msra.mxu0 0
      %3368 = vmatprep.subr.bf16.mxu0 0
      %3369 = vmatpush1.bf16.msra.mxu0 0
      %3370 = vmatprep.subr.bf16.mxu0 0
      %3371 = vmatpush1.bf16.msra.mxu0 0
      %3372 = vmatprep.subr.bf16.mxu0 0
      %3373 = vmatpush1.bf16.msra.mxu0 0
      %3374 = vmatprep.subr.bf16.mxu0 %v3353
      %3375 = vmatpush1.bf16.msra.mxu0 %v3352
      %3376 = vmatprep.subr.bf16.mxu0 0
      %3377 = vmatpush2.bf16.msra.mxu0 0
      %3378 = vmatprep.subr.bf16.mxu0 0
      %3379 = vmatpush2.bf16.msra.mxu0 0
      %3380 = vmatprep.subr.bf16.mxu0 0
      %3381 = vmatpush2.bf16.msra.mxu0 0
      %3382 = vmatprep.subr.bf16.mxu0 0
      %3383 = vmatpush2.bf16.msra.mxu0 0
      %3384 = vmatprep.subr.bf16.mxu0 0
      %3385 = vmatpush2.bf16.msra.mxu0 0
      %3386 = vmatprep.subr.bf16.mxu0 0
      %3387 = vmatpush2.bf16.msra.mxu0 0
      %3388 = vmatprep.subr.bf16.mxu0 0
      %3389 = vmatpush2.bf16.msra.mxu0 0
      %3390 = vmatprep.subr.bf16.mxu0 0
      %3391 = vmatpush2.bf16.msra.mxu0 0
      %3392 = vmatprep.mubr.bf16.mxu0 0
      %3393 = vmatmul.mubr.bf16.gmra.mxu0 %v3358
      %v3394 = vpop.f32.mrf.mxu0
      %v3395 = vadd.f32 0.0, %v3394
      %v3396 = vpop.f32.mrf.mxu0
      %v3397 = vadd.f32 0.0, %v3396
      %v3398 = vpop.f32.mrf.mxu0
      %v3399 = vpop.f32.mrf.mxu0
      %3400 = vdwg.mxu0
      %v3401 = vxor.u32 %v3395, 2147483648
      %v3402 = vxor.u32 %v3397, 2147483648
      %v3403 = vmul.f32 %v3401, 1.442695
      %v3404 = vpow.pop %v3403
      %v3405 = vmul.f32 %v3402, 1.442695
      %v3406 = vpow.pop %v3405
      %v3407 = vadd.f32 %v3404, 1.0
      %v3408 = vadd.f32 %v3406, 1.0
      %v3409 = vrcp.pop %v3407
      %v3410 = vmul.f32 1.0, %v3409
      %v3411 = vrcp.pop %v3408
      %v3412 = vmul.f32 1.0, %v3411
      %v3413 = vlaneseq
      %v3414 = vshrl.u32 %v3413, 7
      %v3415 = vsub.s32 0, %v3414
      %v3416 = vrot.slane %v3410, %v3415
      %v3417 = vlaneseq
      %v3418 = vshrl.u32 %v3417, 7
      %v3419 = vsub.s32 0, %v3418
      %v3420 = vrot.slane %v3412, %v3419
      %v3421 = vmul.f32 %v2937, %v3416
      %v3422 = vmul.f32 %v2939, %v3420
      %v3423 = vmul.f32 %v2941, %v3416
      %v3424 = vmul.f32 %v2943, %v3420
      %v3425 = vmul.f32 %v2947, %v3416
      %v3426 = vmul.f32 %v2949, %v3420
      %v3427 = vmul.f32 %v2951, %v3416
      %v3428 = vmul.f32 %v2953, %v3420
      %v3429 = vmul.f32 %v2957, %v3416
      %v3430 = vmul.f32 %v2959, %v3420
      %v3431 = vmul.f32 %v2961, %v3416
      %v3432 = vmul.f32 %v2963, %v3420
      %v3433 = vmul.f32 %v2967, %v3416
      %v3434 = vmul.f32 %v2969, %v3420
      %v3435 = vmul.f32 %v2971, %v3416
      %v3436 = vmul.f32 %v2973, %v3420
      %v3437 = vmul.f32 %v2977, %v3416
      %v3438 = vmul.f32 %v2979, %v3420
      %v3439 = vmul.f32 %v2981, %v3416
      %v3440 = vmul.f32 %v2983, %v3420
      %v3441 = vmul.f32 %v2987, %v3416
      %v3442 = vmul.f32 %v2989, %v3420
      %v3443 = vmul.f32 %v2991, %v3416
      %v3444 = vmul.f32 %v2993, %v3420
      %v3445 = vmul.f32 %v2997, %v3416
      %v3446 = vmul.f32 %v2999, %v3420
      %v3447 = vmul.f32 %v3001, %v3416
      %v3448 = vmul.f32 %v3003, %v3420
      %v3449 = vmul.f32 %v3007, %v3416
      %v3450 = vmul.f32 %v3009, %v3420
      %v3451 = vmul.f32 %v3011, %v3416
      %v3452 = vmul.f32 %v3013, %v3420
      %v3453 = vmul.f32 %v3017, %v3416
      %v3454 = vmul.f32 %v3019, %v3420
      %v3455 = vmul.f32 %v3021, %v3416
      %v3456 = vmul.f32 %v3023, %v3420
      %v3457 = vmul.f32 %v3027, %v3416
      %v3458 = vmul.f32 %v3029, %v3420
      %v3459 = vmul.f32 %v3031, %v3416
      %v3460 = vmul.f32 %v3033, %v3420
      %v3461 = vmul.f32 %v3037, %v3416
      %v3462 = vmul.f32 %v3039, %v3420
      %v3463 = vmul.f32 %v3041, %v3416
      %v3464 = vmul.f32 %v3043, %v3420
      %v3465 = vmul.f32 %v3047, %v3416
      %v3466 = vmul.f32 %v3049, %v3420
      %v3467 = vmul.f32 %v3051, %v3416
      %v3468 = vmul.f32 %v3053, %v3420
      %v3469 = vmul.f32 %v3057, %v3416
      %v3470 = vmul.f32 %v3059, %v3420
      %v3471 = vmul.f32 %v3061, %v3416
      %v3472 = vmul.f32 %v3063, %v3420
      %v3473 = vmul.f32 %v3067, %v3416
      %v3474 = vmul.f32 %v3069, %v3420
      %v3475 = vmul.f32 %v3071, %v3416
      %v3476 = vmul.f32 %v3073, %v3420
      %v3477 = vmul.f32 %v3077, %v3416
      %v3478 = vmul.f32 %v3079, %v3420
      %v3479 = vmul.f32 %v3081, %v3416
      %v3480 = vmul.f32 %v3083, %v3420
      %v3481 = vmul.f32 %v3087, %v3416
      %v3482 = vmul.f32 %v3089, %v3420
      %v3483 = vmul.f32 %v3091, %v3416
      %v3484 = vmul.f32 %v3093, %v3420
      %3485 = vxpose.xlu0.b32.start [1/16] %v3421, 128
      %3486 = vxpose.xlu0.b32.cont [2/16] %v3423, 128
      %3487 = vxpose.xlu0.b32.cont [3/16] %v3425, 128
      %3488 = vxpose.xlu0.b32.cont [4/16] %v3427, 128
      %3489 = vxpose.xlu0.b32.cont [5/16] %v3429, 128
      %3490 = vxpose.xlu0.b32.cont [6/16] %v3431, 128
      %3491 = vxpose.xlu0.b32.cont [7/16] %v3433, 128
      %3492 = vxpose.xlu0.b32.cont [8/16] %v3435, 128
      %3493 = vxpose.xlu0.b32.cont [9/16] %v3437, 128
      %3494 = vxpose.xlu0.b32.cont [10/16] %v3439, 128
      %3495 = vxpose.xlu0.b32.cont [11/16] %v3441, 128
      %3496 = vxpose.xlu0.b32.cont [12/16] %v3443, 128
      %3497 = vxpose.xlu0.b32.cont [13/16] %v3445, 128
      %3498 = vxpose.xlu0.b32.cont [14/16] %v3447, 128
      %3499 = vxpose.xlu0.b32.cont [15/16] %v3449, 128
      %3500 = vxpose.xlu0.b32.end [16/16] %v3451, 128
      %v3501 = vpop.trf.xlu0
      %v3502 = vpop.trf.xlu0
      %v3503 = vpop.trf.xlu0
      %v3504 = vpop.trf.xlu0
      %v3505 = vpop.trf.xlu0
      %v3506 = vpop.trf.xlu0
      %v3507 = vpop.trf.xlu0
      %v3508 = vpop.trf.xlu0
      %v3509 = vpop.trf.xlu0
      %v3510 = vpop.trf.xlu0
      %v3511 = vpop.trf.xlu0
      %v3512 = vpop.trf.xlu0
      %v3513 = vpop.trf.xlu0
      %v3514 = vpop.trf.xlu0
      %v3515 = vpop.trf.xlu0
      %v3516 = vpop.trf.xlu0
      %3517 = vxpose.xlu0.b32.start [1/16] %v3422, 128
      %3518 = vxpose.xlu0.b32.cont [2/16] %v3424, 128
      %3519 = vxpose.xlu0.b32.cont [3/16] %v3426, 128
      %3520 = vxpose.xlu0.b32.cont [4/16] %v3428, 128
      %3521 = vxpose.xlu0.b32.cont [5/16] %v3430, 128
      %3522 = vxpose.xlu0.b32.cont [6/16] %v3432, 128
      %3523 = vxpose.xlu0.b32.cont [7/16] %v3434, 128
      %3524 = vxpose.xlu0.b32.cont [8/16] %v3436, 128
      %3525 = vxpose.xlu0.b32.cont [9/16] %v3438, 128
      %3526 = vxpose.xlu0.b32.cont [10/16] %v3440, 128
      %3527 = vxpose.xlu0.b32.cont [11/16] %v3442, 128
      %3528 = vxpose.xlu0.b32.cont [12/16] %v3444, 128
      %3529 = vxpose.xlu0.b32.cont [13/16] %v3446, 128
      %3530 = vxpose.xlu0.b32.cont [14/16] %v3448, 128
      %3531 = vxpose.xlu0.b32.cont [15/16] %v3450, 128
      %3532 = vxpose.xlu0.b32.end [16/16] %v3452, 128
      %v3533 = vpop.trf.xlu0
      %v3534 = vpop.trf.xlu0
      %v3535 = vpop.trf.xlu0
      %v3536 = vpop.trf.xlu0
      %v3537 = vpop.trf.xlu0
      %v3538 = vpop.trf.xlu0
      %v3539 = vpop.trf.xlu0
      %v3540 = vpop.trf.xlu0
      %v3541 = vpop.trf.xlu0
      %v3542 = vpop.trf.xlu0
      %v3543 = vpop.trf.xlu0
      %v3544 = vpop.trf.xlu0
      %v3545 = vpop.trf.xlu0
      %v3546 = vpop.trf.xlu0
      %v3547 = vpop.trf.xlu0
      %v3548 = vpop.trf.xlu0
      %3549 = vxpose.xlu0.b32.start [1/16] %v3453, 128
      %3550 = vxpose.xlu0.b32.cont [2/16] %v3455, 128
      %3551 = vxpose.xlu0.b32.cont [3/16] %v3457, 128
      %3552 = vxpose.xlu0.b32.cont [4/16] %v3459, 128
      %3553 = vxpose.xlu0.b32.cont [5/16] %v3461, 128
      %3554 = vxpose.xlu0.b32.cont [6/16] %v3463, 128
      %3555 = vxpose.xlu0.b32.cont [7/16] %v3465, 128
      %3556 = vxpose.xlu0.b32.cont [8/16] %v3467, 128
      %3557 = vxpose.xlu0.b32.cont [9/16] %v3469, 128
      %3558 = vxpose.xlu0.b32.cont [10/16] %v3471, 128
      %3559 = vxpose.xlu0.b32.cont [11/16] %v3473, 128
      %3560 = vxpose.xlu0.b32.cont [12/16] %v3475, 128
      %3561 = vxpose.xlu0.b32.cont [13/16] %v3477, 128
      %3562 = vxpose.xlu0.b32.cont [14/16] %v3479, 128
      %3563 = vxpose.xlu0.b32.cont [15/16] %v3481, 128
      %3564 = vxpose.xlu0.b32.end [16/16] %v3483, 128
      %v3565 = vpop.trf.xlu0
      %v3566 = vpop.trf.xlu0
      %v3567 = vpop.trf.xlu0
      %v3568 = vpop.trf.xlu0
      %v3569 = vpop.trf.xlu0
      %v3570 = vpop.trf.xlu0
      %v3571 = vpop.trf.xlu0
      %v3572 = vpop.trf.xlu0
      %v3573 = vpop.trf.xlu0
      %v3574 = vpop.trf.xlu0
      %v3575 = vpop.trf.xlu0
      %v3576 = vpop.trf.xlu0
      %v3577 = vpop.trf.xlu0
      %v3578 = vpop.trf.xlu0
      %v3579 = vpop.trf.xlu0
      %v3580 = vpop.trf.xlu0
      %3581 = vxpose.xlu0.b32.start [1/16] %v3454, 128
      %3582 = vxpose.xlu0.b32.cont [2/16] %v3456, 128
      %3583 = vxpose.xlu0.b32.cont [3/16] %v3458, 128
      %3584 = vxpose.xlu0.b32.cont [4/16] %v3460, 128
      %3585 = vxpose.xlu0.b32.cont [5/16] %v3462, 128
      %3586 = vxpose.xlu0.b32.cont [6/16] %v3464, 128
      %3587 = vxpose.xlu0.b32.cont [7/16] %v3466, 128
      %3588 = vxpose.xlu0.b32.cont [8/16] %v3468, 128
      %3589 = vxpose.xlu0.b32.cont [9/16] %v3470, 128
      %3590 = vxpose.xlu0.b32.cont [10/16] %v3472, 128
      %3591 = vxpose.xlu0.b32.cont [11/16] %v3474, 128
      %3592 = vxpose.xlu0.b32.cont [12/16] %v3476, 128
      %3593 = vxpose.xlu0.b32.cont [13/16] %v3478, 128
      %3594 = vxpose.xlu0.b32.cont [14/16] %v3480, 128
      %3595 = vxpose.xlu0.b32.cont [15/16] %v3482, 128
      %3596 = vxpose.xlu0.b32.end [16/16] %v3484, 128
      %v3597 = vpop.trf.xlu0
      %v3598 = vpop.trf.xlu0
      %v3599 = vpop.trf.xlu0
      %v3600 = vpop.trf.xlu0
      %v3601 = vpop.trf.xlu0
      %v3602 = vpop.trf.xlu0
      %v3603 = vpop.trf.xlu0
      %v3604 = vpop.trf.xlu0
      %v3605 = vpop.trf.xlu0
      %v3606 = vpop.trf.xlu0
      %v3607 = vpop.trf.xlu0
      %v3608 = vpop.trf.xlu0
      %v3609 = vpop.trf.xlu0
      %v3610 = vpop.trf.xlu0
      %v3611 = vpop.trf.xlu0
      %v3612 = vpop.trf.xlu0
      %v3613 = vadd.f32 %v3501, %v334
      %v3614 = vadd.f32 %v3565, %v335
      %v3615 = vadd.f32 %v3502, %v336
      %v3616 = vadd.f32 %v3566, %v337
      %v3617 = vadd.f32 %v3503, %v338
      %v3618 = vadd.f32 %v3567, %v339
      %v3619 = vadd.f32 %v3504, %v340
      %v3620 = vadd.f32 %v3568, %v341
      %v3621 = vadd.f32 %v3505, %v342
      %v3622 = vadd.f32 %v3569, %v343
      %v3623 = vadd.f32 %v3506, %v344
      %v3624 = vadd.f32 %v3570, %v345
      %v3625 = vadd.f32 %v3507, %v346
      %v3626 = vadd.f32 %v3571, %v347
      %v3627 = vadd.f32 %v3508, %v348
      %v3628 = vadd.f32 %v3572, %v349
      %v3629 = vadd.f32 %v3509, %v350
      %v3630 = vadd.f32 %v3573, %v351
      %v3631 = vadd.f32 %v3510, %v352
      %v3632 = vadd.f32 %v3574, %v353
      %v3633 = vadd.f32 %v3511, %v354
      %v3634 = vadd.f32 %v3575, %v355
      %v3635 = vadd.f32 %v3512, %v356
      %v3636 = vadd.f32 %v3576, %v357
      %v3637 = vadd.f32 %v3513, %v358
      %v3638 = vadd.f32 %v3577, %v359
      %v3639 = vadd.f32 %v3514, %v360
      %v3640 = vadd.f32 %v3578, %v361
      %v3641 = vadd.f32 %v3515, %v362
      %v3642 = vadd.f32 %v3579, %v363
      %v3643 = vadd.f32 %v3516, %v364
      %v3644 = vadd.f32 %v3580, %v365
      %v3645 = vadd.f32 %v3533, %v366
      %v3646 = vadd.f32 %v3597, %v367
      %v3647 = vadd.f32 %v3534, %v368
      %v3648 = vadd.f32 %v3598, %v369
      %v3649 = vadd.f32 %v3535, %v370
      %v3650 = vadd.f32 %v3599, %v371
      %v3651 = vadd.f32 %v3536, %v372
      %v3652 = vadd.f32 %v3600, %v373
      %v3653 = vadd.f32 %v3537, %v374
      %v3654 = vadd.f32 %v3601, %v375
      %v3655 = vadd.f32 %v3538, %v376
      %v3656 = vadd.f32 %v3602, %v377
      %v3657 = vadd.f32 %v3539, %v378
      %v3658 = vadd.f32 %v3603, %v379
      %v3659 = vadd.f32 %v3540, %v380
      %v3660 = vadd.f32 %v3604, %v381
      %v3661 = vadd.f32 %v3541, %v382
      %v3662 = vadd.f32 %v3605, %v383
      %v3663 = vadd.f32 %v3542, %v384
      %v3664 = vadd.f32 %v3606, %v385
      %v3665 = vadd.f32 %v3543, %v386
      %v3666 = vadd.f32 %v3607, %v387
      %v3667 = vadd.f32 %v3544, %v388
      %v3668 = vadd.f32 %v3608, %v389
      %v3669 = vadd.f32 %v3545, %v390
      %v3670 = vadd.f32 %v3609, %v391
      %v3671 = vadd.f32 %v3546, %v392
      %v3672 = vadd.f32 %v3610, %v393
      %v3673 = vadd.f32 %v3547, %v394
      %v3674 = vadd.f32 %v3611, %v395
      %v3675 = vadd.f32 %v3548, %v396
      %v3676 = vadd.f32 %v3612, %v397
      %v3677 = vmax.f32 %v3613, 0.0
      %v3678 = vmax.f32 %v3614, 0.0
      %v3679 = vmax.f32 %v3615, 0.0
      %v3680 = vmax.f32 %v3616, 0.0
      %v3681 = vmax.f32 %v3617, 0.0
      %v3682 = vmax.f32 %v3618, 0.0
      %v3683 = vmax.f32 %v3619, 0.0
      %v3684 = vmax.f32 %v3620, 0.0
      %v3685 = vmax.f32 %v3621, 0.0
      %v3686 = vmax.f32 %v3622, 0.0
      %v3687 = vmax.f32 %v3623, 0.0
      %v3688 = vmax.f32 %v3624, 0.0
      %v3689 = vmax.f32 %v3625, 0.0
      %v3690 = vmax.f32 %v3626, 0.0
      %v3691 = vmax.f32 %v3627, 0.0
      %v3692 = vmax.f32 %v3628, 0.0
      %v3693 = vmax.f32 %v3629, 0.0
      %v3694 = vmax.f32 %v3630, 0.0
      %v3695 = vmax.f32 %v3631, 0.0
      %v3696 = vmax.f32 %v3632, 0.0
      %v3697 = vmax.f32 %v3633, 0.0
      %v3698 = vmax.f32 %v3634, 0.0
      %v3699 = vmax.f32 %v3635, 0.0
      %v3700 = vmax.f32 %v3636, 0.0
      %v3701 = vmax.f32 %v3637, 0.0
      %v3702 = vmax.f32 %v3638, 0.0
      %v3703 = vmax.f32 %v3639, 0.0
      %v3704 = vmax.f32 %v3640, 0.0
      %v3705 = vmax.f32 %v3641, 0.0
      %v3706 = vmax.f32 %v3642, 0.0
      %v3707 = vmax.f32 %v3643, 0.0
      %v3708 = vmax.f32 %v3644, 0.0
      %v3709 = vmax.f32 %v3645, 0.0
      %v3710 = vmax.f32 %v3646, 0.0
      %v3711 = vmax.f32 %v3647, 0.0
      %v3712 = vmax.f32 %v3648, 0.0
      %v3713 = vmax.f32 %v3649, 0.0
      %v3714 = vmax.f32 %v3650, 0.0
      %v3715 = vmax.f32 %v3651, 0.0
      %v3716 = vmax.f32 %v3652, 0.0
      %v3717 = vmax.f32 %v3653, 0.0
      %v3718 = vmax.f32 %v3654, 0.0
      %v3719 = vmax.f32 %v3655, 0.0
      %v3720 = vmax.f32 %v3656, 0.0
      %v3721 = vmax.f32 %v3657, 0.0
      %v3722 = vmax.f32 %v3658, 0.0
      %v3723 = vmax.f32 %v3659, 0.0
      %v3724 = vmax.f32 %v3660, 0.0
      %v3725 = vmax.f32 %v3661, 0.0
      %v3726 = vmax.f32 %v3662, 0.0
      %v3727 = vmax.f32 %v3663, 0.0
      %v3728 = vmax.f32 %v3664, 0.0
      %v3729 = vmax.f32 %v3665, 0.0
      %v3730 = vmax.f32 %v3666, 0.0
      %v3731 = vmax.f32 %v3667, 0.0
      %v3732 = vmax.f32 %v3668, 0.0
      %v3733 = vmax.f32 %v3669, 0.0
      %v3734 = vmax.f32 %v3670, 0.0
      %v3735 = vmax.f32 %v3671, 0.0
      %v3736 = vmax.f32 %v3672, 0.0
      %v3737 = vmax.f32 %v3673, 0.0
      %v3738 = vmax.f32 %v3674, 0.0
      %v3739 = vmax.f32 %v3675, 0.0
      %v3740 = vmax.f32 %v3676, 0.0
      %3741 = vst [vmem:[%s332] sm:$0xff] %v3677
      %3742 = vst [vmem:[%s332 + $0x8] sm:$0xff] %v3678
      %3743 = vst [vmem:[%s332 + $0x10] sm:$0xff] %v3679
      %3744 = vst [vmem:[%s332 + $0x18] sm:$0xff] %v3680
      %3745 = vst [vmem:[%s332 + $0x20] sm:$0xff] %v3681
      %3746 = vst [vmem:[%s332 + $0x28] sm:$0xff] %v3682
      %3747 = vst [vmem:[%s332 + $0x30] sm:$0xff] %v3683
      %3748 = vst [vmem:[%s332 + $0x38] sm:$0xff] %v3684
      %3749 = vst [vmem:[%s332 + $0x40] sm:$0xff] %v3685
      %3750 = vst [vmem:[%s332 + $0x48] sm:$0xff] %v3686
      %3751 = vst [vmem:[%s332 + $0x50] sm:$0xff] %v3687
      %3752 = vst [vmem:[%s332 + $0x58] sm:$0xff] %v3688
      %3753 = vst [vmem:[%s332 + $0x60] sm:$0xff] %v3689
      %3754 = vst [vmem:[%s332 + $0x68] sm:$0xff] %v3690
      %3755 = vst [vmem:[%s332 + $0x70] sm:$0xff] %v3691
      %3756 = vst [vmem:[%s332 + $0x78] sm:$0xff] %v3692
      %3757 = vst [vmem:[%s332 + $0x80] sm:$0xff] %v3693
      %3758 = vst [vmem:[%s332 + $0x88] sm:$0xff] %v3694
      %3759 = vst [vmem:[%s332 + $0x90] sm:$0xff] %v3695
      %3760 = vst [vmem:[%s332 + $0x98] sm:$0xff] %v3696
      %3761 = vst [vmem:[%s332 + $0xa0] sm:$0xff] %v3697
      %3762 = vst [vmem:[%s332 + $0xa8] sm:$0xff] %v3698
      %3763 = vst [vmem:[%s332 + $0xb0] sm:$0xff] %v3699
      %3764 = vst [vmem:[%s332 + $0xb8] sm:$0xff] %v3700
      %3765 = vst [vmem:[%s332 + $0xc0] sm:$0xff] %v3701
      %3766 = vst [vmem:[%s332 + $0xc8] sm:$0xff] %v3702
      %3767 = vst [vmem:[%s332 + $0xd0] sm:$0xff] %v3703
      %3768 = vst [vmem:[%s332 + $0xd8] sm:$0xff] %v3704
      %3769 = vst [vmem:[%s332 + $0xe0] sm:$0xff] %v3705
      %3770 = vst [vmem:[%s332 + $0xe8] sm:$0xff] %v3706
      %3771 = vst [vmem:[%s332 + $0xf0] sm:$0xff] %v3707
      %3772 = vst [vmem:[%s332 + $0xf8] sm:$0xff] %v3708
      %3773 = vst [vmem:[%s332 + $0x100] sm:$0xff] %v3709
      %3774 = vst [vmem:[%s332 + $0x108] sm:$0xff] %v3710
      %3775 = vst [vmem:[%s332 + $0x110] sm:$0xff] %v3711
      %3776 = vst [vmem:[%s332 + $0x118] sm:$0xff] %v3712
      %3777 = vst [vmem:[%s332 + $0x120] sm:$0xff] %v3713
      %3778 = vst [vmem:[%s332 + $0x128] sm:$0xff] %v3714
      %3779 = vst [vmem:[%s332 + $0x130] sm:$0xff] %v3715
      %3780 = vst [vmem:[%s332 + $0x138] sm:$0xff] %v3716
      %3781 = vst [vmem:[%s332 + $0x140] sm:$0xff] %v3717
      %3782 = vst [vmem:[%s332 + $0x148] sm:$0xff] %v3718
      %3783 = vst [vmem:[%s332 + $0x150] sm:$0xff] %v3719
      %3784 = vst [vmem:[%s332 + $0x158] sm:$0xff] %v3720
      %3785 = vst [vmem:[%s332 + $0x160] sm:$0xff] %v3721
      %3786 = vst [vmem:[%s332 + $0x168] sm:$0xff] %v3722
      %3787 = vst [vmem:[%s332 + $0x170] sm:$0xff] %v3723
      %3788 = vst [vmem:[%s332 + $0x178] sm:$0xff] %v3724
      %3789 = vst [vmem:[%s332 + $0x180] sm:$0xff] %v3725
      %3790 = vst [vmem:[%s332 + $0x188] sm:$0xff] %v3726
      %3791 = vst [vmem:[%s332 + $0x190] sm:$0xff] %v3727
      %3792 = vst [vmem:[%s332 + $0x198] sm:$0xff] %v3728
      %3793 = vst [vmem:[%s332 + $0x1a0] sm:$0xff] %v3729
      %3794 = vst [vmem:[%s332 + $0x1a8] sm:$0xff] %v3730
      %3795 = vst [vmem:[%s332 + $0x1b0] sm:$0xff] %v3731
      %3796 = vst [vmem:[%s332 + $0x1b8] sm:$0xff] %v3732
      %3797 = vst [vmem:[%s332 + $0x1c0] sm:$0xff] %v3733
      %3798 = vst [vmem:[%s332 + $0x1c8] sm:$0xff] %v3734
      %3799 = vst [vmem:[%s332 + $0x1d0] sm:$0xff] %v3735
      %3800 = vst [vmem:[%s332 + $0x1d8] sm:$0xff] %v3736
      %3801 = vst [vmem:[%s332 + $0x1e0] sm:$0xff] %v3737
      %3802 = vst [vmem:[%s332 + $0x1e8] sm:$0xff] %v3738
      %3803 = vst [vmem:[%s332 + $0x1f0] sm:$0xff] %v3739
      %3804 = vst [vmem:[%s332 + $0x1f8] sm:$0xff] %v3740
      %p3805 = scmp.lt.s32.totalorder %s20, 1
      %s3806 = scalar_select %p3805, %s20, 1
      %s3807 = smul.addr %s3806, 64
      %s3808 = smul.addr %s3807, 8
      %s3809 = scalar_lea.vmem %s9, %s3808
      // Predicated region
      $region57: #{se_bottleneck_forward.1} parent=55 // pred_check
        %p3810 = pneg %p232
      $region58: #{se_bottleneck_forward.1} parent=55 // pred_check_branch
        %3812 = sbr.rel (%p3810) target = $region60
      $region59: #{se_bottleneck_forward.1} parent=55 // pred_region
        _
      $region60: #{se_bottleneck_forward.1} parent=55 // pred_fallthru
        _
    $region56: #{se_bottleneck_forward.1} parent=5 // pred_fallthru
      _
    %p3813 = scmp.le.s32.totalorder 2, %s15
    // Predicated region
    $region61: #{se_bottleneck_forward.1} parent=5 // pred_check
      %p3814 = pneg %p3813
    $region62: #{se_bottleneck_forward.1} parent=5 // pred_check_branch
      %3816 = sbr.rel (%p3814) target = $region64
    $region63: #{se_bottleneck_forward.1} parent=5 // pred_region
      %s3817 = ssub.s32 %s15, 2
      // Predicated region
      $region65: #{se_bottleneck_forward.1} parent=63 // pred_check
        %p3818 = pneg %p238
      $region66: #{se_bottleneck_forward.1} parent=63 // pred_check_branch
        %3820 = sbr.rel (%p3818) target = $region68
      $region67: #{se_bottleneck_forward.1} parent=63 // pred_region
        %p3821 = scmp.lt.s32.totalorder %s21, 1
        %s3822 = scalar_select %p3821, %s21, 1
        %s3823 = smul.addr %s3822, 64
        %s3824 = smul.addr %s3823, 8
        %s3825 = scalar_lea.vmem %s9, %s3824
      $region68: #{se_bottleneck_forward.1} parent=63 // pred_fallthru
        _
    $region64: #{se_bottleneck_forward.1} parent=5 // pred_fallthru
      _
  $region6: #{se_bottleneck_forward.1} parent=0 // loop_footer
    %s19 = sadd.s32 1, %s15
  $region7: #{se_bottleneck_forward.1} parent=0 // loop_footer_branch
    %14 = sbr.rel target = $region3
  $region8: #{se_bottleneck_forward.1} parent=0 // loop_exit
    _

</llo_original>
